<compile_context>
chip_gen: v7x
topology: tpu7x:2x2x1
jax: 0.10.0
libtpu: 0.0.40
codegen_flags: <defaults>
</compile_context>

<pallas_src>
import jax
import jax.numpy as jnp
from jax.experimental import pallas as pl
from jax.experimental.pallas import tpu as pltpu

TB = 256                       # batch rows per grid step (fills MXU M dim)
D_IN, D_IN_PAD = 784, 896      # 896 = 7 * 128
N_CLS, N_CLS_PAD = 10, 128
NEG = -1e30                    # bias for padded (fake) classes -> exp() == 0


def _round_up(x, m):
    return (x + m - 1) // m * m


def mlp_kernel(x_ref,
               w1_ref, b1_ref,
               w2_ref, b2_ref,
               w3_ref, b3_ref,
               w4_ref, b4_ref,
               o_ref):
    """One batch tile: (TB, 896) bf16 -> (TB, 128) f32 log-probs."""
    x = x_ref[...]                                          # bf16 (TB, 896)

    # fc1 + ReLU   (TB, 896) @ (896, 256), f32 accumulation on the MXU
    h1 = jnp.dot(x, w1_ref[...], preferred_element_type=jnp.float32) + b1_ref[...]
    h1 = jnp.maximum(h1, 0.0).astype(jnp.bfloat16)
    # TODO(synk): nn.Dropout(p=0.2) is stochastic training-mode only; forward
    # is implemented with eval semantics (identity).  Training parity would
    # need pltpu.prng_seed + pltpu.stateful_bernoulli.

    # fc2 + ReLU   (TB, 256) @ (256, 128)
    h2 = jnp.dot(h1, w2_ref[...], preferred_element_type=jnp.float32) + b2_ref[...]
    h2 = jnp.maximum(h2, 0.0).astype(jnp.bfloat16)

    # fc3 + ReLU   (TB, 128) @ (128, 64)
    h3 = jnp.dot(h2, w3_ref[...], preferred_element_type=jnp.float32) + b3_ref[...]
    h3 = jnp.maximum(h3, 0.0).astype(jnp.bfloat16)

    # fc4          (TB, 64) @ (64, 128)   (cols 10..127 are pads, bias=-1e30)
    logits = jnp.dot(h3, w4_ref[...], preferred_element_type=jnp.float32) + b4_ref[...]

    # numerically stable log_softmax over the class axis (f32)
    m = jnp.max(logits, axis=-1, keepdims=True)
    shifted = logits - m
    lse = jnp.log(jnp.sum(jnp.exp(shifted), axis=-1, keepdims=True))
    o_ref[...] = shifted - lse


@jax.jit
def my_awesome_model_forward(x_nchw, kparams):
    """x_nchw: (B, 1, 28, 28) f32; kparams: prepared (padded/bf16) params.
    Returns (B, 10) f32 log-probabilities."""
    B = x_nchw.shape[0]
    x2d = x_nchw.reshape(B, -1).astype(jnp.float32)   # == torch .view(B, -1)

    b_pad = _round_up(max(B, TB), TB)
    x2d = jnp.pad(x2d, ((0, b_pad - B), (0, D_IN_PAD - D_IN)))
    x2d = x2d.astype(jnp.bfloat16)

    w1, b1, w2, b2, w3, b3, w4, b4 = kparams

    def const_spec(arr):  # full-array block, resident across the whole grid
        return pl.BlockSpec(arr.shape, lambda i: (0, 0))

    out = pl.pallas_call(
        mlp_kernel,
        out_shape=jax.ShapeDtypeStruct((b_pad, N_CLS_PAD), jnp.float32),
        grid=(b_pad // TB,),
        in_specs=[
            pl.BlockSpec((TB, D_IN_PAD), lambda i: (i, 0)),   # x tiled over batch
            const_spec(w1), const_spec(b1),
            const_spec(w2), const_spec(b2),
            const_spec(w3), const_spec(b3),
            const_spec(w4), const_spec(b4),
        ],
        out_specs=pl.BlockSpec((TB, N_CLS_PAD), lambda i: (i, 0)),
        compiler_params=pltpu.CompilerParams(
            dimension_semantics=("parallel",)),
    )(x2d, w1, b1, w2, b2, w3, b3, w4, b4)

    return out[:B, :N_CLS]


def init_params(key):
    """PyTorch nn.Linear-style init; weights stored as (in, out), f32."""
    dims = [(784, 256), (256, 128), (128, 64), (64, 10)]
    params = []
    for fan_in, fan_out in dims:
        key, kw, kb = jax.random.split(key, 3)
        bound = 1.0 / jnp.sqrt(fan_in)
        w = jax.random.uniform(kw, (fan_in, fan_out), jnp.float32, -bound, bound)
        b = jax.random.uniform(kb, (1, fan_out), jnp.float32, -bound, bound)
        params.extend([w, b])
    return tuple(params)


def prepare_kernel_params(params):
    """Pad W1 rows 784->896 (zeros), pad fc4 cols 10->128 (W=0, b=NEG),
    cast weights to bf16 (MXU input dtype); biases stay f32."""
    w1, b1, w2, b2, w3, b3, w4, b4 = params
    w1p = jnp.pad(w1, ((0, D_IN_PAD - D_IN), (0, 0))).astype(jnp.bfloat16)
    w4p = jnp.pad(w4, ((0, 0), (0, N_CLS_PAD - N_CLS))).astype(jnp.bfloat16)
    b4p = jnp.pad(b4, ((0, 0), (0, N_CLS_PAD - N_CLS)),
                  constant_values=NEG).astype(jnp.float32)
    return (w1p, b1,
            w2.astype(jnp.bfloat16), b2,
            w3.astype(jnp.bfloat16), b3,
            w4p, b4p)


def _reference_forward(x_nchw, kparams):
    """Plain-JAX forward on the same prepared params (correctness check)."""
    w1, b1, w2, b2, w3, b3, w4, b4 = kparams
    B = x_nchw.shape[0]
    x = x_nchw.reshape(B, -1).astype(jnp.float32)
    x = jnp.pad(x, ((0, 0), (0, D_IN_PAD - D_IN))).astype(jnp.bfloat16)
    h = jnp.maximum(jnp.dot(x, w1, preferred_element_type=jnp.float32) + b1, 0.0)
    h = jnp.maximum(jnp.dot(h.astype(jnp.bfloat16), w2,
                            preferred_element_type=jnp.float32) + b2, 0.0)
    h = jnp.maximum(jnp.dot(h.astype(jnp.bfloat16), w3,
                            preferred_element_type=jnp.float32) + b3, 0.0)
    logits = jnp.dot(h.astype(jnp.bfloat16), w4,
                     preferred_element_type=jnp.float32) + b4
    return jax.nn.log_softmax(logits, axis=-1)[:, :N_CLS]


if __name__ == "__main__":
    key = jax.random.PRNGKey(0)
    key, k_x, k_p = jax.random.split(key, 3)

    B = 8
    x = jax.random.normal(k_x, (B, 1, 28, 28), dtype=jnp.float32)
    kparams = prepare_kernel_params(init_params(k_p))

    out = my_awesome_model_forward(x, kparams)
    out = jax.block_until_ready(out)

    assert out.shape == (B, N_CLS)
    assert bool(jnp.all(jnp.isfinite(out)))
    # log_softmax rows must exp-sum to ~1
    row_sums = jnp.sum(jnp.exp(out), axis=-1)
    assert bool(jnp.all(jnp.abs(row_sums - 1.0) < 1e-3))
    # match a plain-JAX reference built from the same bf16 params
    ref = _reference_forward(x, kparams)
    assert bool(jnp.max(jnp.abs(out - ref)) < 5e-3)

    print("KERNEL_OK")
</pallas_src>

<mosaic_0001>
module attributes {stable_mosaic.version = 11 : i64} {
  func.func @mlp_kernel(%arg0: i32, %arg1: memref<256x896xbf16, #tpu.memory_space<vmem>>, %arg2: memref<896x256xbf16, #tpu.memory_space<vmem>>, %arg3: memref<1x256xf32, #tpu.memory_space<vmem>>, %arg4: memref<256x128xbf16, #tpu.memory_space<vmem>>, %arg5: memref<1x128xf32, #tpu.memory_space<vmem>>, %arg6: memref<128x64xbf16, #tpu.memory_space<vmem>>, %arg7: memref<1x64xf32, #tpu.memory_space<vmem>>, %arg8: memref<64x128xbf16, #tpu.memory_space<vmem>>, %arg9: memref<1x128xf32, #tpu.memory_space<vmem>>, %arg10: memref<256x128xf32, #tpu.memory_space<vmem>>) attributes {dimension_semantics = [#tpu.dimension_semantics<parallel>], iteration_bounds = array<i64: 1>, scalar_prefetch = 0 : i64, scratch_operands = 0 : i64, tpu.core_type = #tpu.core_type<tc>, window_params = [{transform_indices = @transform_0, window_bounds = array<i64: 256, 896>}, {pipeline_mode = #tpu.pipeline_mode<synchronous>, transform_indices = @transform_1, window_bounds = array<i64: 896, 256>}, {pipeline_mode = #tpu.pipeline_mode<synchronous>, transform_indices = @transform_2, window_bounds = array<i64: 1, 256>}, {pipeline_mode = #tpu.pipeline_mode<synchronous>, transform_indices = @transform_3, window_bounds = array<i64: 256, 128>}, {pipeline_mode = #tpu.pipeline_mode<synchronous>, transform_indices = @transform_4, window_bounds = array<i64: 1, 128>}, {pipeline_mode = #tpu.pipeline_mode<synchronous>, transform_indices = @transform_5, window_bounds = array<i64: 128, 64>}, {pipeline_mode = #tpu.pipeline_mode<synchronous>, transform_indices = @transform_6, window_bounds = array<i64: 1, 64>}, {pipeline_mode = #tpu.pipeline_mode<synchronous>, transform_indices = @transform_7, window_bounds = array<i64: 64, 128>}, {pipeline_mode = #tpu.pipeline_mode<synchronous>, transform_indices = @transform_8, window_bounds = array<i64: 1, 128>}, {transform_indices = @transform_9, window_bounds = array<i64: 256, 128>}]} {
    %c0 = arith.constant 0 : index
    %c0_0 = arith.constant 0 : index
    %0 = vector.load %arg1[%c0, %c0_0] : memref<256x896xbf16, #tpu.memory_space<vmem>>, vector<256x896xbf16>
    %c0_1 = arith.constant 0 : index
    %c0_2 = arith.constant 0 : index
    %1 = vector.load %arg2[%c0_1, %c0_2] : memref<896x256xbf16, #tpu.memory_space<vmem>>, vector<896x256xbf16>
    %cst = arith.constant dense<0.000000e+00> : vector<256x256xf32>
    %2 = tpu.matmul %0, %1, %cst {dimension_numbers = #tpu.dot_dimension_numbers<[1], [0], [0], [1], [0, 0, 1, 1], [], []>} : vector<256x896xbf16>, vector<896x256xbf16>, vector<256x256xf32> -> vector<256x256xf32>
    %c0_3 = arith.constant 0 : index
    %c0_4 = arith.constant 0 : index
    %3 = vector.load %arg3[%c0_3, %c0_4] : memref<1x256xf32, #tpu.memory_space<vmem>>, vector<1x256xf32>
    %4 = vector.broadcast %3 : vector<1x256xf32> to vector<256x256xf32>
    %5 = arith.addf %2, %4 : vector<256x256xf32>
    %cst_5 = arith.constant 0.000000e+00 : f32
    %6 = vector.broadcast %cst_5 : f32 to vector<256x256xf32>
    %7 = arith.maximumf %5, %6 : vector<256x256xf32>
    %8 = arith.truncf %7 : vector<256x256xf32> to vector<256x256xbf16>
    %c0_6 = arith.constant 0 : index
    %c0_7 = arith.constant 0 : index
    %9 = vector.load %arg4[%c0_6, %c0_7] : memref<256x128xbf16, #tpu.memory_space<vmem>>, vector<256x128xbf16>
    %cst_8 = arith.constant dense<0.000000e+00> : vector<256x128xf32>
    %10 = tpu.matmul %8, %9, %cst_8 {dimension_numbers = #tpu.dot_dimension_numbers<[1], [0], [0], [1], [0, 0, 1, 1], [], []>} : vector<256x256xbf16>, vector<256x128xbf16>, vector<256x128xf32> -> vector<256x128xf32>
    %c0_9 = arith.constant 0 : index
    %c0_10 = arith.constant 0 : index
    %11 = vector.load %arg5[%c0_9, %c0_10] : memref<1x128xf32, #tpu.memory_space<vmem>>, vector<1x128xf32>
    %12 = vector.broadcast %11 : vector<1x128xf32> to vector<256x128xf32>
    %13 = arith.addf %10, %12 : vector<256x128xf32>
    %cst_11 = arith.constant 0.000000e+00 : f32
    %14 = vector.broadcast %cst_11 : f32 to vector<256x128xf32>
    %15 = arith.maximumf %13, %14 : vector<256x128xf32>
    %16 = arith.truncf %15 : vector<256x128xf32> to vector<256x128xbf16>
    %c0_12 = arith.constant 0 : index
    %c0_13 = arith.constant 0 : index
    %17 = vector.load %arg6[%c0_12, %c0_13] : memref<128x64xbf16, #tpu.memory_space<vmem>>, vector<128x64xbf16>
    %cst_14 = arith.constant dense<0.000000e+00> : vector<256x64xf32>
    %18 = tpu.matmul %16, %17, %cst_14 {dimension_numbers = #tpu.dot_dimension_numbers<[1], [0], [0], [1], [0, 0, 1, 1], [], []>} : vector<256x128xbf16>, vector<128x64xbf16>, vector<256x64xf32> -> vector<256x64xf32>
    %c0_15 = arith.constant 0 : index
    %c0_16 = arith.constant 0 : index
    %19 = vector.load %arg7[%c0_15, %c0_16] : memref<1x64xf32, #tpu.memory_space<vmem>>, vector<1x64xf32>
    %20 = vector.broadcast %19 : vector<1x64xf32> to vector<256x64xf32>
    %21 = arith.addf %18, %20 : vector<256x64xf32>
    %cst_17 = arith.constant 0.000000e+00 : f32
    %22 = vector.broadcast %cst_17 : f32 to vector<256x64xf32>
    %23 = arith.maximumf %21, %22 : vector<256x64xf32>
    %24 = arith.truncf %23 : vector<256x64xf32> to vector<256x64xbf16>
    %c0_18 = arith.constant 0 : index
    %c0_19 = arith.constant 0 : index
    %25 = vector.load %arg8[%c0_18, %c0_19] : memref<64x128xbf16, #tpu.memory_space<vmem>>, vector<64x128xbf16>
    %cst_20 = arith.constant dense<0.000000e+00> : vector<256x128xf32>
    %26 = tpu.matmul %24, %25, %cst_20 {dimension_numbers = #tpu.dot_dimension_numbers<[1], [0], [0], [1], [0, 0, 1, 1], [], []>} : vector<256x64xbf16>, vector<64x128xbf16>, vector<256x128xf32> -> vector<256x128xf32>
    %c0_21 = arith.constant 0 : index
    %c0_22 = arith.constant 0 : index
    %27 = vector.load %arg9[%c0_21, %c0_22] : memref<1x128xf32, #tpu.memory_space<vmem>>, vector<1x128xf32>
    %28 = vector.broadcast %27 : vector<1x128xf32> to vector<256x128xf32>
    %29 = arith.addf %26, %28 : vector<256x128xf32>
    %cst_23 = arith.constant dense<0xFF800000> : vector<256xf32>
    %30 = vector.multi_reduction <maximumf>, %29, %cst_23 [1] : vector<256x128xf32> to vector<256xf32>
    %31 = vector.shape_cast %30 : vector<256xf32> to vector<256x1xf32>
    %32 = vector.broadcast %31 : vector<256x1xf32> to vector<256x128xf32>
    %33 = arith.subf %29, %32 : vector<256x128xf32>
    %34 = math.exp %33 : vector<256x128xf32>
    %cst_24 = arith.constant dense<0.000000e+00> : vector<256xf32>
    %35 = vector.multi_reduction <add>, %34, %cst_24 [1] : vector<256x128xf32> to vector<256xf32>
    %36 = vector.shape_cast %35 : vector<256xf32> to vector<256x1xf32>
    %37 = math.log %36 : vector<256x1xf32>
    %38 = vector.broadcast %37 : vector<256x1xf32> to vector<256x128xf32>
    %39 = arith.subf %33, %38 : vector<256x128xf32>
    %c0_25 = arith.constant 0 : index
    %c0_26 = arith.constant 0 : index
    %40 = vector.load %arg10[%c0_25, %c0_26] : memref<256x128xf32, #tpu.memory_space<vmem>>, vector<256x128xf32>
    tpu.vector_store %arg10[%c0_25, %c0_26], %39 {strides = array<i32>} : memref<256x128xf32, #tpu.memory_space<vmem>>, vector<256x128xf32>,
    return
  }
  func.func @transform_0(%arg0: i32) -> (i32, i32) {
    %c0_i32 = arith.constant 0 : i32
    %c0_i32_0 = arith.constant 0 : i32
    return %arg0, %c0_i32 : i32, i32
  }
  func.func @transform_1(%arg0: i32) -> (i32, i32) {
    %c0_i32 = arith.constant 0 : i32
    %c0_i32_0 = arith.constant 0 : i32
    %c0_i32_1 = arith.constant 0 : i32
    return %c0_i32, %c0_i32_0 : i32, i32
  }
  func.func @transform_2(%arg0: i32) -> (i32, i32) {
    %c0_i32 = arith.constant 0 : i32
    %c0_i32_0 = arith.constant 0 : i32
    %c0_i32_1 = arith.constant 0 : i32
    return %c0_i32, %c0_i32_0 : i32, i32
  }
  func.func @transform_3(%arg0: i32) -> (i32, i32) {
    %c0_i32 = arith.constant 0 : i32
    %c0_i32_0 = arith.constant 0 : i32
    %c0_i32_1 = arith.constant 0 : i32
    return %c0_i32, %c0_i32_0 : i32, i32
  }
  func.func @transform_4(%arg0: i32) -> (i32, i32) {
    %c0_i32 = arith.constant 0 : i32
    %c0_i32_0 = arith.constant 0 : i32
    %c0_i32_1 = arith.constant 0 : i32
    return %c0_i32, %c0_i32_0 : i32, i32
  }
  func.func @transform_5(%arg0: i32) -> (i32, i32) {
    %c0_i32 = arith.constant 0 : i32
    %c0_i32_0 = arith.constant 0 : i32
    %c0_i32_1 = arith.constant 0 : i32
    return %c0_i32, %c0_i32_0 : i32, i32
  }
  func.func @transform_6(%arg0: i32) -> (i32, i32) {
    %c0_i32 = arith.constant 0 : i32
    %c0_i32_0 = arith.constant 0 : i32
    %c0_i32_1 = arith.constant 0 : i32
    return %c0_i32, %c0_i32_0 : i32, i32
  }
  func.func @transform_7(%arg0: i32) -> (i32, i32) {
    %c0_i32 = arith.constant 0 : i32
    %c0_i32_0 = arith.constant 0 : i32
    %c0_i32_1 = arith.constant 0 : i32
    return %c0_i32, %c0_i32_0 : i32, i32
  }
  func.func @transform_8(%arg0: i32) -> (i32, i32) {
    %c0_i32 = arith.constant 0 : i32
    %c0_i32_0 = arith.constant 0 : i32
    %c0_i32_1 = arith.constant 0 : i32
    return %c0_i32, %c0_i32_0 : i32, i32
  }
  func.func @transform_9(%arg0: i32) -> (i32, i32) {
    %c0_i32 = arith.constant 0 : i32
    %c0_i32_0 = arith.constant 0 : i32
    return %arg0, %c0_i32 : i32, i32
  }
}

</mosaic_0001>

<llo_original>
// kernel: my_awesome_model_forward.1
$region0: #{my_awesome_model_forward.1}
  #allocation0 [shape = 'u32[]', space=smem, size = 0x4, offset = 0x4, fixed_abs, tag = 'smem constant byte address 0x4 - core index']
  #allocation1 [shape = 'u32[144,128]{1,0:T(1,128)}', space=vmem, size = 0x12000, scoped, tag = 'internal scratch']
  %s0 = inlined_call_operand.vmem [shape: bf16[256,896], index: 0, kind: input, shape index: {}]
  %s1 = inlined_call_operand.vmem [shape: bf16[896,256], index: 1, kind: input, shape index: {}]
  %s2 = inlined_call_operand.vmem [shape: f32[1,256], index: 2, kind: input, shape index: {}]
  %s3 = inlined_call_operand.vmem [shape: bf16[256,128], index: 3, kind: input, shape index: {}]
  %s4 = inlined_call_operand.vmem [shape: f32[1,128], index: 4, kind: input, shape index: {}]
  %s5 = inlined_call_operand.vmem [shape: bf16[128,64], index: 5, kind: input, shape index: {}]
  %s6 = inlined_call_operand.vmem [shape: f32[1,64], index: 6, kind: input, shape index: {}]
  %s7 = inlined_call_operand.vmem [shape: bf16[64,128], index: 7, kind: input, shape index: {}]
  %s8 = inlined_call_operand.vmem [shape: f32[1,128], index: 8, kind: input, shape index: {}]
  %s9 = inlined_call_operand.vmem [shape: f32[256,128], index: 9, kind: output, shape index: {}]
  %s10 = sld [smem:[#allocation0]]
  $region46: #{my_awesome_model_forward.1} parent=0
    _
  %s12 = ssub.s32 1, %s10
  %s13 = scalar_select 0, %s12, %s10
  // Predicated region
  $region2: #{my_awesome_model_forward.1} parent=0 // pred_check
    _
  $region3: #{my_awesome_model_forward.1} parent=0 // pred_check_branch
    %15 = sbr.rel (0) target = $region5
  $region4: #{my_awesome_model_forward.1} parent=0 // pred_region
    _
  $region5: #{my_awesome_model_forward.1} parent=0 // pred_fallthru
    _
  // Predicated region
  $region6: #{my_awesome_model_forward.1} parent=0 // pred_check
    _
  $region7: #{my_awesome_model_forward.1} parent=0 // pred_check_branch
    %17 = sbr.rel (0) target = $region9
  $region8: #{my_awesome_model_forward.1} parent=0 // pred_region
    _
  $region9: #{my_awesome_model_forward.1} parent=0 // pred_fallthru
    _
  // Predicated region
  $region10: #{my_awesome_model_forward.1} parent=0 // pred_check
    _
  $region11: #{my_awesome_model_forward.1} parent=0 // pred_check_branch
    %19 = sbr.rel (0) target = $region13
  $region12: #{my_awesome_model_forward.1} parent=0 // pred_region
    _
  $region13: #{my_awesome_model_forward.1} parent=0 // pred_fallthru
    _
  // Predicated region
  $region14: #{my_awesome_model_forward.1} parent=0 // pred_check
    _
  $region15: #{my_awesome_model_forward.1} parent=0 // pred_check_branch
    %21 = sbr.rel (0) target = $region17
  $region16: #{my_awesome_model_forward.1} parent=0 // pred_region
    _
  $region17: #{my_awesome_model_forward.1} parent=0 // pred_fallthru
    _
  // Predicated region
  $region18: #{my_awesome_model_forward.1} parent=0 // pred_check
    _
  $region19: #{my_awesome_model_forward.1} parent=0 // pred_check_branch
    %23 = sbr.rel (0) target = $region21
  $region20: #{my_awesome_model_forward.1} parent=0 // pred_region
    _
  $region21: #{my_awesome_model_forward.1} parent=0 // pred_fallthru
    _
  // Predicated region
  $region22: #{my_awesome_model_forward.1} parent=0 // pred_check
    _
  $region23: #{my_awesome_model_forward.1} parent=0 // pred_check_branch
    %25 = sbr.rel (0) target = $region25
  $region24: #{my_awesome_model_forward.1} parent=0 // pred_region
    _
  $region25: #{my_awesome_model_forward.1} parent=0 // pred_fallthru
    _
  // Predicated region
  $region26: #{my_awesome_model_forward.1} parent=0 // pred_check
    _
  $region27: #{my_awesome_model_forward.1} parent=0 // pred_check_branch
    %27 = sbr.rel (0) target = $region29
  $region28: #{my_awesome_model_forward.1} parent=0 // pred_region
    _
  $region29: #{my_awesome_model_forward.1} parent=0 // pred_fallthru
    _
  // Predicated region
  $region30: #{my_awesome_model_forward.1} parent=0 // pred_check
    _
  $region31: #{my_awesome_model_forward.1} parent=0 // pred_check_branch
    %29 = sbr.rel (0) target = $region33
  $region32: #{my_awesome_model_forward.1} parent=0 // pred_region
    _
  $region33: #{my_awesome_model_forward.1} parent=0 // pred_fallthru
    _
  // Predicated region
  $region34: #{my_awesome_model_forward.1} parent=0 // pred_check
    _
  $region35: #{my_awesome_model_forward.1} parent=0 // pred_check_branch
    %31 = sbr.rel (0) target = $region37
  $region36: #{my_awesome_model_forward.1} parent=0 // pred_region
    _
  $region37: #{my_awesome_model_forward.1} parent=0 // pred_fallthru
    _
  %v33 = vld [vmem:[%s0] sm:$0xff]
  %v34 = vld [vmem:[%s0 + $0x8] sm:$0xff]
  %v35 = vld [vmem:[%s0 + $0x10] sm:$0xff]
  %v36 = vld [vmem:[%s0 + $0x18] sm:$0xf]
  %v37 = vld [vmem:[%s0 + $0x1c] sm:$0xff]
  %v38 = vld [vmem:[%s0 + $0x24] sm:$0xff]
  %v39 = vld [vmem:[%s0 + $0x2c] sm:$0xff]
  %v40 = vld [vmem:[%s0 + $0x34] sm:$0xf]
  %v41 = vld [vmem:[%s0 + $0x38] sm:$0xff]
  %v42 = vld [vmem:[%s0 + $0x40] sm:$0xff]
  %v43 = vld [vmem:[%s0 + $0x48] sm:$0xff]
  %v44 = vld [vmem:[%s0 + $0x50] sm:$0xf]
  %v45 = vld [vmem:[%s0 + $0x54] sm:$0xff]
  %v46 = vld [vmem:[%s0 + $0x5c] sm:$0xff]
  %v47 = vld [vmem:[%s0 + $0x64] sm:$0xff]
  %v48 = vld [vmem:[%s0 + $0x6c] sm:$0xf]
  %v49 = vld [vmem:[%s0 + $0x70] sm:$0xff]
  %v50 = vld [vmem:[%s0 + $0x78] sm:$0xff]
  %v51 = vld [vmem:[%s0 + $0x80] sm:$0xff]
  %v52 = vld [vmem:[%s0 + $0x88] sm:$0xf]
  %v53 = vld [vmem:[%s0 + $0x8c] sm:$0xff]
  %v54 = vld [vmem:[%s0 + $0x94] sm:$0xff]
  %v55 = vld [vmem:[%s0 + $0x9c] sm:$0xff]
  %v56 = vld [vmem:[%s0 + $0xa4] sm:$0xf]
  %v57 = vld [vmem:[%s0 + $0xa8] sm:$0xff]
  %v58 = vld [vmem:[%s0 + $0xb0] sm:$0xff]
  %v59 = vld [vmem:[%s0 + $0xb8] sm:$0xff]
  %v60 = vld [vmem:[%s0 + $0xc0] sm:$0xf]
  %v61 = vld [vmem:[%s0 + $0xc4] sm:$0xff]
  %v62 = vld [vmem:[%s0 + $0xcc] sm:$0xff]
  %v63 = vld [vmem:[%s0 + $0xd4] sm:$0xff]
  %v64 = vld [vmem:[%s0 + $0xdc] sm:$0xf]
  %v65 = vld [vmem:[%s0 + $0xe0] sm:$0xff]
  %v66 = vld [vmem:[%s0 + $0xe8] sm:$0xff]
  %v67 = vld [vmem:[%s0 + $0xf0] sm:$0xff]
  %v68 = vld [vmem:[%s0 + $0xf8] sm:$0xf]
  %v69 = vld [vmem:[%s0 + $0xfc] sm:$0xff]
  %v70 = vld [vmem:[%s0 + $0x104] sm:$0xff]
  %v71 = vld [vmem:[%s0 + $0x10c] sm:$0xff]
  %v72 = vld [vmem:[%s0 + $0x114] sm:$0xf]
  %v73 = vld [vmem:[%s0 + $0x118] sm:$0xff]
  %v74 = vld [vmem:[%s0 + $0x120] sm:$0xff]
  %v75 = vld [vmem:[%s0 + $0x128] sm:$0xff]
  %v76 = vld [vmem:[%s0 + $0x130] sm:$0xf]
  %v77 = vld [vmem:[%s0 + $0x134] sm:$0xff]
  %v78 = vld [vmem:[%s0 + $0x13c] sm:$0xff]
  %v79 = vld [vmem:[%s0 + $0x144] sm:$0xff]
  %v80 = vld [vmem:[%s0 + $0x14c] sm:$0xf]
  %v81 = vld [vmem:[%s0 + $0x150] sm:$0xff]
  %v82 = vld [vmem:[%s0 + $0x158] sm:$0xff]
  %v83 = vld [vmem:[%s0 + $0x160] sm:$0xff]
  %v84 = vld [vmem:[%s0 + $0x168] sm:$0xf]
  %v85 = vld [vmem:[%s0 + $0x16c] sm:$0xff]
  %v86 = vld [vmem:[%s0 + $0x174] sm:$0xff]
  %v87 = vld [vmem:[%s0 + $0x17c] sm:$0xff]
  %v88 = vld [vmem:[%s0 + $0x184] sm:$0xf]
  %v89 = vld [vmem:[%s0 + $0x188] sm:$0xff]
  %v90 = vld [vmem:[%s0 + $0x190] sm:$0xff]
  %v91 = vld [vmem:[%s0 + $0x198] sm:$0xff]
  %v92 = vld [vmem:[%s0 + $0x1a0] sm:$0xf]
  %v93 = vld [vmem:[%s0 + $0x1a4] sm:$0xff]
  %v94 = vld [vmem:[%s0 + $0x1ac] sm:$0xff]
  %v95 = vld [vmem:[%s0 + $0x1b4] sm:$0xff]
  %v96 = vld [vmem:[%s0 + $0x1bc] sm:$0xf]
  %v97 = vld [vmem:[%s0 + $0x1c0] sm:$0xff]
  %v98 = vld [vmem:[%s0 + $0x1c8] sm:$0xff]
  %v99 = vld [vmem:[%s0 + $0x1d0] sm:$0xff]
  %v100 = vld [vmem:[%s0 + $0x1d8] sm:$0xf]
  %v101 = vld [vmem:[%s0 + $0x1dc] sm:$0xff]
  %v102 = vld [vmem:[%s0 + $0x1e4] sm:$0xff]
  %v103 = vld [vmem:[%s0 + $0x1ec] sm:$0xff]
  %v104 = vld [vmem:[%s0 + $0x1f4] sm:$0xf]
  %v105 = vld [vmem:[%s0 + $0x1f8] sm:$0xff]
  %v106 = vld [vmem:[%s0 + $0x200] sm:$0xff]
  %v107 = vld [vmem:[%s0 + $0x208] sm:$0xff]
  %v108 = vld [vmem:[%s0 + $0x210] sm:$0xf]
  %v109 = vld [vmem:[%s0 + $0x214] sm:$0xff]
  %v110 = vld [vmem:[%s0 + $0x21c] sm:$0xff]
  %v111 = vld [vmem:[%s0 + $0x224] sm:$0xff]
  %v112 = vld [vmem:[%s0 + $0x22c] sm:$0xf]
  %v113 = vld [vmem:[%s0 + $0x230] sm:$0xff]
  %v114 = vld [vmem:[%s0 + $0x238] sm:$0xff]
  %v115 = vld [vmem:[%s0 + $0x240] sm:$0xff]
  %v116 = vld [vmem:[%s0 + $0x248] sm:$0xf]
  %v117 = vld [vmem:[%s0 + $0x24c] sm:$0xff]
  %v118 = vld [vmem:[%s0 + $0x254] sm:$0xff]
  %v119 = vld [vmem:[%s0 + $0x25c] sm:$0xff]
  %v120 = vld [vmem:[%s0 + $0x264] sm:$0xf]
  %v121 = vld [vmem:[%s0 + $0x268] sm:$0xff]
  %v122 = vld [vmem:[%s0 + $0x270] sm:$0xff]
  %v123 = vld [vmem:[%s0 + $0x278] sm:$0xff]
  %v124 = vld [vmem:[%s0 + $0x280] sm:$0xf]
  %v125 = vld [vmem:[%s0 + $0x284] sm:$0xff]
  %v126 = vld [vmem:[%s0 + $0x28c] sm:$0xff]
  %v127 = vld [vmem:[%s0 + $0x294] sm:$0xff]
  %v128 = vld [vmem:[%s0 + $0x29c] sm:$0xf]
  %v129 = vld [vmem:[%s0 + $0x2a0] sm:$0xff]
  %v130 = vld [vmem:[%s0 + $0x2a8] sm:$0xff]
  %v131 = vld [vmem:[%s0 + $0x2b0] sm:$0xff]
  %v132 = vld [vmem:[%s0 + $0x2b8] sm:$0xf]
  %v133 = vld [vmem:[%s0 + $0x2bc] sm:$0xff]
  %v134 = vld [vmem:[%s0 + $0x2c4] sm:$0xff]
  %v135 = vld [vmem:[%s0 + $0x2cc] sm:$0xff]
  %v136 = vld [vmem:[%s0 + $0x2d4] sm:$0xf]
  %v137 = vld [vmem:[%s0 + $0x2d8] sm:$0xff]
  %v138 = vld [vmem:[%s0 + $0x2e0] sm:$0xff]
  %v139 = vld [vmem:[%s0 + $0x2e8] sm:$0xff]
  %v140 = vld [vmem:[%s0 + $0x2f0] sm:$0xf]
  %v141 = vld [vmem:[%s0 + $0x2f4] sm:$0xff]
  %v142 = vld [vmem:[%s0 + $0x2fc] sm:$0xff]
  %v143 = vld [vmem:[%s0 + $0x304] sm:$0xff]
  %v144 = vld [vmem:[%s0 + $0x30c] sm:$0xf]
  %v145 = vld [vmem:[%s0 + $0x310] sm:$0xff]
  %v146 = vld [vmem:[%s0 + $0x318] sm:$0xff]
  %v147 = vld [vmem:[%s0 + $0x320] sm:$0xff]
  %v148 = vld [vmem:[%s0 + $0x328] sm:$0xf]
  %v149 = vld [vmem:[%s0 + $0x32c] sm:$0xff]
  %v150 = vld [vmem:[%s0 + $0x334] sm:$0xff]
  %v151 = vld [vmem:[%s0 + $0x33c] sm:$0xff]
  %v152 = vld [vmem:[%s0 + $0x344] sm:$0xf]
  %v153 = vld [vmem:[%s0 + $0x348] sm:$0xff]
  %v154 = vld [vmem:[%s0 + $0x350] sm:$0xff]
  %v155 = vld [vmem:[%s0 + $0x358] sm:$0xff]
  %v156 = vld [vmem:[%s0 + $0x360] sm:$0xf]
  %v157 = vld [vmem:[%s0 + $0x364] sm:$0xff]
  %v158 = vld [vmem:[%s0 + $0x36c] sm:$0xff]
  %v159 = vld [vmem:[%s0 + $0x374] sm:$0xff]
  %v160 = vld [vmem:[%s0 + $0x37c] sm:$0xf]
  %v161 = vld [vmem:[%s1] sm:$0xff]
  %v162 = vld [vmem:[%s1 + $0x8] sm:$0xff]
  %v163 = vld [vmem:[%s1 + $0x10] sm:$0xff]
  %v164 = vld [vmem:[%s1 + $0x18] sm:$0xff]
  %v165 = vld [vmem:[%s1 + $0x20] sm:$0xff]
  %v166 = vld [vmem:[%s1 + $0x28] sm:$0xff]
  %v167 = vld [vmem:[%s1 + $0x30] sm:$0xff]
  %v168 = vld [vmem:[%s1 + $0x38] sm:$0xff]
  %v169 = vld [vmem:[%s1 + $0x40] sm:$0xff]
  %v170 = vld [vmem:[%s1 + $0x48] sm:$0xff]
  %v171 = vld [vmem:[%s1 + $0x50] sm:$0xff]
  %v172 = vld [vmem:[%s1 + $0x58] sm:$0xff]
  %v173 = vld [vmem:[%s1 + $0x60] sm:$0xff]
  %v174 = vld [vmem:[%s1 + $0x68] sm:$0xff]
  %v175 = vld [vmem:[%s1 + $0x70] sm:$0xff]
  %v176 = vld [vmem:[%s1 + $0x78] sm:$0xff]
  %v177 = vld [vmem:[%s1 + $0x80] sm:$0xff]
  %v178 = vld [vmem:[%s1 + $0x88] sm:$0xff]
  %v179 = vld [vmem:[%s1 + $0x90] sm:$0xff]
  %v180 = vld [vmem:[%s1 + $0x98] sm:$0xff]
  %v181 = vld [vmem:[%s1 + $0xa0] sm:$0xff]
  %v182 = vld [vmem:[%s1 + $0xa8] sm:$0xff]
  %v183 = vld [vmem:[%s1 + $0xb0] sm:$0xff]
  %v184 = vld [vmem:[%s1 + $0xb8] sm:$0xff]
  %v185 = vld [vmem:[%s1 + $0xc0] sm:$0xff]
  %v186 = vld [vmem:[%s1 + $0xc8] sm:$0xff]
  %v187 = vld [vmem:[%s1 + $0xd0] sm:$0xff]
  %v188 = vld [vmem:[%s1 + $0xd8] sm:$0xff]
  %v189 = vld [vmem:[%s1 + $0xe0] sm:$0xff]
  %v190 = vld [vmem:[%s1 + $0xe8] sm:$0xff]
  %v191 = vld [vmem:[%s1 + $0xf0] sm:$0xff]
  %v192 = vld [vmem:[%s1 + $0xf8] sm:$0xff]
  %v193 = vld [vmem:[%s1 + $0x100] sm:$0xff]
  %v194 = vld [vmem:[%s1 + $0x108] sm:$0xff]
  %v195 = vld [vmem:[%s1 + $0x110] sm:$0xff]
  %v196 = vld [vmem:[%s1 + $0x118] sm:$0xff]
  %v197 = vld [vmem:[%s1 + $0x120] sm:$0xff]
  %v198 = vld [vmem:[%s1 + $0x128] sm:$0xff]
  %v199 = vld [vmem:[%s1 + $0x130] sm:$0xff]
  %v200 = vld [vmem:[%s1 + $0x138] sm:$0xff]
  %v201 = vld [vmem:[%s1 + $0x140] sm:$0xff]
  %v202 = vld [vmem:[%s1 + $0x148] sm:$0xff]
  %v203 = vld [vmem:[%s1 + $0x150] sm:$0xff]
  %v204 = vld [vmem:[%s1 + $0x158] sm:$0xff]
  %v205 = vld [vmem:[%s1 + $0x160] sm:$0xff]
  %v206 = vld [vmem:[%s1 + $0x168] sm:$0xff]
  %v207 = vld [vmem:[%s1 + $0x170] sm:$0xff]
  %v208 = vld [vmem:[%s1 + $0x178] sm:$0xff]
  %v209 = vld [vmem:[%s1 + $0x180] sm:$0xff]
  %v210 = vld [vmem:[%s1 + $0x188] sm:$0xff]
  %v211 = vld [vmem:[%s1 + $0x190] sm:$0xff]
  %v212 = vld [vmem:[%s1 + $0x198] sm:$0xff]
  %v213 = vld [vmem:[%s1 + $0x1a0] sm:$0xff]
  %v214 = vld [vmem:[%s1 + $0x1a8] sm:$0xff]
  %v215 = vld [vmem:[%s1 + $0x1b0] sm:$0xff]
  %v216 = vld [vmem:[%s1 + $0x1b8] sm:$0xff]
  %v217 = vld [vmem:[%s1 + $0x1c0] sm:$0xff]
  %v218 = vld [vmem:[%s1 + $0x1c8] sm:$0xff]
  %v219 = vld [vmem:[%s1 + $0x1d0] sm:$0xff]
  %v220 = vld [vmem:[%s1 + $0x1d8] sm:$0xff]
  %v221 = vld [vmem:[%s1 + $0x1e0] sm:$0xff]
  %v222 = vld [vmem:[%s1 + $0x1e8] sm:$0xff]
  %v223 = vld [vmem:[%s1 + $0x1f0] sm:$0xff]
  %v224 = vld [vmem:[%s1 + $0x1f8] sm:$0xff]
  %v225 = vld [vmem:[%s1 + $0x200] sm:$0xff]
  %v226 = vld [vmem:[%s1 + $0x208] sm:$0xff]
  %v227 = vld [vmem:[%s1 + $0x210] sm:$0xff]
  %v228 = vld [vmem:[%s1 + $0x218] sm:$0xff]
  %v229 = vld [vmem:[%s1 + $0x220] sm:$0xff]
  %v230 = vld [vmem:[%s1 + $0x228] sm:$0xff]
  %v231 = vld [vmem:[%s1 + $0x230] sm:$0xff]
  %v232 = vld [vmem:[%s1 + $0x238] sm:$0xff]
  %v233 = vld [vmem:[%s1 + $0x240] sm:$0xff]
  %v234 = vld [vmem:[%s1 + $0x248] sm:$0xff]
  %v235 = vld [vmem:[%s1 + $0x250] sm:$0xff]
  %v236 = vld [vmem:[%s1 + $0x258] sm:$0xff]
  %v237 = vld [vmem:[%s1 + $0x260] sm:$0xff]
  %v238 = vld [vmem:[%s1 + $0x268] sm:$0xff]
  %v239 = vld [vmem:[%s1 + $0x270] sm:$0xff]
  %v240 = vld [vmem:[%s1 + $0x278] sm:$0xff]
  %v241 = vld [vmem:[%s1 + $0x280] sm:$0xff]
  %v242 = vld [vmem:[%s1 + $0x288] sm:$0xff]
  %v243 = vld [vmem:[%s1 + $0x290] sm:$0xff]
  %v244 = vld [vmem:[%s1 + $0x298] sm:$0xff]
  %v245 = vld [vmem:[%s1 + $0x2a0] sm:$0xff]
  %v246 = vld [vmem:[%s1 + $0x2a8] sm:$0xff]
  %v247 = vld [vmem:[%s1 + $0x2b0] sm:$0xff]
  %v248 = vld [vmem:[%s1 + $0x2b8] sm:$0xff]
  %v249 = vld [vmem:[%s1 + $0x2c0] sm:$0xff]
  %v250 = vld [vmem:[%s1 + $0x2c8] sm:$0xff]
  %v251 = vld [vmem:[%s1 + $0x2d0] sm:$0xff]
  %v252 = vld [vmem:[%s1 + $0x2d8] sm:$0xff]
  %v253 = vld [vmem:[%s1 + $0x2e0] sm:$0xff]
  %v254 = vld [vmem:[%s1 + $0x2e8] sm:$0xff]
  %v255 = vld [vmem:[%s1 + $0x2f0] sm:$0xff]
  %v256 = vld [vmem:[%s1 + $0x2f8] sm:$0xff]
  %v257 = vld [vmem:[%s1 + $0x300] sm:$0xff]
  %v258 = vld [vmem:[%s1 + $0x308] sm:$0xff]
  %v259 = vld [vmem:[%s1 + $0x310] sm:$0xff]
  %v260 = vld [vmem:[%s1 + $0x318] sm:$0xff]
  %v261 = vld [vmem:[%s1 + $0x320] sm:$0xff]
  %v262 = vld [vmem:[%s1 + $0x328] sm:$0xff]
  %v263 = vld [vmem:[%s1 + $0x330] sm:$0xff]
  %v264 = vld [vmem:[%s1 + $0x338] sm:$0xff]
  %v265 = vld [vmem:[%s1 + $0x340] sm:$0xff]
  %v266 = vld [vmem:[%s1 + $0x348] sm:$0xff]
  %v267 = vld [vmem:[%s1 + $0x350] sm:$0xff]
  %v268 = vld [vmem:[%s1 + $0x358] sm:$0xff]
  %v269 = vld [vmem:[%s1 + $0x360] sm:$0xff]
  %v270 = vld [vmem:[%s1 + $0x368] sm:$0xff]
  %v271 = vld [vmem:[%s1 + $0x370] sm:$0xff]
  %v272 = vld [vmem:[%s1 + $0x378] sm:$0xff]
  %v273 = vld [vmem:[%s2] sm:$0x3]
  %v275 = vlaneseq
  %v276 = vshrl.u32 %v275, 7
  %v277 = vsub.s32 0, %v276
  %v278 = vrot.slane %v273, %v277
  %v279 = vlaneseq
  %v280 = vshrl.u32 %v279, 7
  %v281 = vsub.s32 1, %v280
  %v282 = vrot.slane %v273, %v281
  %v413 = vunpack.c.l.b16 %v33
  %v414 = vunpack.c.h.b16 %v33
  %v415 = vunpack.c.l.b16 %v34
  %v416 = vunpack.c.h.b16 %v34
  %v417 = vunpack.c.l.b16 %v35
  %v418 = vunpack.c.h.b16 %v35
  %v419 = vunpack.c.l.b16 %v36
  %v420 = vunpack.c.l.b16 %v37
  %v421 = vunpack.c.h.b16 %v37
  %v422 = vunpack.c.l.b16 %v38
  %v423 = vunpack.c.h.b16 %v38
  %v424 = vunpack.c.l.b16 %v39
  %v425 = vunpack.c.h.b16 %v39
  %v426 = vunpack.c.l.b16 %v40
  %v427 = vunpack.c.l.b16 %v41
  %v428 = vunpack.c.h.b16 %v41
  %v429 = vunpack.c.l.b16 %v42
  %v430 = vunpack.c.h.b16 %v42
  %v431 = vunpack.c.l.b16 %v43
  %v432 = vunpack.c.h.b16 %v43
  %v433 = vunpack.c.l.b16 %v44
  %v434 = vunpack.c.l.b16 %v45
  %v435 = vunpack.c.h.b16 %v45
  %v436 = vunpack.c.l.b16 %v46
  %v437 = vunpack.c.h.b16 %v46
  %v438 = vunpack.c.l.b16 %v47
  %v439 = vunpack.c.h.b16 %v47
  %v440 = vunpack.c.l.b16 %v48
  %v441 = vunpack.c.l.b16 %v49
  %v442 = vunpack.c.h.b16 %v49
  %v443 = vunpack.c.l.b16 %v50
  %v444 = vunpack.c.h.b16 %v50
  %v445 = vunpack.c.l.b16 %v51
  %v446 = vunpack.c.h.b16 %v51
  %v447 = vunpack.c.l.b16 %v52
  %v448 = vunpack.c.l.b16 %v53
  %v449 = vunpack.c.h.b16 %v53
  %v450 = vunpack.c.l.b16 %v54
  %v451 = vunpack.c.h.b16 %v54
  %v452 = vunpack.c.l.b16 %v55
  %v453 = vunpack.c.h.b16 %v55
  %v454 = vunpack.c.l.b16 %v56
  %v455 = vunpack.c.l.b16 %v57
  %v456 = vunpack.c.h.b16 %v57
  %v457 = vunpack.c.l.b16 %v58
  %v458 = vunpack.c.h.b16 %v58
  %v459 = vunpack.c.l.b16 %v59
  %v460 = vunpack.c.h.b16 %v59
  %v461 = vunpack.c.l.b16 %v60
  %v462 = vunpack.c.l.b16 %v61
  %v463 = vunpack.c.h.b16 %v61
  %v464 = vunpack.c.l.b16 %v62
  %v465 = vunpack.c.h.b16 %v62
  %v466 = vunpack.c.l.b16 %v63
  %v467 = vunpack.c.h.b16 %v63
  %v468 = vunpack.c.l.b16 %v64
  %v469 = vunpack.c.l.b16 %v65
  %v470 = vunpack.c.h.b16 %v65
  %v471 = vunpack.c.l.b16 %v66
  %v472 = vunpack.c.h.b16 %v66
  %v473 = vunpack.c.l.b16 %v67
  %v474 = vunpack.c.h.b16 %v67
  %v475 = vunpack.c.l.b16 %v68
  %v476 = vunpack.c.l.b16 %v69
  %v477 = vunpack.c.h.b16 %v69
  %v478 = vunpack.c.l.b16 %v70
  %v479 = vunpack.c.h.b16 %v70
  %v480 = vunpack.c.l.b16 %v71
  %v481 = vunpack.c.h.b16 %v71
  %v482 = vunpack.c.l.b16 %v72
  %v483 = vunpack.c.l.b16 %v73
  %v484 = vunpack.c.h.b16 %v73
  %v485 = vunpack.c.l.b16 %v74
  %v486 = vunpack.c.h.b16 %v74
  %v487 = vunpack.c.l.b16 %v75
  %v488 = vunpack.c.h.b16 %v75
  %v489 = vunpack.c.l.b16 %v76
  %v490 = vunpack.c.l.b16 %v77
  %v491 = vunpack.c.h.b16 %v77
  %v492 = vunpack.c.l.b16 %v78
  %v493 = vunpack.c.h.b16 %v78
  %v494 = vunpack.c.l.b16 %v79
  %v495 = vunpack.c.h.b16 %v79
  %v496 = vunpack.c.l.b16 %v80
  %v497 = vunpack.c.l.b16 %v81
  %v498 = vunpack.c.h.b16 %v81
  %v499 = vunpack.c.l.b16 %v82
  %v500 = vunpack.c.h.b16 %v82
  %v501 = vunpack.c.l.b16 %v83
  %v502 = vunpack.c.h.b16 %v83
  %v503 = vunpack.c.l.b16 %v84
  %v504 = vunpack.c.l.b16 %v85
  %v505 = vunpack.c.h.b16 %v85
  %v506 = vunpack.c.l.b16 %v86
  %v507 = vunpack.c.h.b16 %v86
  %v508 = vunpack.c.l.b16 %v87
  %v509 = vunpack.c.h.b16 %v87
  %v510 = vunpack.c.l.b16 %v88
  %v511 = vunpack.c.l.b16 %v89
  %v512 = vunpack.c.h.b16 %v89
  %v513 = vunpack.c.l.b16 %v90
  %v514 = vunpack.c.h.b16 %v90
  %v515 = vunpack.c.l.b16 %v91
  %v516 = vunpack.c.h.b16 %v91
  %v517 = vunpack.c.l.b16 %v92
  %v518 = vunpack.c.l.b16 %v93
  %v519 = vunpack.c.h.b16 %v93
  %v520 = vunpack.c.l.b16 %v94
  %v521 = vunpack.c.h.b16 %v94
  %v522 = vunpack.c.l.b16 %v95
  %v523 = vunpack.c.h.b16 %v95
  %v524 = vunpack.c.l.b16 %v96
  %v525 = vunpack.c.l.b16 %v97
  %v526 = vunpack.c.h.b16 %v97
  %v527 = vunpack.c.l.b16 %v98
  %v528 = vunpack.c.h.b16 %v98
  %v529 = vunpack.c.l.b16 %v99
  %v530 = vunpack.c.h.b16 %v99
  %v531 = vunpack.c.l.b16 %v100
  %v532 = vunpack.c.l.b16 %v101
  %v533 = vunpack.c.h.b16 %v101
  %v534 = vunpack.c.l.b16 %v102
  %v535 = vunpack.c.h.b16 %v102
  %v536 = vunpack.c.l.b16 %v103
  %v537 = vunpack.c.h.b16 %v103
  %v538 = vunpack.c.l.b16 %v104
  %v539 = vunpack.c.l.b16 %v105
  %v540 = vunpack.c.h.b16 %v105
  %v541 = vunpack.c.l.b16 %v106
  %v542 = vunpack.c.h.b16 %v106
  %v543 = vunpack.c.l.b16 %v107
  %v544 = vunpack.c.h.b16 %v107
  %v545 = vunpack.c.l.b16 %v108
  %v546 = vunpack.c.l.b16 %v109
  %v547 = vunpack.c.h.b16 %v109
  %v548 = vunpack.c.l.b16 %v110
  %v549 = vunpack.c.h.b16 %v110
  %v550 = vunpack.c.l.b16 %v111
  %v551 = vunpack.c.h.b16 %v111
  %v552 = vunpack.c.l.b16 %v112
  %v553 = vunpack.c.l.b16 %v113
  %v554 = vunpack.c.h.b16 %v113
  %v555 = vunpack.c.l.b16 %v114
  %v556 = vunpack.c.h.b16 %v114
  %v557 = vunpack.c.l.b16 %v115
  %v558 = vunpack.c.h.b16 %v115
  %v559 = vunpack.c.l.b16 %v116
  %v560 = vunpack.c.l.b16 %v117
  %v561 = vunpack.c.h.b16 %v117
  %v562 = vunpack.c.l.b16 %v118
  %v563 = vunpack.c.h.b16 %v118
  %v564 = vunpack.c.l.b16 %v119
  %v565 = vunpack.c.h.b16 %v119
  %v566 = vunpack.c.l.b16 %v120
  %v567 = vunpack.c.l.b16 %v121
  %v568 = vunpack.c.h.b16 %v121
  %v569 = vunpack.c.l.b16 %v122
  %v570 = vunpack.c.h.b16 %v122
  %v571 = vunpack.c.l.b16 %v123
  %v572 = vunpack.c.h.b16 %v123
  %v573 = vunpack.c.l.b16 %v124
  %v574 = vunpack.c.l.b16 %v125
  %v575 = vunpack.c.h.b16 %v125
  %v576 = vunpack.c.l.b16 %v126
  %v577 = vunpack.c.h.b16 %v126
  %v578 = vunpack.c.l.b16 %v127
  %v579 = vunpack.c.h.b16 %v127
  %v580 = vunpack.c.l.b16 %v128
  %v581 = vunpack.c.l.b16 %v129
  %v582 = vunpack.c.h.b16 %v129
  %v583 = vunpack.c.l.b16 %v130
  %v584 = vunpack.c.h.b16 %v130
  %v585 = vunpack.c.l.b16 %v131
  %v586 = vunpack.c.h.b16 %v131
  %v587 = vunpack.c.l.b16 %v132
  %v588 = vunpack.c.l.b16 %v133
  %v589 = vunpack.c.h.b16 %v133
  %v590 = vunpack.c.l.b16 %v134
  %v591 = vunpack.c.h.b16 %v134
  %v592 = vunpack.c.l.b16 %v135
  %v593 = vunpack.c.h.b16 %v135
  %v594 = vunpack.c.l.b16 %v136
  %v595 = vunpack.c.l.b16 %v137
  %v596 = vunpack.c.h.b16 %v137
  %v597 = vunpack.c.l.b16 %v138
  %v598 = vunpack.c.h.b16 %v138
  %v599 = vunpack.c.l.b16 %v139
  %v600 = vunpack.c.h.b16 %v139
  %v601 = vunpack.c.l.b16 %v140
  %v602 = vunpack.c.l.b16 %v141
  %v603 = vunpack.c.h.b16 %v141
  %v604 = vunpack.c.l.b16 %v142
  %v605 = vunpack.c.h.b16 %v142
  %v606 = vunpack.c.l.b16 %v143
  %v607 = vunpack.c.h.b16 %v143
  %v608 = vunpack.c.l.b16 %v144
  %v609 = vunpack.c.l.b16 %v145
  %v610 = vunpack.c.h.b16 %v145
  %v611 = vunpack.c.l.b16 %v146
  %v612 = vunpack.c.h.b16 %v146
  %v613 = vunpack.c.l.b16 %v147
  %v614 = vunpack.c.h.b16 %v147
  %v615 = vunpack.c.l.b16 %v148
  %v616 = vunpack.c.l.b16 %v149
  %v617 = vunpack.c.h.b16 %v149
  %v618 = vunpack.c.l.b16 %v150
  %v619 = vunpack.c.h.b16 %v150
  %v620 = vunpack.c.l.b16 %v151
  %v621 = vunpack.c.h.b16 %v151
  %v622 = vunpack.c.l.b16 %v152
  %v623 = vunpack.c.l.b16 %v153
  %v624 = vunpack.c.h.b16 %v153
  %v625 = vunpack.c.l.b16 %v154
  %v626 = vunpack.c.h.b16 %v154
  %v627 = vunpack.c.l.b16 %v155
  %v628 = vunpack.c.h.b16 %v155
  %v629 = vunpack.c.l.b16 %v156
  %v630 = vunpack.c.l.b16 %v157
  %v631 = vunpack.c.h.b16 %v157
  %v632 = vunpack.c.l.b16 %v158
  %v633 = vunpack.c.h.b16 %v158
  %v634 = vunpack.c.l.b16 %v159
  %v635 = vunpack.c.h.b16 %v159
  %v636 = vunpack.c.l.b16 %v160
  %v637 = vpack.c.b16 %v420, %v413
  %v638 = vpack.c.b16 %v421, %v414
  %v639 = vpack.c.b16 %v422, %v415
  %v640 = vpack.c.b16 %v423, %v416
  %v641 = vpack.c.b16 %v424, %v417
  %v642 = vpack.c.b16 %v425, %v418
  %v643 = vpack.c.b16 %v426, %v419
  %v644 = vpack.c.b16 %v434, %v427
  %v645 = vpack.c.b16 %v435, %v428
  %v646 = vpack.c.b16 %v436, %v429
  %v647 = vpack.c.b16 %v437, %v430
  %v648 = vpack.c.b16 %v438, %v431
  %v649 = vpack.c.b16 %v439, %v432
  %v650 = vpack.c.b16 %v440, %v433
  %v651 = vpack.c.b16 %v448, %v441
  %v652 = vpack.c.b16 %v449, %v442
  %v653 = vpack.c.b16 %v450, %v443
  %v654 = vpack.c.b16 %v451, %v444
  %v655 = vpack.c.b16 %v452, %v445
  %v656 = vpack.c.b16 %v453, %v446
  %v657 = vpack.c.b16 %v454, %v447
  %v658 = vpack.c.b16 %v462, %v455
  %v659 = vpack.c.b16 %v463, %v456
  %v660 = vpack.c.b16 %v464, %v457
  %v661 = vpack.c.b16 %v465, %v458
  %v662 = vpack.c.b16 %v466, %v459
  %v663 = vpack.c.b16 %v467, %v460
  %v664 = vpack.c.b16 %v468, %v461
  %v665 = vpack.c.b16 %v476, %v469
  %v666 = vpack.c.b16 %v477, %v470
  %v667 = vpack.c.b16 %v478, %v471
  %v668 = vpack.c.b16 %v479, %v472
  %v669 = vpack.c.b16 %v480, %v473
  %v670 = vpack.c.b16 %v481, %v474
  %v671 = vpack.c.b16 %v482, %v475
  %v672 = vpack.c.b16 %v490, %v483
  %v673 = vpack.c.b16 %v491, %v484
  %v674 = vpack.c.b16 %v492, %v485
  %v675 = vpack.c.b16 %v493, %v486
  %v676 = vpack.c.b16 %v494, %v487
  %v677 = vpack.c.b16 %v495, %v488
  %v678 = vpack.c.b16 %v496, %v489
  %v679 = vpack.c.b16 %v504, %v497
  %v680 = vpack.c.b16 %v505, %v498
  %v681 = vpack.c.b16 %v506, %v499
  %v682 = vpack.c.b16 %v507, %v500
  %v683 = vpack.c.b16 %v508, %v501
  %v684 = vpack.c.b16 %v509, %v502
  %v685 = vpack.c.b16 %v510, %v503
  %v686 = vpack.c.b16 %v518, %v511
  %v687 = vpack.c.b16 %v519, %v512
  %v688 = vpack.c.b16 %v520, %v513
  %v689 = vpack.c.b16 %v521, %v514
  %v690 = vpack.c.b16 %v522, %v515
  %v691 = vpack.c.b16 %v523, %v516
  %v692 = vpack.c.b16 %v524, %v517
  %v693 = vpack.c.b16 %v532, %v525
  %v694 = vpack.c.b16 %v533, %v526
  %v695 = vpack.c.b16 %v534, %v527
  %v696 = vpack.c.b16 %v535, %v528
  %v697 = vpack.c.b16 %v536, %v529
  %v698 = vpack.c.b16 %v537, %v530
  %v699 = vpack.c.b16 %v538, %v531
  %v700 = vpack.c.b16 %v546, %v539
  %v701 = vpack.c.b16 %v547, %v540
  %v702 = vpack.c.b16 %v548, %v541
  %v703 = vpack.c.b16 %v549, %v542
  %v704 = vpack.c.b16 %v550, %v543
  %v705 = vpack.c.b16 %v551, %v544
  %v706 = vpack.c.b16 %v552, %v545
  %v707 = vpack.c.b16 %v560, %v553
  %v708 = vpack.c.b16 %v561, %v554
  %v709 = vpack.c.b16 %v562, %v555
  %v710 = vpack.c.b16 %v563, %v556
  %v711 = vpack.c.b16 %v564, %v557
  %v712 = vpack.c.b16 %v565, %v558
  %v713 = vpack.c.b16 %v566, %v559
  %v714 = vpack.c.b16 %v574, %v567
  %v715 = vpack.c.b16 %v575, %v568
  %v716 = vpack.c.b16 %v576, %v569
  %v717 = vpack.c.b16 %v577, %v570
  %v718 = vpack.c.b16 %v578, %v571
  %v719 = vpack.c.b16 %v579, %v572
  %v720 = vpack.c.b16 %v580, %v573
  %v721 = vpack.c.b16 %v588, %v581
  %v722 = vpack.c.b16 %v589, %v582
  %v723 = vpack.c.b16 %v590, %v583
  %v724 = vpack.c.b16 %v591, %v584
  %v725 = vpack.c.b16 %v592, %v585
  %v726 = vpack.c.b16 %v593, %v586
  %v727 = vpack.c.b16 %v594, %v587
  %v728 = vpack.c.b16 %v602, %v595
  %v729 = vpack.c.b16 %v603, %v596
  %v730 = vpack.c.b16 %v604, %v597
  %v731 = vpack.c.b16 %v605, %v598
  %v732 = vpack.c.b16 %v606, %v599
  %v733 = vpack.c.b16 %v607, %v600
  %v734 = vpack.c.b16 %v608, %v601
  %v735 = vpack.c.b16 %v616, %v609
  %v736 = vpack.c.b16 %v617, %v610
  %v737 = vpack.c.b16 %v618, %v611
  %v738 = vpack.c.b16 %v619, %v612
  %v739 = vpack.c.b16 %v620, %v613
  %v740 = vpack.c.b16 %v621, %v614
  %v741 = vpack.c.b16 %v622, %v615
  %v742 = vpack.c.b16 %v630, %v623
  %v743 = vpack.c.b16 %v631, %v624
  %v744 = vpack.c.b16 %v632, %v625
  %v745 = vpack.c.b16 %v633, %v626
  %v746 = vpack.c.b16 %v634, %v627
  %v747 = vpack.c.b16 %v635, %v628
  %v748 = vpack.c.b16 %v636, %v629
  %v973 = vunpack.c.l.b16 %v161
  %v974 = vunpack.c.h.b16 %v161
  %v975 = vunpack.c.l.b16 %v162
  %v976 = vunpack.c.h.b16 %v162
  %v977 = vunpack.c.l.b16 %v163
  %v978 = vunpack.c.h.b16 %v163
  %v979 = vunpack.c.l.b16 %v164
  %v980 = vunpack.c.h.b16 %v164
  %v981 = vunpack.c.l.b16 %v165
  %v982 = vunpack.c.h.b16 %v165
  %v983 = vunpack.c.l.b16 %v166
  %v984 = vunpack.c.h.b16 %v166
  %v985 = vunpack.c.l.b16 %v167
  %v986 = vunpack.c.h.b16 %v167
  %v987 = vunpack.c.l.b16 %v168
  %v988 = vunpack.c.h.b16 %v168
  %v989 = vunpack.c.l.b16 %v169
  %v990 = vunpack.c.h.b16 %v169
  %v991 = vunpack.c.l.b16 %v170
  %v992 = vunpack.c.h.b16 %v170
  %v993 = vunpack.c.l.b16 %v171
  %v994 = vunpack.c.h.b16 %v171
  %v995 = vunpack.c.l.b16 %v172
  %v996 = vunpack.c.h.b16 %v172
  %v997 = vunpack.c.l.b16 %v173
  %v998 = vunpack.c.h.b16 %v173
  %v999 = vunpack.c.l.b16 %v174
  %v1000 = vunpack.c.h.b16 %v174
  %v1001 = vunpack.c.l.b16 %v175
  %v1002 = vunpack.c.h.b16 %v175
  %v1003 = vunpack.c.l.b16 %v176
  %v1004 = vunpack.c.h.b16 %v176
  %v1005 = vunpack.c.l.b16 %v177
  %v1006 = vunpack.c.h.b16 %v177
  %v1007 = vunpack.c.l.b16 %v178
  %v1008 = vunpack.c.h.b16 %v178
  %v1009 = vunpack.c.l.b16 %v179
  %v1010 = vunpack.c.h.b16 %v179
  %v1011 = vunpack.c.l.b16 %v180
  %v1012 = vunpack.c.h.b16 %v180
  %v1013 = vunpack.c.l.b16 %v181
  %v1014 = vunpack.c.h.b16 %v181
  %v1015 = vunpack.c.l.b16 %v182
  %v1016 = vunpack.c.h.b16 %v182
  %v1017 = vunpack.c.l.b16 %v183
  %v1018 = vunpack.c.h.b16 %v183
  %v1019 = vunpack.c.l.b16 %v184
  %v1020 = vunpack.c.h.b16 %v184
  %v1021 = vunpack.c.l.b16 %v185
  %v1022 = vunpack.c.h.b16 %v185
  %v1023 = vunpack.c.l.b16 %v186
  %v1024 = vunpack.c.h.b16 %v186
  %v1025 = vunpack.c.l.b16 %v187
  %v1026 = vunpack.c.h.b16 %v187
  %v1027 = vunpack.c.l.b16 %v188
  %v1028 = vunpack.c.h.b16 %v188
  %v1029 = vunpack.c.l.b16 %v189
  %v1030 = vunpack.c.h.b16 %v189
  %v1031 = vunpack.c.l.b16 %v190
  %v1032 = vunpack.c.h.b16 %v190
  %v1033 = vunpack.c.l.b16 %v191
  %v1034 = vunpack.c.h.b16 %v191
  %v1035 = vunpack.c.l.b16 %v192
  %v1036 = vunpack.c.h.b16 %v192
  %v1037 = vunpack.c.l.b16 %v193
  %v1038 = vunpack.c.h.b16 %v193
  %v1039 = vunpack.c.l.b16 %v194
  %v1040 = vunpack.c.h.b16 %v194
  %v1041 = vunpack.c.l.b16 %v195
  %v1042 = vunpack.c.h.b16 %v195
  %v1043 = vunpack.c.l.b16 %v196
  %v1044 = vunpack.c.h.b16 %v196
  %v1045 = vunpack.c.l.b16 %v197
  %v1046 = vunpack.c.h.b16 %v197
  %v1047 = vunpack.c.l.b16 %v198
  %v1048 = vunpack.c.h.b16 %v198
  %v1049 = vunpack.c.l.b16 %v199
  %v1050 = vunpack.c.h.b16 %v199
  %v1051 = vunpack.c.l.b16 %v200
  %v1052 = vunpack.c.h.b16 %v200
  %v1053 = vunpack.c.l.b16 %v201
  %v1054 = vunpack.c.h.b16 %v201
  %v1055 = vunpack.c.l.b16 %v202
  %v1056 = vunpack.c.h.b16 %v202
  %v1057 = vunpack.c.l.b16 %v203
  %v1058 = vunpack.c.h.b16 %v203
  %v1059 = vunpack.c.l.b16 %v204
  %v1060 = vunpack.c.h.b16 %v204
  %v1061 = vunpack.c.l.b16 %v205
  %v1062 = vunpack.c.h.b16 %v205
  %v1063 = vunpack.c.l.b16 %v206
  %v1064 = vunpack.c.h.b16 %v206
  %v1065 = vunpack.c.l.b16 %v207
  %v1066 = vunpack.c.h.b16 %v207
  %v1067 = vunpack.c.l.b16 %v208
  %v1068 = vunpack.c.h.b16 %v208
  %v1069 = vunpack.c.l.b16 %v209
  %v1070 = vunpack.c.h.b16 %v209
  %v1071 = vunpack.c.l.b16 %v210
  %v1072 = vunpack.c.h.b16 %v210
  %v1073 = vunpack.c.l.b16 %v211
  %v1074 = vunpack.c.h.b16 %v211
  %v1075 = vunpack.c.l.b16 %v212
  %v1076 = vunpack.c.h.b16 %v212
  %v1077 = vunpack.c.l.b16 %v213
  %v1078 = vunpack.c.h.b16 %v213
  %v1079 = vunpack.c.l.b16 %v214
  %v1080 = vunpack.c.h.b16 %v214
  %v1081 = vunpack.c.l.b16 %v215
  %v1082 = vunpack.c.h.b16 %v215
  %v1083 = vunpack.c.l.b16 %v216
  %v1084 = vunpack.c.h.b16 %v216
  %v1085 = vunpack.c.l.b16 %v217
  %v1086 = vunpack.c.h.b16 %v217
  %v1087 = vunpack.c.l.b16 %v218
  %v1088 = vunpack.c.h.b16 %v218
  %v1089 = vunpack.c.l.b16 %v219
  %v1090 = vunpack.c.h.b16 %v219
  %v1091 = vunpack.c.l.b16 %v220
  %v1092 = vunpack.c.h.b16 %v220
  %v1093 = vunpack.c.l.b16 %v221
  %v1094 = vunpack.c.h.b16 %v221
  %v1095 = vunpack.c.l.b16 %v222
  %v1096 = vunpack.c.h.b16 %v222
  %v1097 = vunpack.c.l.b16 %v223
  %v1098 = vunpack.c.h.b16 %v223
  %v1099 = vunpack.c.l.b16 %v224
  %v1100 = vunpack.c.h.b16 %v224
  %v1101 = vunpack.c.l.b16 %v225
  %v1102 = vunpack.c.h.b16 %v225
  %v1103 = vunpack.c.l.b16 %v226
  %v1104 = vunpack.c.h.b16 %v226
  %v1105 = vunpack.c.l.b16 %v227
  %v1106 = vunpack.c.h.b16 %v227
  %v1107 = vunpack.c.l.b16 %v228
  %v1108 = vunpack.c.h.b16 %v228
  %v1109 = vunpack.c.l.b16 %v229
  %v1110 = vunpack.c.h.b16 %v229
  %v1111 = vunpack.c.l.b16 %v230
  %v1112 = vunpack.c.h.b16 %v230
  %v1113 = vunpack.c.l.b16 %v231
  %v1114 = vunpack.c.h.b16 %v231
  %v1115 = vunpack.c.l.b16 %v232
  %v1116 = vunpack.c.h.b16 %v232
  %v1117 = vunpack.c.l.b16 %v233
  %v1118 = vunpack.c.h.b16 %v233
  %v1119 = vunpack.c.l.b16 %v234
  %v1120 = vunpack.c.h.b16 %v234
  %v1121 = vunpack.c.l.b16 %v235
  %v1122 = vunpack.c.h.b16 %v235
  %v1123 = vunpack.c.l.b16 %v236
  %v1124 = vunpack.c.h.b16 %v236
  %v1125 = vunpack.c.l.b16 %v237
  %v1126 = vunpack.c.h.b16 %v237
  %v1127 = vunpack.c.l.b16 %v238
  %v1128 = vunpack.c.h.b16 %v238
  %v1129 = vunpack.c.l.b16 %v239
  %v1130 = vunpack.c.h.b16 %v239
  %v1131 = vunpack.c.l.b16 %v240
  %v1132 = vunpack.c.h.b16 %v240
  %v1133 = vunpack.c.l.b16 %v241
  %v1134 = vunpack.c.h.b16 %v241
  %v1135 = vunpack.c.l.b16 %v242
  %v1136 = vunpack.c.h.b16 %v242
  %v1137 = vunpack.c.l.b16 %v243
  %v1138 = vunpack.c.h.b16 %v243
  %v1139 = vunpack.c.l.b16 %v244
  %v1140 = vunpack.c.h.b16 %v244
  %v1141 = vunpack.c.l.b16 %v245
  %v1142 = vunpack.c.h.b16 %v245
  %v1143 = vunpack.c.l.b16 %v246
  %v1144 = vunpack.c.h.b16 %v246
  %v1145 = vunpack.c.l.b16 %v247
  %v1146 = vunpack.c.h.b16 %v247
  %v1147 = vunpack.c.l.b16 %v248
  %v1148 = vunpack.c.h.b16 %v248
  %v1149 = vunpack.c.l.b16 %v249
  %v1150 = vunpack.c.h.b16 %v249
  %v1151 = vunpack.c.l.b16 %v250
  %v1152 = vunpack.c.h.b16 %v250
  %v1153 = vunpack.c.l.b16 %v251
  %v1154 = vunpack.c.h.b16 %v251
  %v1155 = vunpack.c.l.b16 %v252
  %v1156 = vunpack.c.h.b16 %v252
  %v1157 = vunpack.c.l.b16 %v253
  %v1158 = vunpack.c.h.b16 %v253
  %v1159 = vunpack.c.l.b16 %v254
  %v1160 = vunpack.c.h.b16 %v254
  %v1161 = vunpack.c.l.b16 %v255
  %v1162 = vunpack.c.h.b16 %v255
  %v1163 = vunpack.c.l.b16 %v256
  %v1164 = vunpack.c.h.b16 %v256
  %v1165 = vunpack.c.l.b16 %v257
  %v1166 = vunpack.c.h.b16 %v257
  %v1167 = vunpack.c.l.b16 %v258
  %v1168 = vunpack.c.h.b16 %v258
  %v1169 = vunpack.c.l.b16 %v259
  %v1170 = vunpack.c.h.b16 %v259
  %v1171 = vunpack.c.l.b16 %v260
  %v1172 = vunpack.c.h.b16 %v260
  %v1173 = vunpack.c.l.b16 %v261
  %v1174 = vunpack.c.h.b16 %v261
  %v1175 = vunpack.c.l.b16 %v262
  %v1176 = vunpack.c.h.b16 %v262
  %v1177 = vunpack.c.l.b16 %v263
  %v1178 = vunpack.c.h.b16 %v263
  %v1179 = vunpack.c.l.b16 %v264
  %v1180 = vunpack.c.h.b16 %v264
  %v1181 = vunpack.c.l.b16 %v265
  %v1182 = vunpack.c.h.b16 %v265
  %v1183 = vunpack.c.l.b16 %v266
  %v1184 = vunpack.c.h.b16 %v266
  %v1185 = vunpack.c.l.b16 %v267
  %v1186 = vunpack.c.h.b16 %v267
  %v1187 = vunpack.c.l.b16 %v268
  %v1188 = vunpack.c.h.b16 %v268
  %v1189 = vunpack.c.l.b16 %v269
  %v1190 = vunpack.c.h.b16 %v269
  %v1191 = vunpack.c.l.b16 %v270
  %v1192 = vunpack.c.h.b16 %v270
  %v1193 = vunpack.c.l.b16 %v271
  %v1194 = vunpack.c.h.b16 %v271
  %v1195 = vunpack.c.l.b16 %v272
  %v1196 = vunpack.c.h.b16 %v272
  %v1197 = vpack.c.b16 %v975, %v973
  %v1198 = vpack.c.b16 %v976, %v974
  %v1199 = vpack.c.b16 %v979, %v977
  %v1200 = vpack.c.b16 %v980, %v978
  %v1201 = vpack.c.b16 %v983, %v981
  %v1202 = vpack.c.b16 %v984, %v982
  %v1203 = vpack.c.b16 %v987, %v985
  %v1204 = vpack.c.b16 %v988, %v986
  %v1205 = vpack.c.b16 %v991, %v989
  %v1206 = vpack.c.b16 %v992, %v990
  %v1207 = vpack.c.b16 %v995, %v993
  %v1208 = vpack.c.b16 %v996, %v994
  %v1209 = vpack.c.b16 %v999, %v997
  %v1210 = vpack.c.b16 %v1000, %v998
  %v1211 = vpack.c.b16 %v1003, %v1001
  %v1212 = vpack.c.b16 %v1004, %v1002
  %v1213 = vpack.c.b16 %v1007, %v1005
  %v1214 = vpack.c.b16 %v1008, %v1006
  %v1215 = vpack.c.b16 %v1011, %v1009
  %v1216 = vpack.c.b16 %v1012, %v1010
  %v1217 = vpack.c.b16 %v1015, %v1013
  %v1218 = vpack.c.b16 %v1016, %v1014
  %v1219 = vpack.c.b16 %v1019, %v1017
  %v1220 = vpack.c.b16 %v1020, %v1018
  %v1221 = vpack.c.b16 %v1023, %v1021
  %v1222 = vpack.c.b16 %v1024, %v1022
  %v1223 = vpack.c.b16 %v1027, %v1025
  %v1224 = vpack.c.b16 %v1028, %v1026
  %v1225 = vpack.c.b16 %v1031, %v1029
  %v1226 = vpack.c.b16 %v1032, %v1030
  %v1227 = vpack.c.b16 %v1035, %v1033
  %v1228 = vpack.c.b16 %v1036, %v1034
  %v1229 = vpack.c.b16 %v1039, %v1037
  %v1230 = vpack.c.b16 %v1040, %v1038
  %v1231 = vpack.c.b16 %v1043, %v1041
  %v1232 = vpack.c.b16 %v1044, %v1042
  %v1233 = vpack.c.b16 %v1047, %v1045
  %v1234 = vpack.c.b16 %v1048, %v1046
  %v1235 = vpack.c.b16 %v1051, %v1049
  %v1236 = vpack.c.b16 %v1052, %v1050
  %v1237 = vpack.c.b16 %v1055, %v1053
  %v1238 = vpack.c.b16 %v1056, %v1054
  %v1239 = vpack.c.b16 %v1059, %v1057
  %v1240 = vpack.c.b16 %v1060, %v1058
  %v1241 = vpack.c.b16 %v1063, %v1061
  %v1242 = vpack.c.b16 %v1064, %v1062
  %v1243 = vpack.c.b16 %v1067, %v1065
  %v1244 = vpack.c.b16 %v1068, %v1066
  %v1245 = vpack.c.b16 %v1071, %v1069
  %v1246 = vpack.c.b16 %v1072, %v1070
  %v1247 = vpack.c.b16 %v1075, %v1073
  %v1248 = vpack.c.b16 %v1076, %v1074
  %v1249 = vpack.c.b16 %v1079, %v1077
  %v1250 = vpack.c.b16 %v1080, %v1078
  %v1251 = vpack.c.b16 %v1083, %v1081
  %v1252 = vpack.c.b16 %v1084, %v1082
  %v1253 = vpack.c.b16 %v1087, %v1085
  %v1254 = vpack.c.b16 %v1088, %v1086
  %v1255 = vpack.c.b16 %v1091, %v1089
  %v1256 = vpack.c.b16 %v1092, %v1090
  %v1257 = vpack.c.b16 %v1095, %v1093
  %v1258 = vpack.c.b16 %v1096, %v1094
  %v1259 = vpack.c.b16 %v1099, %v1097
  %v1260 = vpack.c.b16 %v1100, %v1098
  %v1261 = vpack.c.b16 %v1103, %v1101
  %v1262 = vpack.c.b16 %v1104, %v1102
  %v1263 = vpack.c.b16 %v1107, %v1105
  %v1264 = vpack.c.b16 %v1108, %v1106
  %v1265 = vpack.c.b16 %v1111, %v1109
  %v1266 = vpack.c.b16 %v1112, %v1110
  %v1267 = vpack.c.b16 %v1115, %v1113
  %v1268 = vpack.c.b16 %v1116, %v1114
  %v1269 = vpack.c.b16 %v1119, %v1117
  %v1270 = vpack.c.b16 %v1120, %v1118
  %v1271 = vpack.c.b16 %v1123, %v1121
  %v1272 = vpack.c.b16 %v1124, %v1122
  %v1273 = vpack.c.b16 %v1127, %v1125
  %v1274 = vpack.c.b16 %v1128, %v1126
  %v1275 = vpack.c.b16 %v1131, %v1129
  %v1276 = vpack.c.b16 %v1132, %v1130
  %v1277 = vpack.c.b16 %v1135, %v1133
  %v1278 = vpack.c.b16 %v1136, %v1134
  %v1279 = vpack.c.b16 %v1139, %v1137
  %v1280 = vpack.c.b16 %v1140, %v1138
  %v1281 = vpack.c.b16 %v1143, %v1141
  %v1282 = vpack.c.b16 %v1144, %v1142
  %v1283 = vpack.c.b16 %v1147, %v1145
  %v1284 = vpack.c.b16 %v1148, %v1146
  %v1285 = vpack.c.b16 %v1151, %v1149
  %v1286 = vpack.c.b16 %v1152, %v1150
  %v1287 = vpack.c.b16 %v1155, %v1153
  %v1288 = vpack.c.b16 %v1156, %v1154
  %v1289 = vpack.c.b16 %v1159, %v1157
  %v1290 = vpack.c.b16 %v1160, %v1158
  %v1291 = vpack.c.b16 %v1163, %v1161
  %v1292 = vpack.c.b16 %v1164, %v1162
  %v1293 = vpack.c.b16 %v1167, %v1165
  %v1294 = vpack.c.b16 %v1168, %v1166
  %v1295 = vpack.c.b16 %v1171, %v1169
  %v1296 = vpack.c.b16 %v1172, %v1170
  %v1297 = vpack.c.b16 %v1175, %v1173
  %v1298 = vpack.c.b16 %v1176, %v1174
  %v1299 = vpack.c.b16 %v1179, %v1177
  %v1300 = vpack.c.b16 %v1180, %v1178
  %v1301 = vpack.c.b16 %v1183, %v1181
  %v1302 = vpack.c.b16 %v1184, %v1182
  %v1303 = vpack.c.b16 %v1187, %v1185
  %v1304 = vpack.c.b16 %v1188, %v1186
  %v1305 = vpack.c.b16 %v1191, %v1189
  %v1306 = vpack.c.b16 %v1192, %v1190
  %v1307 = vpack.c.b16 %v1195, %v1193
  %v1308 = vpack.c.b16 %v1196, %v1194
  %1421 = vmatprep.subr.bf16.mxu0 %v1198
  %1422 = vmatpush1.bf16.msra.mxu0 %v1197
  %1423 = vmatprep.subr.bf16.mxu0 %v1200
  %1424 = vmatpush1.bf16.msra.mxu0 %v1199
  %1425 = vmatprep.subr.bf16.mxu0 %v1202
  %1426 = vmatpush1.bf16.msra.mxu0 %v1201
  %1427 = vmatprep.subr.bf16.mxu0 %v1204
  %1428 = vmatpush1.bf16.msra.mxu0 %v1203
  %1429 = vmatprep.subr.bf16.mxu0 %v1206
  %1430 = vmatpush1.bf16.msra.mxu0 %v1205
  %1431 = vmatprep.subr.bf16.mxu0 %v1208
  %1432 = vmatpush1.bf16.msra.mxu0 %v1207
  %1433 = vmatprep.subr.bf16.mxu0 %v1210
  %1434 = vmatpush1.bf16.msra.mxu0 %v1209
  %1435 = vmatprep.subr.bf16.mxu0 %v1212
  %1436 = vmatpush1.bf16.msra.mxu0 %v1211
  %1437 = vmatprep.subr.bf16.mxu0 %v1214
  %1438 = vmatpush1.bf16.msra.mxu0 %v1213
  %1439 = vmatprep.subr.bf16.mxu0 %v1216
  %1440 = vmatpush1.bf16.msra.mxu0 %v1215
  %1441 = vmatprep.subr.bf16.mxu0 %v1218
  %1442 = vmatpush1.bf16.msra.mxu0 %v1217
  %1443 = vmatprep.subr.bf16.mxu0 %v1220
  %1444 = vmatpush1.bf16.msra.mxu0 %v1219
  %1445 = vmatprep.subr.bf16.mxu0 %v1222
  %1446 = vmatpush1.bf16.msra.mxu0 %v1221
  %1447 = vmatprep.subr.bf16.mxu0 %v1224
  %1448 = vmatpush1.bf16.msra.mxu0 %v1223
  %1449 = vmatprep.subr.bf16.mxu0 %v1226
  %1450 = vmatpush1.bf16.msra.mxu0 %v1225
  %1451 = vmatprep.subr.bf16.mxu0 %v1228
  %1452 = vmatpush1.bf16.msra.mxu0 %v1227
  %1453 = vmatprep.mubr.bf16.mxu0 %v638
  %1454 = vmatmul.mubr.bf16.gmra.mrb[0].mxu0 %v637
  %v1455 = vpop.f32.mrb[0].mxu0
  %v1456 = vadd.f32 %v278, %v1455
  %v1457 = vpop.f32.mrb[0].mxu0
  %v1458 = vadd.f32 %v282, %v1457
  %v1459 = vpop.f32.mrb[0].mxu0
  %v1460 = vadd.f32 %v278, %v1459
  %v1461 = vpop.f32.mrb[0].mxu0
  %v1462 = vadd.f32 %v282, %v1461
  %1463 = vmatprep.mubr.bf16.mxu0 %v645
  %1464 = vmatmul.mubr.bf16.gmra.mrb[0].mxu0 %v644
  %v1465 = vpop.f32.mrb[0].mxu0
  %v1466 = vadd.f32 %v278, %v1465
  %v1467 = vpop.f32.mrb[0].mxu0
  %v1468 = vadd.f32 %v282, %v1467
  %v1469 = vpop.f32.mrb[0].mxu0
  %v1470 = vadd.f32 %v278, %v1469
  %v1471 = vpop.f32.mrb[0].mxu0
  %v1472 = vadd.f32 %v282, %v1471
  %1473 = vmatprep.mubr.bf16.mxu0 %v652
  %1474 = vmatmul.mubr.bf16.gmra.mrb[0].mxu0 %v651
  %v1475 = vpop.f32.mrb[0].mxu0
  %v1476 = vadd.f32 %v278, %v1475
  %v1477 = vpop.f32.mrb[0].mxu0
  %v1478 = vadd.f32 %v282, %v1477
  %v1479 = vpop.f32.mrb[0].mxu0
  %v1480 = vadd.f32 %v278, %v1479
  %v1481 = vpop.f32.mrb[0].mxu0
  %v1482 = vadd.f32 %v282, %v1481
  %1483 = vmatprep.mubr.bf16.mxu0 %v659
  %1484 = vmatmul.mubr.bf16.gmra.mrb[0].mxu0 %v658
  %v1485 = vpop.f32.mrb[0].mxu0
  %v1486 = vadd.f32 %v278, %v1485
  %v1487 = vpop.f32.mrb[0].mxu0
  %v1488 = vadd.f32 %v282, %v1487
  %v1489 = vpop.f32.mrb[0].mxu0
  %v1490 = vadd.f32 %v278, %v1489
  %v1491 = vpop.f32.mrb[0].mxu0
  %v1492 = vadd.f32 %v282, %v1491
  %1493 = vmatprep.mubr.bf16.mxu0 %v666
  %1494 = vmatmul.mubr.bf16.gmra.mrb[0].mxu0 %v665
  %v1495 = vpop.f32.mrb[0].mxu0
  %v1496 = vadd.f32 %v278, %v1495
  %v1497 = vpop.f32.mrb[0].mxu0
  %v1498 = vadd.f32 %v282, %v1497
  %v1499 = vpop.f32.mrb[0].mxu0
  %v1500 = vadd.f32 %v278, %v1499
  %v1501 = vpop.f32.mrb[0].mxu0
  %v1502 = vadd.f32 %v282, %v1501
  %1503 = vmatprep.mubr.bf16.mxu0 %v673
  %1504 = vmatmul.mubr.bf16.gmra.mrb[0].mxu0 %v672
  %v1505 = vpop.f32.mrb[0].mxu0
  %v1506 = vadd.f32 %v278, %v1505
  %v1507 = vpop.f32.mrb[0].mxu0
  %v1508 = vadd.f32 %v282, %v1507
  %v1509 = vpop.f32.mrb[0].mxu0
  %v1510 = vadd.f32 %v278, %v1509
  %v1511 = vpop.f32.mrb[0].mxu0
  %v1512 = vadd.f32 %v282, %v1511
  %1513 = vmatprep.mubr.bf16.mxu0 %v680
  %1514 = vmatmul.mubr.bf16.gmra.mrb[0].mxu0 %v679
  %v1515 = vpop.f32.mrb[0].mxu0
  %v1516 = vadd.f32 %v278, %v1515
  %v1517 = vpop.f32.mrb[0].mxu0
  %v1518 = vadd.f32 %v282, %v1517
  %v1519 = vpop.f32.mrb[0].mxu0
  %v1520 = vadd.f32 %v278, %v1519
  %v1521 = vpop.f32.mrb[0].mxu0
  %v1522 = vadd.f32 %v282, %v1521
  %1523 = vmatprep.mubr.bf16.mxu0 %v687
  %1524 = vmatmul.mubr.bf16.gmra.mrb[0].mxu0 %v686
  %v1525 = vpop.f32.mrb[0].mxu0
  %v1526 = vadd.f32 %v278, %v1525
  %v1527 = vpop.f32.mrb[0].mxu0
  %v1528 = vadd.f32 %v282, %v1527
  %v1529 = vpop.f32.mrb[0].mxu0
  %v1530 = vadd.f32 %v278, %v1529
  %v1531 = vpop.f32.mrb[0].mxu0
  %v1532 = vadd.f32 %v282, %v1531
  %1533 = vmatprep.mubr.bf16.mxu0 %v694
  %1534 = vmatmul.mubr.bf16.gmra.mrb[0].mxu0 %v693
  %v1535 = vpop.f32.mrb[0].mxu0
  %v1536 = vadd.f32 %v278, %v1535
  %v1537 = vpop.f32.mrb[0].mxu0
  %v1538 = vadd.f32 %v282, %v1537
  %v1539 = vpop.f32.mrb[0].mxu0
  %v1540 = vadd.f32 %v278, %v1539
  %v1541 = vpop.f32.mrb[0].mxu0
  %v1542 = vadd.f32 %v282, %v1541
  %1543 = vmatprep.mubr.bf16.mxu0 %v701
  %1544 = vmatmul.mubr.bf16.gmra.mrb[0].mxu0 %v700
  %v1545 = vpop.f32.mrb[0].mxu0
  %v1546 = vadd.f32 %v278, %v1545
  %v1547 = vpop.f32.mrb[0].mxu0
  %v1548 = vadd.f32 %v282, %v1547
  %v1549 = vpop.f32.mrb[0].mxu0
  %v1550 = vadd.f32 %v278, %v1549
  %v1551 = vpop.f32.mrb[0].mxu0
  %v1552 = vadd.f32 %v282, %v1551
  %1553 = vmatprep.mubr.bf16.mxu0 %v708
  %1554 = vmatmul.mubr.bf16.gmra.mrb[0].mxu0 %v707
  %v1555 = vpop.f32.mrb[0].mxu0
  %v1556 = vadd.f32 %v278, %v1555
  %v1557 = vpop.f32.mrb[0].mxu0
  %v1558 = vadd.f32 %v282, %v1557
  %v1559 = vpop.f32.mrb[0].mxu0
  %v1560 = vadd.f32 %v278, %v1559
  %v1561 = vpop.f32.mrb[0].mxu0
  %v1562 = vadd.f32 %v282, %v1561
  %1563 = vmatprep.mubr.bf16.mxu0 %v715
  %1564 = vmatmul.mubr.bf16.gmra.mrb[0].mxu0 %v714
  %v1565 = vpop.f32.mrb[0].mxu0
  %v1566 = vadd.f32 %v278, %v1565
  %v1567 = vpop.f32.mrb[0].mxu0
  %v1568 = vadd.f32 %v282, %v1567
  %v1569 = vpop.f32.mrb[0].mxu0
  %v1570 = vadd.f32 %v278, %v1569
  %v1571 = vpop.f32.mrb[0].mxu0
  %v1572 = vadd.f32 %v282, %v1571
  %1573 = vmatprep.mubr.bf16.mxu0 %v722
  %1574 = vmatmul.mubr.bf16.gmra.mrb[0].mxu0 %v721
  %v1575 = vpop.f32.mrb[0].mxu0
  %v1576 = vadd.f32 %v278, %v1575
  %v1577 = vpop.f32.mrb[0].mxu0
  %v1578 = vadd.f32 %v282, %v1577
  %v1579 = vpop.f32.mrb[0].mxu0
  %v1580 = vadd.f32 %v278, %v1579
  %v1581 = vpop.f32.mrb[0].mxu0
  %v1582 = vadd.f32 %v282, %v1581
  %1583 = vmatprep.mubr.bf16.mxu0 %v729
  %1584 = vmatmul.mubr.bf16.gmra.mrb[0].mxu0 %v728
  %v1585 = vpop.f32.mrb[0].mxu0
  %v1586 = vadd.f32 %v278, %v1585
  %v1587 = vpop.f32.mrb[0].mxu0
  %v1588 = vadd.f32 %v282, %v1587
  %v1589 = vpop.f32.mrb[0].mxu0
  %v1590 = vadd.f32 %v278, %v1589
  %v1591 = vpop.f32.mrb[0].mxu0
  %v1592 = vadd.f32 %v282, %v1591
  %1593 = vmatprep.mubr.bf16.mxu0 %v736
  %1594 = vmatmul.mubr.bf16.gmra.mrb[0].mxu0 %v735
  %v1595 = vpop.f32.mrb[0].mxu0
  %v1596 = vadd.f32 %v278, %v1595
  %v1597 = vpop.f32.mrb[0].mxu0
  %v1598 = vadd.f32 %v282, %v1597
  %v1599 = vpop.f32.mrb[0].mxu0
  %v1600 = vadd.f32 %v278, %v1599
  %v1601 = vpop.f32.mrb[0].mxu0
  %v1602 = vadd.f32 %v282, %v1601
  %1603 = vmatprep.mubr.bf16.mxu0 %v743
  %1604 = vmatmul.mubr.bf16.gmra.mrb[0].mxu0 %v742
  %v1605 = vpop.f32.mrb[0].mxu0
  %v1606 = vadd.f32 %v278, %v1605
  %v1607 = vpop.f32.mrb[0].mxu0
  %v1608 = vadd.f32 %v282, %v1607
  %v1609 = vpop.f32.mrb[0].mxu0
  %v1610 = vadd.f32 %v278, %v1609
  %v1611 = vpop.f32.mrb[0].mxu0
  %v1612 = vadd.f32 %v282, %v1611
  %1613 = vdwg.mxu0
  %1614 = vmatprep.subr.bf16.mxu0 %v1230
  %1615 = vmatpush1.bf16.msra.mxu0 %v1229
  %1616 = vmatprep.subr.bf16.mxu0 %v1232
  %1617 = vmatpush1.bf16.msra.mxu0 %v1231
  %1618 = vmatprep.subr.bf16.mxu0 %v1234
  %1619 = vmatpush1.bf16.msra.mxu0 %v1233
  %1620 = vmatprep.subr.bf16.mxu0 %v1236
  %1621 = vmatpush1.bf16.msra.mxu0 %v1235
  %1622 = vmatprep.subr.bf16.mxu0 %v1238
  %1623 = vmatpush1.bf16.msra.mxu0 %v1237
  %1624 = vmatprep.subr.bf16.mxu0 %v1240
  %1625 = vmatpush1.bf16.msra.mxu0 %v1239
  %1626 = vmatprep.subr.bf16.mxu0 %v1242
  %1627 = vmatpush1.bf16.msra.mxu0 %v1241
  %1628 = vmatprep.subr.bf16.mxu0 %v1244
  %1629 = vmatpush1.bf16.msra.mxu0 %v1243
  %1630 = vmatprep.subr.bf16.mxu0 %v1246
  %1631 = vmatpush1.bf16.msra.mxu0 %v1245
  %1632 = vmatprep.subr.bf16.mxu0 %v1248
  %1633 = vmatpush1.bf16.msra.mxu0 %v1247
  %1634 = vmatprep.subr.bf16.mxu0 %v1250
  %1635 = vmatpush1.bf16.msra.mxu0 %v1249
  %1636 = vmatprep.subr.bf16.mxu0 %v1252
  %1637 = vmatpush1.bf16.msra.mxu0 %v1251
  %1638 = vmatprep.subr.bf16.mxu0 %v1254
  %1639 = vmatpush1.bf16.msra.mxu0 %v1253
  %1640 = vmatprep.subr.bf16.mxu0 %v1256
  %1641 = vmatpush1.bf16.msra.mxu0 %v1255
  %1642 = vmatprep.subr.bf16.mxu0 %v1258
  %1643 = vmatpush1.bf16.msra.mxu0 %v1257
  %1644 = vmatprep.subr.bf16.mxu0 %v1260
  %1645 = vmatpush1.bf16.msra.mxu0 %v1259
  %1646 = vmatprep.mubr.bf16.mxu0 %v640
  %1647 = vmatmul.mubr.bf16.gmra.mrb[0].mxu0 %v639
  %v1648 = vpop.f32.mrb[0].mxu0
  %v1649 = vadd.f32 %v1456, %v1648
  %v1650 = vpop.f32.mrb[0].mxu0
  %v1651 = vadd.f32 %v1458, %v1650
  %v1652 = vpop.f32.mrb[0].mxu0
  %v1653 = vadd.f32 %v1460, %v1652
  %v1654 = vpop.f32.mrb[0].mxu0
  %v1655 = vadd.f32 %v1462, %v1654
  %1656 = vmatprep.mubr.bf16.mxu0 %v647
  %1657 = vmatmul.mubr.bf16.gmra.mrb[0].mxu0 %v646
  %v1658 = vpop.f32.mrb[0].mxu0
  %v1659 = vadd.f32 %v1466, %v1658
  %v1660 = vpop.f32.mrb[0].mxu0
  %v1661 = vadd.f32 %v1468, %v1660
  %v1662 = vpop.f32.mrb[0].mxu0
  %v1663 = vadd.f32 %v1470, %v1662
  %v1664 = vpop.f32.mrb[0].mxu0
  %v1665 = vadd.f32 %v1472, %v1664
  %1666 = vmatprep.mubr.bf16.mxu0 %v654
  %1667 = vmatmul.mubr.bf16.gmra.mrb[0].mxu0 %v653
  %v1668 = vpop.f32.mrb[0].mxu0
  %v1669 = vadd.f32 %v1476, %v1668
  %v1670 = vpop.f32.mrb[0].mxu0
  %v1671 = vadd.f32 %v1478, %v1670
  %v1672 = vpop.f32.mrb[0].mxu0
  %v1673 = vadd.f32 %v1480, %v1672
  %v1674 = vpop.f32.mrb[0].mxu0
  %v1675 = vadd.f32 %v1482, %v1674
  %1676 = vmatprep.mubr.bf16.mxu0 %v661
  %1677 = vmatmul.mubr.bf16.gmra.mrb[0].mxu0 %v660
  %v1678 = vpop.f32.mrb[0].mxu0
  %v1679 = vadd.f32 %v1486, %v1678
  %v1680 = vpop.f32.mrb[0].mxu0
  %v1681 = vadd.f32 %v1488, %v1680
  %v1682 = vpop.f32.mrb[0].mxu0
  %v1683 = vadd.f32 %v1490, %v1682
  %v1684 = vpop.f32.mrb[0].mxu0
  %v1685 = vadd.f32 %v1492, %v1684
  %1686 = vmatprep.mubr.bf16.mxu0 %v668
  %1687 = vmatmul.mubr.bf16.gmra.mrb[0].mxu0 %v667
  %v1688 = vpop.f32.mrb[0].mxu0
  %v1689 = vadd.f32 %v1496, %v1688
  %v1690 = vpop.f32.mrb[0].mxu0
  %v1691 = vadd.f32 %v1498, %v1690
  %v1692 = vpop.f32.mrb[0].mxu0
  %v1693 = vadd.f32 %v1500, %v1692
  %v1694 = vpop.f32.mrb[0].mxu0
  %v1695 = vadd.f32 %v1502, %v1694
  %1696 = vmatprep.mubr.bf16.mxu0 %v675
  %1697 = vmatmul.mubr.bf16.gmra.mrb[0].mxu0 %v674
  %v1698 = vpop.f32.mrb[0].mxu0
  %v1699 = vadd.f32 %v1506, %v1698
  %v1700 = vpop.f32.mrb[0].mxu0
  %v1701 = vadd.f32 %v1508, %v1700
  %v1702 = vpop.f32.mrb[0].mxu0
  %v1703 = vadd.f32 %v1510, %v1702
  %v1704 = vpop.f32.mrb[0].mxu0
  %v1705 = vadd.f32 %v1512, %v1704
  %1706 = vmatprep.mubr.bf16.mxu0 %v682
  %1707 = vmatmul.mubr.bf16.gmra.mrb[0].mxu0 %v681
  %v1708 = vpop.f32.mrb[0].mxu0
  %v1709 = vadd.f32 %v1516, %v1708
  %v1710 = vpop.f32.mrb[0].mxu0
  %v1711 = vadd.f32 %v1518, %v1710
  %v1712 = vpop.f32.mrb[0].mxu0
  %v1713 = vadd.f32 %v1520, %v1712
  %v1714 = vpop.f32.mrb[0].mxu0
  %v1715 = vadd.f32 %v1522, %v1714
  %1716 = vmatprep.mubr.bf16.mxu0 %v689
  %1717 = vmatmul.mubr.bf16.gmra.mrb[0].mxu0 %v688
  %v1718 = vpop.f32.mrb[0].mxu0
  %v1719 = vadd.f32 %v1526, %v1718
  %v1720 = vpop.f32.mrb[0].mxu0
  %v1721 = vadd.f32 %v1528, %v1720
  %v1722 = vpop.f32.mrb[0].mxu0
  %v1723 = vadd.f32 %v1530, %v1722
  %v1724 = vpop.f32.mrb[0].mxu0
  %v1725 = vadd.f32 %v1532, %v1724
  %1726 = vmatprep.mubr.bf16.mxu0 %v696
  %1727 = vmatmul.mubr.bf16.gmra.mrb[0].mxu0 %v695
  %v1728 = vpop.f32.mrb[0].mxu0
  %v1729 = vadd.f32 %v1536, %v1728
  %v1730 = vpop.f32.mrb[0].mxu0
  %v1731 = vadd.f32 %v1538, %v1730
  %v1732 = vpop.f32.mrb[0].mxu0
  %v1733 = vadd.f32 %v1540, %v1732
  %v1734 = vpop.f32.mrb[0].mxu0
  %v1735 = vadd.f32 %v1542, %v1734
  %1736 = vmatprep.mubr.bf16.mxu0 %v703
  %1737 = vmatmul.mubr.bf16.gmra.mrb[0].mxu0 %v702
  %v1738 = vpop.f32.mrb[0].mxu0
  %v1739 = vadd.f32 %v1546, %v1738
  %v1740 = vpop.f32.mrb[0].mxu0
  %v1741 = vadd.f32 %v1548, %v1740
  %v1742 = vpop.f32.mrb[0].mxu0
  %v1743 = vadd.f32 %v1550, %v1742
  %v1744 = vpop.f32.mrb[0].mxu0
  %v1745 = vadd.f32 %v1552, %v1744
  %1746 = vmatprep.mubr.bf16.mxu0 %v710
  %1747 = vmatmul.mubr.bf16.gmra.mrb[0].mxu0 %v709
  %v1748 = vpop.f32.mrb[0].mxu0
  %v1749 = vadd.f32 %v1556, %v1748
  %v1750 = vpop.f32.mrb[0].mxu0
  %v1751 = vadd.f32 %v1558, %v1750
  %v1752 = vpop.f32.mrb[0].mxu0
  %v1753 = vadd.f32 %v1560, %v1752
  %v1754 = vpop.f32.mrb[0].mxu0
  %v1755 = vadd.f32 %v1562, %v1754
  %1756 = vmatprep.mubr.bf16.mxu0 %v717
  %1757 = vmatmul.mubr.bf16.gmra.mrb[0].mxu0 %v716
  %v1758 = vpop.f32.mrb[0].mxu0
  %v1759 = vadd.f32 %v1566, %v1758
  %v1760 = vpop.f32.mrb[0].mxu0
  %v1761 = vadd.f32 %v1568, %v1760
  %v1762 = vpop.f32.mrb[0].mxu0
  %v1763 = vadd.f32 %v1570, %v1762
  %v1764 = vpop.f32.mrb[0].mxu0
  %v1765 = vadd.f32 %v1572, %v1764
  %1766 = vmatprep.mubr.bf16.mxu0 %v724
  %1767 = vmatmul.mubr.bf16.gmra.mrb[0].mxu0 %v723
  %v1768 = vpop.f32.mrb[0].mxu0
  %v1769 = vadd.f32 %v1576, %v1768
  %v1770 = vpop.f32.mrb[0].mxu0
  %v1771 = vadd.f32 %v1578, %v1770
  %v1772 = vpop.f32.mrb[0].mxu0
  %v1773 = vadd.f32 %v1580, %v1772
  %v1774 = vpop.f32.mrb[0].mxu0
  %v1775 = vadd.f32 %v1582, %v1774
  %1776 = vmatprep.mubr.bf16.mxu0 %v731
  %1777 = vmatmul.mubr.bf16.gmra.mrb[0].mxu0 %v730
  %v1778 = vpop.f32.mrb[0].mxu0
  %v1779 = vadd.f32 %v1586, %v1778
  %v1780 = vpop.f32.mrb[0].mxu0
  %v1781 = vadd.f32 %v1588, %v1780
  %v1782 = vpop.f32.mrb[0].mxu0
  %v1783 = vadd.f32 %v1590, %v1782
  %v1784 = vpop.f32.mrb[0].mxu0
  %v1785 = vadd.f32 %v1592, %v1784
  %1786 = vmatprep.mubr.bf16.mxu0 %v738
  %1787 = vmatmul.mubr.bf16.gmra.mrb[0].mxu0 %v737
  %v1788 = vpop.f32.mrb[0].mxu0
  %v1789 = vadd.f32 %v1596, %v1788
  %v1790 = vpop.f32.mrb[0].mxu0
  %v1791 = vadd.f32 %v1598, %v1790
  %v1792 = vpop.f32.mrb[0].mxu0
  %v1793 = vadd.f32 %v1600, %v1792
  %v1794 = vpop.f32.mrb[0].mxu0
  %v1795 = vadd.f32 %v1602, %v1794
  %1796 = vmatprep.mubr.bf16.mxu0 %v745
  %1797 = vmatmul.mubr.bf16.gmra.mrb[0].mxu0 %v744
  %v1798 = vpop.f32.mrb[0].mxu0
  %v1799 = vadd.f32 %v1606, %v1798
  %v1800 = vpop.f32.mrb[0].mxu0
  %v1801 = vadd.f32 %v1608, %v1800
  %v1802 = vpop.f32.mrb[0].mxu0
  %v1803 = vadd.f32 %v1610, %v1802
  %v1804 = vpop.f32.mrb[0].mxu0
  %v1805 = vadd.f32 %v1612, %v1804
  %1806 = vdwg.mxu0
  %1807 = vmatprep.subr.bf16.mxu0 %v1262
  %1808 = vmatpush1.bf16.msra.mxu0 %v1261
  %1809 = vmatprep.subr.bf16.mxu0 %v1264
  %1810 = vmatpush1.bf16.msra.mxu0 %v1263
  %1811 = vmatprep.subr.bf16.mxu0 %v1266
  %1812 = vmatpush1.bf16.msra.mxu0 %v1265
  %1813 = vmatprep.subr.bf16.mxu0 %v1268
  %1814 = vmatpush1.bf16.msra.mxu0 %v1267
  %1815 = vmatprep.subr.bf16.mxu0 %v1270
  %1816 = vmatpush1.bf16.msra.mxu0 %v1269
  %1817 = vmatprep.subr.bf16.mxu0 %v1272
  %1818 = vmatpush1.bf16.msra.mxu0 %v1271
  %1819 = vmatprep.subr.bf16.mxu0 %v1274
  %1820 = vmatpush1.bf16.msra.mxu0 %v1273
  %1821 = vmatprep.subr.bf16.mxu0 %v1276
  %1822 = vmatpush1.bf16.msra.mxu0 %v1275
  %1823 = vmatprep.subr.bf16.mxu0 %v1278
  %1824 = vmatpush1.bf16.msra.mxu0 %v1277
  %1825 = vmatprep.subr.bf16.mxu0 %v1280
  %1826 = vmatpush1.bf16.msra.mxu0 %v1279
  %1827 = vmatprep.subr.bf16.mxu0 %v1282
  %1828 = vmatpush1.bf16.msra.mxu0 %v1281
  %1829 = vmatprep.subr.bf16.mxu0 %v1284
  %1830 = vmatpush1.bf16.msra.mxu0 %v1283
  %1831 = vmatprep.subr.bf16.mxu0 %v1286
  %1832 = vmatpush1.bf16.msra.mxu0 %v1285
  %1833 = vmatprep.subr.bf16.mxu0 %v1288
  %1834 = vmatpush1.bf16.msra.mxu0 %v1287
  %1835 = vmatprep.subr.bf16.mxu0 %v1290
  %1836 = vmatpush1.bf16.msra.mxu0 %v1289
  %1837 = vmatprep.subr.bf16.mxu0 %v1292
  %1838 = vmatpush1.bf16.msra.mxu0 %v1291
  %1839 = vmatprep.mubr.bf16.mxu0 %v642
  %1840 = vmatmul.mubr.bf16.gmra.mrb[0].mxu0 %v641
  %v1841 = vpop.f32.mrb[0].mxu0
  %v1842 = vadd.f32 %v1649, %v1841
  %v1843 = vpop.f32.mrb[0].mxu0
  %v1844 = vadd.f32 %v1651, %v1843
  %v1845 = vpop.f32.mrb[0].mxu0
  %v1846 = vadd.f32 %v1653, %v1845
  %v1847 = vpop.f32.mrb[0].mxu0
  %v1848 = vadd.f32 %v1655, %v1847
  %1849 = vmatprep.mubr.bf16.mxu0 %v649
  %1850 = vmatmul.mubr.bf16.gmra.mrb[0].mxu0 %v648
  %v1851 = vpop.f32.mrb[0].mxu0
  %v1852 = vadd.f32 %v1659, %v1851
  %v1853 = vpop.f32.mrb[0].mxu0
  %v1854 = vadd.f32 %v1661, %v1853
  %v1855 = vpop.f32.mrb[0].mxu0
  %v1856 = vadd.f32 %v1663, %v1855
  %v1857 = vpop.f32.mrb[0].mxu0
  %v1858 = vadd.f32 %v1665, %v1857
  %1859 = vmatprep.mubr.bf16.mxu0 %v656
  %1860 = vmatmul.mubr.bf16.gmra.mrb[0].mxu0 %v655
  %v1861 = vpop.f32.mrb[0].mxu0
  %v1862 = vadd.f32 %v1669, %v1861
  %v1863 = vpop.f32.mrb[0].mxu0
  %v1864 = vadd.f32 %v1671, %v1863
  %v1865 = vpop.f32.mrb[0].mxu0
  %v1866 = vadd.f32 %v1673, %v1865
  %v1867 = vpop.f32.mrb[0].mxu0
  %v1868 = vadd.f32 %v1675, %v1867
  %1869 = vmatprep.mubr.bf16.mxu0 %v663
  %1870 = vmatmul.mubr.bf16.gmra.mrb[0].mxu0 %v662
  %v1871 = vpop.f32.mrb[0].mxu0
  %v1872 = vadd.f32 %v1679, %v1871
  %v1873 = vpop.f32.mrb[0].mxu0
  %v1874 = vadd.f32 %v1681, %v1873
  %v1875 = vpop.f32.mrb[0].mxu0
  %v1876 = vadd.f32 %v1683, %v1875
  %v1877 = vpop.f32.mrb[0].mxu0
  %v1878 = vadd.f32 %v1685, %v1877
  %1879 = vmatprep.mubr.bf16.mxu0 %v670
  %1880 = vmatmul.mubr.bf16.gmra.mrb[0].mxu0 %v669
  %v1881 = vpop.f32.mrb[0].mxu0
  %v1882 = vadd.f32 %v1689, %v1881
  %v1883 = vpop.f32.mrb[0].mxu0
  %v1884 = vadd.f32 %v1691, %v1883
  %v1885 = vpop.f32.mrb[0].mxu0
  %v1886 = vadd.f32 %v1693, %v1885
  %v1887 = vpop.f32.mrb[0].mxu0
  %v1888 = vadd.f32 %v1695, %v1887
  %1889 = vmatprep.mubr.bf16.mxu0 %v677
  %1890 = vmatmul.mubr.bf16.gmra.mrb[0].mxu0 %v676
  %v1891 = vpop.f32.mrb[0].mxu0
  %v1892 = vadd.f32 %v1699, %v1891
  %v1893 = vpop.f32.mrb[0].mxu0
  %v1894 = vadd.f32 %v1701, %v1893
  %v1895 = vpop.f32.mrb[0].mxu0
  %v1896 = vadd.f32 %v1703, %v1895
  %v1897 = vpop.f32.mrb[0].mxu0
  %v1898 = vadd.f32 %v1705, %v1897
  %1899 = vmatprep.mubr.bf16.mxu0 %v684
  %1900 = vmatmul.mubr.bf16.gmra.mrb[0].mxu0 %v683
  %v1901 = vpop.f32.mrb[0].mxu0
  %v1902 = vadd.f32 %v1709, %v1901
  %v1903 = vpop.f32.mrb[0].mxu0
  %v1904 = vadd.f32 %v1711, %v1903
  %v1905 = vpop.f32.mrb[0].mxu0
  %v1906 = vadd.f32 %v1713, %v1905
  %v1907 = vpop.f32.mrb[0].mxu0
  %v1908 = vadd.f32 %v1715, %v1907
  %1909 = vmatprep.mubr.bf16.mxu0 %v691
  %1910 = vmatmul.mubr.bf16.gmra.mrb[0].mxu0 %v690
  %v1911 = vpop.f32.mrb[0].mxu0
  %v1912 = vadd.f32 %v1719, %v1911
  %v1913 = vpop.f32.mrb[0].mxu0
  %v1914 = vadd.f32 %v1721, %v1913
  %v1915 = vpop.f32.mrb[0].mxu0
  %v1916 = vadd.f32 %v1723, %v1915
  %v1917 = vpop.f32.mrb[0].mxu0
  %v1918 = vadd.f32 %v1725, %v1917
  %1919 = vmatprep.mubr.bf16.mxu0 %v698
  %1920 = vmatmul.mubr.bf16.gmra.mrb[0].mxu0 %v697
  %v1921 = vpop.f32.mrb[0].mxu0
  %v1922 = vadd.f32 %v1729, %v1921
  %v1923 = vpop.f32.mrb[0].mxu0
  %v1924 = vadd.f32 %v1731, %v1923
  %v1925 = vpop.f32.mrb[0].mxu0
  %v1926 = vadd.f32 %v1733, %v1925
  %v1927 = vpop.f32.mrb[0].mxu0
  %v1928 = vadd.f32 %v1735, %v1927
  %1929 = vmatprep.mubr.bf16.mxu0 %v705
  %1930 = vmatmul.mubr.bf16.gmra.mrb[0].mxu0 %v704
  %v1931 = vpop.f32.mrb[0].mxu0
  %v1932 = vadd.f32 %v1739, %v1931
  %v1933 = vpop.f32.mrb[0].mxu0
  %v1934 = vadd.f32 %v1741, %v1933
  %v1935 = vpop.f32.mrb[0].mxu0
  %v1936 = vadd.f32 %v1743, %v1935
  %v1937 = vpop.f32.mrb[0].mxu0
  %v1938 = vadd.f32 %v1745, %v1937
  %1939 = vmatprep.mubr.bf16.mxu0 %v712
  %1940 = vmatmul.mubr.bf16.gmra.mrb[0].mxu0 %v711
  %v1941 = vpop.f32.mrb[0].mxu0
  %v1942 = vadd.f32 %v1749, %v1941
  %v1943 = vpop.f32.mrb[0].mxu0
  %v1944 = vadd.f32 %v1751, %v1943
  %v1945 = vpop.f32.mrb[0].mxu0
  %v1946 = vadd.f32 %v1753, %v1945
  %v1947 = vpop.f32.mrb[0].mxu0
  %v1948 = vadd.f32 %v1755, %v1947
  %1949 = vmatprep.mubr.bf16.mxu0 %v719
  %1950 = vmatmul.mubr.bf16.gmra.mrb[0].mxu0 %v718
  %v1951 = vpop.f32.mrb[0].mxu0
  %v1952 = vadd.f32 %v1759, %v1951
  %v1953 = vpop.f32.mrb[0].mxu0
  %v1954 = vadd.f32 %v1761, %v1953
  %v1955 = vpop.f32.mrb[0].mxu0
  %v1956 = vadd.f32 %v1763, %v1955
  %v1957 = vpop.f32.mrb[0].mxu0
  %v1958 = vadd.f32 %v1765, %v1957
  %1959 = vmatprep.mubr.bf16.mxu0 %v726
  %1960 = vmatmul.mubr.bf16.gmra.mrb[0].mxu0 %v725
  %v1961 = vpop.f32.mrb[0].mxu0
  %v1962 = vadd.f32 %v1769, %v1961
  %v1963 = vpop.f32.mrb[0].mxu0
  %v1964 = vadd.f32 %v1771, %v1963
  %v1965 = vpop.f32.mrb[0].mxu0
  %v1966 = vadd.f32 %v1773, %v1965
  %v1967 = vpop.f32.mrb[0].mxu0
  %v1968 = vadd.f32 %v1775, %v1967
  %1969 = vmatprep.mubr.bf16.mxu0 %v733
  %1970 = vmatmul.mubr.bf16.gmra.mrb[0].mxu0 %v732
  %v1971 = vpop.f32.mrb[0].mxu0
  %v1972 = vadd.f32 %v1779, %v1971
  %v1973 = vpop.f32.mrb[0].mxu0
  %v1974 = vadd.f32 %v1781, %v1973
  %v1975 = vpop.f32.mrb[0].mxu0
  %v1976 = vadd.f32 %v1783, %v1975
  %v1977 = vpop.f32.mrb[0].mxu0
  %v1978 = vadd.f32 %v1785, %v1977
  %1979 = vmatprep.mubr.bf16.mxu0 %v740
  %1980 = vmatmul.mubr.bf16.gmra.mrb[0].mxu0 %v739
  %v1981 = vpop.f32.mrb[0].mxu0
  %v1982 = vadd.f32 %v1789, %v1981
  %v1983 = vpop.f32.mrb[0].mxu0
  %v1984 = vadd.f32 %v1791, %v1983
  %v1985 = vpop.f32.mrb[0].mxu0
  %v1986 = vadd.f32 %v1793, %v1985
  %v1987 = vpop.f32.mrb[0].mxu0
  %v1988 = vadd.f32 %v1795, %v1987
  %1989 = vmatprep.mubr.bf16.mxu0 %v747
  %1990 = vmatmul.mubr.bf16.gmra.mrb[0].mxu0 %v746
  %v1991 = vpop.f32.mrb[0].mxu0
  %v1992 = vadd.f32 %v1799, %v1991
  %v1993 = vpop.f32.mrb[0].mxu0
  %v1994 = vadd.f32 %v1801, %v1993
  %v1995 = vpop.f32.mrb[0].mxu0
  %v1996 = vadd.f32 %v1803, %v1995
  %v1997 = vpop.f32.mrb[0].mxu0
  %v1998 = vadd.f32 %v1805, %v1997
  %1999 = vdwg.mxu0
  %2000 = vmatprep.subr.bf16.mxu0 %v1294
  %2001 = vmatpush1.bf16.msra.mxu0 %v1293
  %2002 = vmatprep.subr.bf16.mxu0 %v1296
  %2003 = vmatpush1.bf16.msra.mxu0 %v1295
  %2004 = vmatprep.subr.bf16.mxu0 %v1298
  %2005 = vmatpush1.bf16.msra.mxu0 %v1297
  %2006 = vmatprep.subr.bf16.mxu0 %v1300
  %2007 = vmatpush1.bf16.msra.mxu0 %v1299
  %2008 = vmatprep.subr.bf16.mxu0 %v1302
  %2009 = vmatpush1.bf16.msra.mxu0 %v1301
  %2010 = vmatprep.subr.bf16.mxu0 %v1304
  %2011 = vmatpush1.bf16.msra.mxu0 %v1303
  %2012 = vmatprep.subr.bf16.mxu0 %v1306
  %2013 = vmatpush1.bf16.msra.mxu0 %v1305
  %2014 = vmatprep.subr.bf16.mxu0 %v1308
  %2015 = vmatpush1.bf16.msra.mxu0 %v1307
  %2016 = vmatprep.subr.bf16.mxu0 0
  %2017 = vmatpush1.bf16.msra.mxu0 0
  %2018 = vmatprep.subr.bf16.mxu0 0
  %2019 = vmatpush1.bf16.msra.mxu0 0
  %2020 = vmatprep.subr.bf16.mxu0 0
  %2021 = vmatpush1.bf16.msra.mxu0 0
  %2022 = vmatprep.subr.bf16.mxu0 0
  %2023 = vmatpush1.bf16.msra.mxu0 0
  %2024 = vmatprep.subr.bf16.mxu0 0
  %2025 = vmatpush1.bf16.msra.mxu0 0
  %2026 = vmatprep.subr.bf16.mxu0 0
  %2027 = vmatpush1.bf16.msra.mxu0 0
  %2028 = vmatprep.subr.bf16.mxu0 0
  %2029 = vmatpush1.bf16.msra.mxu0 0
  %2030 = vmatprep.subr.bf16.mxu0 0
  %2031 = vmatpush1.bf16.msra.mxu0 0
  %2032 = vmatprep.mubr.bf16.mxu0 0
  %2033 = vmatmul.mubr.bf16.gmra.mrb[0].mxu0 %v643
  %v2034 = vpop.f32.mrb[0].mxu0
  %v2035 = vadd.f32 %v1842, %v2034
  %v2036 = vpop.f32.mrb[0].mxu0
  %v2037 = vadd.f32 %v1844, %v2036
  %v2038 = vpop.f32.mrb[0].mxu0
  %v2039 = vadd.f32 %v1846, %v2038
  %v2040 = vpop.f32.mrb[0].mxu0
  %v2041 = vadd.f32 %v1848, %v2040
  %2042 = vmatprep.mubr.bf16.mxu0 0
  %2043 = vmatmul.mubr.bf16.gmra.mrb[0].mxu0 %v650
  %v2044 = vpop.f32.mrb[0].mxu0
  %v2045 = vadd.f32 %v1852, %v2044
  %v2046 = vpop.f32.mrb[0].mxu0
  %v2047 = vadd.f32 %v1854, %v2046
  %v2048 = vpop.f32.mrb[0].mxu0
  %v2049 = vadd.f32 %v1856, %v2048
  %v2050 = vpop.f32.mrb[0].mxu0
  %v2051 = vadd.f32 %v1858, %v2050
  %2052 = vmatprep.mubr.bf16.mxu0 0
  %2053 = vmatmul.mubr.bf16.gmra.mrb[0].mxu0 %v657
  %v2054 = vpop.f32.mrb[0].mxu0
  %v2055 = vadd.f32 %v1862, %v2054
  %v2056 = vpop.f32.mrb[0].mxu0
  %v2057 = vadd.f32 %v1864, %v2056
  %v2058 = vpop.f32.mrb[0].mxu0
  %v2059 = vadd.f32 %v1866, %v2058
  %v2060 = vpop.f32.mrb[0].mxu0
  %v2061 = vadd.f32 %v1868, %v2060
  %2062 = vmatprep.mubr.bf16.mxu0 0
  %2063 = vmatmul.mubr.bf16.gmra.mrb[0].mxu0 %v664
  %v2064 = vpop.f32.mrb[0].mxu0
  %v2065 = vadd.f32 %v1872, %v2064
  %v2066 = vpop.f32.mrb[0].mxu0
  %v2067 = vadd.f32 %v1874, %v2066
  %v2068 = vpop.f32.mrb[0].mxu0
  %v2069 = vadd.f32 %v1876, %v2068
  %v2070 = vpop.f32.mrb[0].mxu0
  %v2071 = vadd.f32 %v1878, %v2070
  %2072 = vmatprep.mubr.bf16.mxu0 0
  %2073 = vmatmul.mubr.bf16.gmra.mrb[0].mxu0 %v671
  %v2074 = vpop.f32.mrb[0].mxu0
  %v2075 = vadd.f32 %v1882, %v2074
  %v2076 = vpop.f32.mrb[0].mxu0
  %v2077 = vadd.f32 %v1884, %v2076
  %v2078 = vpop.f32.mrb[0].mxu0
  %v2079 = vadd.f32 %v1886, %v2078
  %v2080 = vpop.f32.mrb[0].mxu0
  %v2081 = vadd.f32 %v1888, %v2080
  %2082 = vmatprep.mubr.bf16.mxu0 0
  %2083 = vmatmul.mubr.bf16.gmra.mrb[0].mxu0 %v678
  %v2084 = vpop.f32.mrb[0].mxu0
  %v2085 = vadd.f32 %v1892, %v2084
  %v2086 = vpop.f32.mrb[0].mxu0
  %v2087 = vadd.f32 %v1894, %v2086
  %v2088 = vpop.f32.mrb[0].mxu0
  %v2089 = vadd.f32 %v1896, %v2088
  %v2090 = vpop.f32.mrb[0].mxu0
  %v2091 = vadd.f32 %v1898, %v2090
  %2092 = vmatprep.mubr.bf16.mxu0 0
  %2093 = vmatmul.mubr.bf16.gmra.mrb[0].mxu0 %v685
  %v2094 = vpop.f32.mrb[0].mxu0
  %v2095 = vadd.f32 %v1902, %v2094
  %v2096 = vpop.f32.mrb[0].mxu0
  %v2097 = vadd.f32 %v1904, %v2096
  %v2098 = vpop.f32.mrb[0].mxu0
  %v2099 = vadd.f32 %v1906, %v2098
  %v2100 = vpop.f32.mrb[0].mxu0
  %v2101 = vadd.f32 %v1908, %v2100
  %2102 = vmatprep.mubr.bf16.mxu0 0
  %2103 = vmatmul.mubr.bf16.gmra.mrb[0].mxu0 %v692
  %v2104 = vpop.f32.mrb[0].mxu0
  %v2105 = vadd.f32 %v1912, %v2104
  %v2106 = vpop.f32.mrb[0].mxu0
  %v2107 = vadd.f32 %v1914, %v2106
  %v2108 = vpop.f32.mrb[0].mxu0
  %v2109 = vadd.f32 %v1916, %v2108
  %v2110 = vpop.f32.mrb[0].mxu0
  %v2111 = vadd.f32 %v1918, %v2110
  %2112 = vmatprep.mubr.bf16.mxu0 0
  %2113 = vmatmul.mubr.bf16.gmra.mrb[0].mxu0 %v699
  %v2114 = vpop.f32.mrb[0].mxu0
  %v2115 = vadd.f32 %v1922, %v2114
  %v2116 = vpop.f32.mrb[0].mxu0
  %v2117 = vadd.f32 %v1924, %v2116
  %v2118 = vpop.f32.mrb[0].mxu0
  %v2119 = vadd.f32 %v1926, %v2118
  %v2120 = vpop.f32.mrb[0].mxu0
  %v2121 = vadd.f32 %v1928, %v2120
  %2122 = vmatprep.mubr.bf16.mxu0 0
  %2123 = vmatmul.mubr.bf16.gmra.mrb[0].mxu0 %v706
  %v2124 = vpop.f32.mrb[0].mxu0
  %v2125 = vadd.f32 %v1932, %v2124
  %v2126 = vpop.f32.mrb[0].mxu0
  %v2127 = vadd.f32 %v1934, %v2126
  %v2128 = vpop.f32.mrb[0].mxu0
  %v2129 = vadd.f32 %v1936, %v2128
  %v2130 = vpop.f32.mrb[0].mxu0
  %v2131 = vadd.f32 %v1938, %v2130
  %2132 = vmatprep.mubr.bf16.mxu0 0
  %2133 = vmatmul.mubr.bf16.gmra.mrb[0].mxu0 %v713
  %v2134 = vpop.f32.mrb[0].mxu0
  %v2135 = vadd.f32 %v1942, %v2134
  %v2136 = vpop.f32.mrb[0].mxu0
  %v2137 = vadd.f32 %v1944, %v2136
  %v2138 = vpop.f32.mrb[0].mxu0
  %v2139 = vadd.f32 %v1946, %v2138
  %v2140 = vpop.f32.mrb[0].mxu0
  %v2141 = vadd.f32 %v1948, %v2140
  %2142 = vmatprep.mubr.bf16.mxu0 0
  %2143 = vmatmul.mubr.bf16.gmra.mrb[0].mxu0 %v720
  %v2144 = vpop.f32.mrb[0].mxu0
  %v2145 = vadd.f32 %v1952, %v2144
  %v2146 = vpop.f32.mrb[0].mxu0
  %v2147 = vadd.f32 %v1954, %v2146
  %v2148 = vpop.f32.mrb[0].mxu0
  %v2149 = vadd.f32 %v1956, %v2148
  %v2150 = vpop.f32.mrb[0].mxu0
  %v2151 = vadd.f32 %v1958, %v2150
  %2152 = vmatprep.mubr.bf16.mxu0 0
  %2153 = vmatmul.mubr.bf16.gmra.mrb[0].mxu0 %v727
  %v2154 = vpop.f32.mrb[0].mxu0
  %v2155 = vadd.f32 %v1962, %v2154
  %v2156 = vpop.f32.mrb[0].mxu0
  %v2157 = vadd.f32 %v1964, %v2156
  %v2158 = vpop.f32.mrb[0].mxu0
  %v2159 = vadd.f32 %v1966, %v2158
  %v2160 = vpop.f32.mrb[0].mxu0
  %v2161 = vadd.f32 %v1968, %v2160
  %2162 = vmatprep.mubr.bf16.mxu0 0
  %2163 = vmatmul.mubr.bf16.gmra.mrb[0].mxu0 %v734
  %v2164 = vpop.f32.mrb[0].mxu0
  %v2165 = vadd.f32 %v1972, %v2164
  %v2166 = vpop.f32.mrb[0].mxu0
  %v2167 = vadd.f32 %v1974, %v2166
  %v2168 = vpop.f32.mrb[0].mxu0
  %v2169 = vadd.f32 %v1976, %v2168
  %v2170 = vpop.f32.mrb[0].mxu0
  %v2171 = vadd.f32 %v1978, %v2170
  %2172 = vmatprep.mubr.bf16.mxu0 0
  %2173 = vmatmul.mubr.bf16.gmra.mrb[0].mxu0 %v741
  %v2174 = vpop.f32.mrb[0].mxu0
  %v2175 = vadd.f32 %v1982, %v2174
  %v2176 = vpop.f32.mrb[0].mxu0
  %v2177 = vadd.f32 %v1984, %v2176
  %v2178 = vpop.f32.mrb[0].mxu0
  %v2179 = vadd.f32 %v1986, %v2178
  %v2180 = vpop.f32.mrb[0].mxu0
  %v2181 = vadd.f32 %v1988, %v2180
  %2182 = vmatprep.mubr.bf16.mxu0 0
  %2183 = vmatmul.mubr.bf16.gmra.mrb[0].mxu0 %v748
  %v2184 = vpop.f32.mrb[0].mxu0
  %v2185 = vadd.f32 %v1992, %v2184
  %v2186 = vpop.f32.mrb[0].mxu0
  %v2187 = vadd.f32 %v1994, %v2186
  %v2188 = vpop.f32.mrb[0].mxu0
  %v2189 = vadd.f32 %v1996, %v2188
  %v2190 = vpop.f32.mrb[0].mxu0
  %v2191 = vadd.f32 %v1998, %v2190
  %2192 = vdwg.mxu0
  %v2193 = vmax.f32 %v2035, 0.0
  %v2194 = vmax.f32 %v2037, 0.0
  %v2195 = vmax.f32 %v2039, 0.0
  %v2196 = vmax.f32 %v2041, 0.0
  %v2197 = vmax.f32 %v2045, 0.0
  %v2198 = vmax.f32 %v2047, 0.0
  %v2199 = vmax.f32 %v2049, 0.0
  %v2200 = vmax.f32 %v2051, 0.0
  %v2201 = vmax.f32 %v2055, 0.0
  %v2202 = vmax.f32 %v2057, 0.0
  %v2203 = vmax.f32 %v2059, 0.0
  %v2204 = vmax.f32 %v2061, 0.0
  %v2205 = vmax.f32 %v2065, 0.0
  %v2206 = vmax.f32 %v2067, 0.0
  %v2207 = vmax.f32 %v2069, 0.0
  %v2208 = vmax.f32 %v2071, 0.0
  %v2209 = vmax.f32 %v2075, 0.0
  %v2210 = vmax.f32 %v2077, 0.0
  %v2211 = vmax.f32 %v2079, 0.0
  %v2212 = vmax.f32 %v2081, 0.0
  %v2213 = vmax.f32 %v2085, 0.0
  %v2214 = vmax.f32 %v2087, 0.0
  %v2215 = vmax.f32 %v2089, 0.0
  %v2216 = vmax.f32 %v2091, 0.0
  %v2217 = vmax.f32 %v2095, 0.0
  %v2218 = vmax.f32 %v2097, 0.0
  %v2219 = vmax.f32 %v2099, 0.0
  %v2220 = vmax.f32 %v2101, 0.0
  %v2221 = vmax.f32 %v2105, 0.0
  %v2222 = vmax.f32 %v2107, 0.0
  %v2223 = vmax.f32 %v2109, 0.0
  %v2224 = vmax.f32 %v2111, 0.0
  %v2225 = vmax.f32 %v2115, 0.0
  %v2226 = vmax.f32 %v2117, 0.0
  %v2227 = vmax.f32 %v2119, 0.0
  %v2228 = vmax.f32 %v2121, 0.0
  %v2229 = vmax.f32 %v2125, 0.0
  %v2230 = vmax.f32 %v2127, 0.0
  %v2231 = vmax.f32 %v2129, 0.0
  %v2232 = vmax.f32 %v2131, 0.0
  %v2233 = vmax.f32 %v2135, 0.0
  %v2234 = vmax.f32 %v2137, 0.0
  %v2235 = vmax.f32 %v2139, 0.0
  %v2236 = vmax.f32 %v2141, 0.0
  %v2237 = vmax.f32 %v2145, 0.0
  %v2238 = vmax.f32 %v2147, 0.0
  %v2239 = vmax.f32 %v2149, 0.0
  %v2240 = vmax.f32 %v2151, 0.0
  %v2241 = vmax.f32 %v2155, 0.0
  %v2242 = vmax.f32 %v2157, 0.0
  %v2243 = vmax.f32 %v2159, 0.0
  %v2244 = vmax.f32 %v2161, 0.0
  %v2245 = vmax.f32 %v2165, 0.0
  %v2246 = vmax.f32 %v2167, 0.0
  %v2247 = vmax.f32 %v2169, 0.0
  %v2248 = vmax.f32 %v2171, 0.0
  %v2249 = vmax.f32 %v2175, 0.0
  %v2250 = vmax.f32 %v2177, 0.0
  %v2251 = vmax.f32 %v2179, 0.0
  %v2252 = vmax.f32 %v2181, 0.0
  %v2253 = vmax.f32 %v2185, 0.0
  %v2254 = vmax.f32 %v2187, 0.0
  %v2255 = vmax.f32 %v2189, 0.0
  %v2256 = vmax.f32 %v2191, 0.0
  %v2257 = vpack.c.bf16 %v2195, %v2193
  %v2258 = vpack.c.bf16 %v2196, %v2194
  %v2259 = vpack.c.bf16 %v2199, %v2197
  %v2260 = vpack.c.bf16 %v2200, %v2198
  %v2261 = vpack.c.bf16 %v2203, %v2201
  %v2262 = vpack.c.bf16 %v2204, %v2202
  %v2263 = vpack.c.bf16 %v2207, %v2205
  %v2264 = vpack.c.bf16 %v2208, %v2206
  %v2265 = vpack.c.bf16 %v2211, %v2209
  %v2266 = vpack.c.bf16 %v2212, %v2210
  %v2267 = vpack.c.bf16 %v2215, %v2213
  %v2268 = vpack.c.bf16 %v2216, %v2214
  %v2269 = vpack.c.bf16 %v2219, %v2217
  %v2270 = vpack.c.bf16 %v2220, %v2218
  %v2271 = vpack.c.bf16 %v2223, %v2221
  %v2272 = vpack.c.bf16 %v2224, %v2222
  %v2273 = vpack.c.bf16 %v2227, %v2225
  %v2274 = vpack.c.bf16 %v2228, %v2226
  %v2275 = vpack.c.bf16 %v2231, %v2229
  %v2276 = vpack.c.bf16 %v2232, %v2230
  %v2277 = vpack.c.bf16 %v2235, %v2233
  %v2278 = vpack.c.bf16 %v2236, %v2234
  %v2279 = vpack.c.bf16 %v2239, %v2237
  %v2280 = vpack.c.bf16 %v2240, %v2238
  %v2281 = vpack.c.bf16 %v2243, %v2241
  %v2282 = vpack.c.bf16 %v2244, %v2242
  %v2283 = vpack.c.bf16 %v2247, %v2245
  %v2284 = vpack.c.bf16 %v2248, %v2246
  %v2285 = vpack.c.bf16 %v2251, %v2249
  %v2286 = vpack.c.bf16 %v2252, %v2250
  %v2287 = vpack.c.bf16 %v2255, %v2253
  %v2288 = vpack.c.bf16 %v2256, %v2254
  %v2289 = vld [vmem:[%s3] sm:$0xf]
  %v2290 = vld [vmem:[%s3 + $0x4] sm:$0xf]
  %v2291 = vld [vmem:[%s3 + $0x8] sm:$0xf]
  %v2292 = vld [vmem:[%s3 + $0xc] sm:$0xf]
  %v2293 = vld [vmem:[%s3 + $0x10] sm:$0xf]
  %v2294 = vld [vmem:[%s3 + $0x14] sm:$0xf]
  %v2295 = vld [vmem:[%s3 + $0x18] sm:$0xf]
  %v2296 = vld [vmem:[%s3 + $0x1c] sm:$0xf]
  %v2297 = vld [vmem:[%s3 + $0x20] sm:$0xf]
  %v2298 = vld [vmem:[%s3 + $0x24] sm:$0xf]
  %v2299 = vld [vmem:[%s3 + $0x28] sm:$0xf]
  %v2300 = vld [vmem:[%s3 + $0x2c] sm:$0xf]
  %v2301 = vld [vmem:[%s3 + $0x30] sm:$0xf]
  %v2302 = vld [vmem:[%s3 + $0x34] sm:$0xf]
  %v2303 = vld [vmem:[%s3 + $0x38] sm:$0xf]
  %v2304 = vld [vmem:[%s3 + $0x3c] sm:$0xf]
  %v2305 = vld [vmem:[%s3 + $0x40] sm:$0xf]
  %v2306 = vld [vmem:[%s3 + $0x44] sm:$0xf]
  %v2307 = vld [vmem:[%s3 + $0x48] sm:$0xf]
  %v2308 = vld [vmem:[%s3 + $0x4c] sm:$0xf]
  %v2309 = vld [vmem:[%s3 + $0x50] sm:$0xf]
  %v2310 = vld [vmem:[%s3 + $0x54] sm:$0xf]
  %v2311 = vld [vmem:[%s3 + $0x58] sm:$0xf]
  %v2312 = vld [vmem:[%s3 + $0x5c] sm:$0xf]
  %v2313 = vld [vmem:[%s3 + $0x60] sm:$0xf]
  %v2314 = vld [vmem:[%s3 + $0x64] sm:$0xf]
  %v2315 = vld [vmem:[%s3 + $0x68] sm:$0xf]
  %v2316 = vld [vmem:[%s3 + $0x6c] sm:$0xf]
  %v2317 = vld [vmem:[%s3 + $0x70] sm:$0xf]
  %v2318 = vld [vmem:[%s3 + $0x74] sm:$0xf]
  %v2319 = vld [vmem:[%s3 + $0x78] sm:$0xf]
  %v2320 = vld [vmem:[%s3 + $0x7c] sm:$0xf]
  %v2321 = vld [vmem:[%s4] sm:$0x1]
  %v2323 = vlaneseq
  %v2324 = vshrl.u32 %v2323, 7
  %v2325 = vsub.s32 0, %v2324
  %v2326 = vrot.slane %v2321, %v2325
  %v2360 = vunpack.c.l.b16 %v2289
  %v2361 = vunpack.c.l.b16 %v2290
  %v2362 = vunpack.c.l.b16 %v2291
  %v2363 = vunpack.c.l.b16 %v2292
  %v2364 = vunpack.c.l.b16 %v2293
  %v2365 = vunpack.c.l.b16 %v2294
  %v2366 = vunpack.c.l.b16 %v2295
  %v2367 = vunpack.c.l.b16 %v2296
  %v2368 = vunpack.c.l.b16 %v2297
  %v2369 = vunpack.c.l.b16 %v2298
  %v2370 = vunpack.c.l.b16 %v2299
  %v2371 = vunpack.c.l.b16 %v2300
  %v2372 = vunpack.c.l.b16 %v2301
  %v2373 = vunpack.c.l.b16 %v2302
  %v2374 = vunpack.c.l.b16 %v2303
  %v2375 = vunpack.c.l.b16 %v2304
  %v2376 = vunpack.c.l.b16 %v2305
  %v2377 = vunpack.c.l.b16 %v2306
  %v2378 = vunpack.c.l.b16 %v2307
  %v2379 = vunpack.c.l.b16 %v2308
  %v2380 = vunpack.c.l.b16 %v2309
  %v2381 = vunpack.c.l.b16 %v2310
  %v2382 = vunpack.c.l.b16 %v2311
  %v2383 = vunpack.c.l.b16 %v2312
  %v2384 = vunpack.c.l.b16 %v2313
  %v2385 = vunpack.c.l.b16 %v2314
  %v2386 = vunpack.c.l.b16 %v2315
  %v2387 = vunpack.c.l.b16 %v2316
  %v2388 = vunpack.c.l.b16 %v2317
  %v2389 = vunpack.c.l.b16 %v2318
  %v2390 = vunpack.c.l.b16 %v2319
  %v2391 = vunpack.c.l.b16 %v2320
  %v2392 = vpack.c.b16 %v2361, %v2360
  %v2393 = vpack.c.b16 %v2363, %v2362
  %v2394 = vpack.c.b16 %v2365, %v2364
  %v2395 = vpack.c.b16 %v2367, %v2366
  %v2396 = vpack.c.b16 %v2369, %v2368
  %v2397 = vpack.c.b16 %v2371, %v2370
  %v2398 = vpack.c.b16 %v2373, %v2372
  %v2399 = vpack.c.b16 %v2375, %v2374
  %v2400 = vpack.c.b16 %v2377, %v2376
  %v2401 = vpack.c.b16 %v2379, %v2378
  %v2402 = vpack.c.b16 %v2381, %v2380
  %v2403 = vpack.c.b16 %v2383, %v2382
  %v2404 = vpack.c.b16 %v2385, %v2384
  %v2405 = vpack.c.b16 %v2387, %v2386
  %v2406 = vpack.c.b16 %v2389, %v2388
  %v2407 = vpack.c.b16 %v2391, %v2390
  %2424 = vmatprep.subr.bf16.mxu0 0
  %2425 = vmatpush1.bf16.msra.mxu0 %v2392
  %2426 = vmatprep.subr.bf16.mxu0 0
  %2427 = vmatpush1.bf16.msra.mxu0 %v2393
  %2428 = vmatprep.subr.bf16.mxu0 0
  %2429 = vmatpush1.bf16.msra.mxu0 %v2394
  %2430 = vmatprep.subr.bf16.mxu0 0
  %2431 = vmatpush1.bf16.msra.mxu0 %v2395
  %2432 = vmatprep.subr.bf16.mxu0 0
  %2433 = vmatpush1.bf16.msra.mxu0 %v2396
  %2434 = vmatprep.subr.bf16.mxu0 0
  %2435 = vmatpush1.bf16.msra.mxu0 %v2397
  %2436 = vmatprep.subr.bf16.mxu0 0
  %2437 = vmatpush1.bf16.msra.mxu0 %v2398
  %2438 = vmatprep.subr.bf16.mxu0 0
  %2439 = vmatpush1.bf16.msra.mxu0 %v2399
  %2440 = vmatprep.subr.bf16.mxu0 0
  %2441 = vmatpush1.bf16.msra.mxu0 %v2400
  %2442 = vmatprep.subr.bf16.mxu0 0
  %2443 = vmatpush1.bf16.msra.mxu0 %v2401
  %2444 = vmatprep.subr.bf16.mxu0 0
  %2445 = vmatpush1.bf16.msra.mxu0 %v2402
  %2446 = vmatprep.subr.bf16.mxu0 0
  %2447 = vmatpush1.bf16.msra.mxu0 %v2403
  %2448 = vmatprep.subr.bf16.mxu0 0
  %2449 = vmatpush1.bf16.msra.mxu0 %v2404
  %2450 = vmatprep.subr.bf16.mxu0 0
  %2451 = vmatpush1.bf16.msra.mxu0 %v2405
  %2452 = vmatprep.subr.bf16.mxu0 0
  %2453 = vmatpush1.bf16.msra.mxu0 %v2406
  %2454 = vmatprep.subr.bf16.mxu0 0
  %2455 = vmatpush1.bf16.msra.mxu0 %v2407
  %2456 = vmatprep.mubr.bf16.mxu0 %v2258
  %2457 = vmatmul.mubr.bf16.gmra.mrb[0].mxu0 %v2257
  %v2458 = vpop.f32.mrb[0].mxu0
  %v2459 = vadd.f32 %v2326, %v2458
  %v2460 = vpop.f32.mrb[0].mxu0
  %v2461 = vpop.f32.mrb[0].mxu0
  %v2462 = vadd.f32 %v2326, %v2461
  %v2463 = vpop.f32.mrb[0].mxu0
  %2464 = vmatprep.mubr.bf16.mxu0 %v2260
  %2465 = vmatmul.mubr.bf16.gmra.mrb[0].mxu0 %v2259
  %v2466 = vpop.f32.mrb[0].mxu0
  %v2467 = vadd.f32 %v2326, %v2466
  %v2468 = vpop.f32.mrb[0].mxu0
  %v2469 = vpop.f32.mrb[0].mxu0
  %v2470 = vadd.f32 %v2326, %v2469
  %v2471 = vpop.f32.mrb[0].mxu0
  %2472 = vmatprep.mubr.bf16.mxu0 %v2262
  %2473 = vmatmul.mubr.bf16.gmra.mrb[0].mxu0 %v2261
  %v2474 = vpop.f32.mrb[0].mxu0
  %v2475 = vadd.f32 %v2326, %v2474
  %v2476 = vpop.f32.mrb[0].mxu0
  %v2477 = vpop.f32.mrb[0].mxu0
  %v2478 = vadd.f32 %v2326, %v2477
  %v2479 = vpop.f32.mrb[0].mxu0
  %2480 = vmatprep.mubr.bf16.mxu0 %v2264
  %2481 = vmatmul.mubr.bf16.gmra.mrb[0].mxu0 %v2263
  %v2482 = vpop.f32.mrb[0].mxu0
  %v2483 = vadd.f32 %v2326, %v2482
  %v2484 = vpop.f32.mrb[0].mxu0
  %v2485 = vpop.f32.mrb[0].mxu0
  %v2486 = vadd.f32 %v2326, %v2485
  %v2487 = vpop.f32.mrb[0].mxu0
  %2488 = vmatprep.mubr.bf16.mxu0 %v2266
  %2489 = vmatmul.mubr.bf16.gmra.mrb[0].mxu0 %v2265
  %v2490 = vpop.f32.mrb[0].mxu0
  %v2491 = vadd.f32 %v2326, %v2490
  %v2492 = vpop.f32.mrb[0].mxu0
  %v2493 = vpop.f32.mrb[0].mxu0
  %v2494 = vadd.f32 %v2326, %v2493
  %v2495 = vpop.f32.mrb[0].mxu0
  %2496 = vmatprep.mubr.bf16.mxu0 %v2268
  %2497 = vmatmul.mubr.bf16.gmra.mrb[0].mxu0 %v2267
  %v2498 = vpop.f32.mrb[0].mxu0
  %v2499 = vadd.f32 %v2326, %v2498
  %v2500 = vpop.f32.mrb[0].mxu0
  %v2501 = vpop.f32.mrb[0].mxu0
  %v2502 = vadd.f32 %v2326, %v2501
  %v2503 = vpop.f32.mrb[0].mxu0
  %2504 = vmatprep.mubr.bf16.mxu0 %v2270
  %2505 = vmatmul.mubr.bf16.gmra.mrb[0].mxu0 %v2269
  %v2506 = vpop.f32.mrb[0].mxu0
  %v2507 = vadd.f32 %v2326, %v2506
  %v2508 = vpop.f32.mrb[0].mxu0
  %v2509 = vpop.f32.mrb[0].mxu0
  %v2510 = vadd.f32 %v2326, %v2509
  %v2511 = vpop.f32.mrb[0].mxu0
  %2512 = vmatprep.mubr.bf16.mxu0 %v2272
  %2513 = vmatmul.mubr.bf16.gmra.mrb[0].mxu0 %v2271
  %v2514 = vpop.f32.mrb[0].mxu0
  %v2515 = vadd.f32 %v2326, %v2514
  %v2516 = vpop.f32.mrb[0].mxu0
  %v2517 = vpop.f32.mrb[0].mxu0
  %v2518 = vadd.f32 %v2326, %v2517
  %v2519 = vpop.f32.mrb[0].mxu0
  %2520 = vmatprep.mubr.bf16.mxu0 %v2274
  %2521 = vmatmul.mubr.bf16.gmra.mrb[0].mxu0 %v2273
  %v2522 = vpop.f32.mrb[0].mxu0
  %v2523 = vadd.f32 %v2326, %v2522
  %v2524 = vpop.f32.mrb[0].mxu0
  %v2525 = vpop.f32.mrb[0].mxu0
  %v2526 = vadd.f32 %v2326, %v2525
  %v2527 = vpop.f32.mrb[0].mxu0
  %2528 = vmatprep.mubr.bf16.mxu0 %v2276
  %2529 = vmatmul.mubr.bf16.gmra.mrb[0].mxu0 %v2275
  %v2530 = vpop.f32.mrb[0].mxu0
  %v2531 = vadd.f32 %v2326, %v2530
  %v2532 = vpop.f32.mrb[0].mxu0
  %v2533 = vpop.f32.mrb[0].mxu0
  %v2534 = vadd.f32 %v2326, %v2533
  %v2535 = vpop.f32.mrb[0].mxu0
  %2536 = vmatprep.mubr.bf16.mxu0 %v2278
  %2537 = vmatmul.mubr.bf16.gmra.mrb[0].mxu0 %v2277
  %v2538 = vpop.f32.mrb[0].mxu0
  %v2539 = vadd.f32 %v2326, %v2538
  %v2540 = vpop.f32.mrb[0].mxu0
  %v2541 = vpop.f32.mrb[0].mxu0
  %v2542 = vadd.f32 %v2326, %v2541
  %v2543 = vpop.f32.mrb[0].mxu0
  %2544 = vmatprep.mubr.bf16.mxu0 %v2280
  %2545 = vmatmul.mubr.bf16.gmra.mrb[0].mxu0 %v2279
  %v2546 = vpop.f32.mrb[0].mxu0
  %v2547 = vadd.f32 %v2326, %v2546
  %v2548 = vpop.f32.mrb[0].mxu0
  %v2549 = vpop.f32.mrb[0].mxu0
  %v2550 = vadd.f32 %v2326, %v2549
  %v2551 = vpop.f32.mrb[0].mxu0
  %2552 = vmatprep.mubr.bf16.mxu0 %v2282
  %2553 = vmatmul.mubr.bf16.gmra.mrb[0].mxu0 %v2281
  %v2554 = vpop.f32.mrb[0].mxu0
  %v2555 = vadd.f32 %v2326, %v2554
  %v2556 = vpop.f32.mrb[0].mxu0
  %v2557 = vpop.f32.mrb[0].mxu0
  %v2558 = vadd.f32 %v2326, %v2557
  %v2559 = vpop.f32.mrb[0].mxu0
  %2560 = vmatprep.mubr.bf16.mxu0 %v2284
  %2561 = vmatmul.mubr.bf16.gmra.mrb[0].mxu0 %v2283
  %v2562 = vpop.f32.mrb[0].mxu0
  %v2563 = vadd.f32 %v2326, %v2562
  %v2564 = vpop.f32.mrb[0].mxu0
  %v2565 = vpop.f32.mrb[0].mxu0
  %v2566 = vadd.f32 %v2326, %v2565
  %v2567 = vpop.f32.mrb[0].mxu0
  %2568 = vmatprep.mubr.bf16.mxu0 %v2286
  %2569 = vmatmul.mubr.bf16.gmra.mrb[0].mxu0 %v2285
  %v2570 = vpop.f32.mrb[0].mxu0
  %v2571 = vadd.f32 %v2326, %v2570
  %v2572 = vpop.f32.mrb[0].mxu0
  %v2573 = vpop.f32.mrb[0].mxu0
  %v2574 = vadd.f32 %v2326, %v2573
  %v2575 = vpop.f32.mrb[0].mxu0
  %2576 = vmatprep.mubr.bf16.mxu0 %v2288
  %2577 = vmatmul.mubr.bf16.gmra.mrb[0].mxu0 %v2287
  %v2578 = vpop.f32.mrb[0].mxu0
  %v2579 = vadd.f32 %v2326, %v2578
  %v2580 = vpop.f32.mrb[0].mxu0
  %v2581 = vpop.f32.mrb[0].mxu0
  %v2582 = vadd.f32 %v2326, %v2581
  %v2583 = vpop.f32.mrb[0].mxu0
  %2584 = vdwg.mxu0
  %v2585 = vmax.f32 %v2459, 0.0
  %v2586 = vmax.f32 %v2462, 0.0
  %v2587 = vmax.f32 %v2467, 0.0
  %v2588 = vmax.f32 %v2470, 0.0
  %v2589 = vmax.f32 %v2475, 0.0
  %v2590 = vmax.f32 %v2478, 0.0
  %v2591 = vmax.f32 %v2483, 0.0
  %v2592 = vmax.f32 %v2486, 0.0
  %v2593 = vmax.f32 %v2491, 0.0
  %v2594 = vmax.f32 %v2494, 0.0
  %v2595 = vmax.f32 %v2499, 0.0
  %v2596 = vmax.f32 %v2502, 0.0
  %v2597 = vmax.f32 %v2507, 0.0
  %v2598 = vmax.f32 %v2510, 0.0
  %v2599 = vmax.f32 %v2515, 0.0
  %v2600 = vmax.f32 %v2518, 0.0
  %v2601 = vmax.f32 %v2523, 0.0
  %v2602 = vmax.f32 %v2526, 0.0
  %v2603 = vmax.f32 %v2531, 0.0
  %v2604 = vmax.f32 %v2534, 0.0
  %v2605 = vmax.f32 %v2539, 0.0
  %v2606 = vmax.f32 %v2542, 0.0
  %v2607 = vmax.f32 %v2547, 0.0
  %v2608 = vmax.f32 %v2550, 0.0
  %v2609 = vmax.f32 %v2555, 0.0
  %v2610 = vmax.f32 %v2558, 0.0
  %v2611 = vmax.f32 %v2563, 0.0
  %v2612 = vmax.f32 %v2566, 0.0
  %v2613 = vmax.f32 %v2571, 0.0
  %v2614 = vmax.f32 %v2574, 0.0
  %v2615 = vmax.f32 %v2579, 0.0
  %v2616 = vmax.f32 %v2582, 0.0
  %v2617 = vpack.c.bf16 %v2586, %v2585
  %v2618 = vpack.c.bf16 %v2588, %v2587
  %v2619 = vpack.c.bf16 %v2590, %v2589
  %v2620 = vpack.c.bf16 %v2592, %v2591
  %v2621 = vpack.c.bf16 %v2594, %v2593
  %v2622 = vpack.c.bf16 %v2596, %v2595
  %v2623 = vpack.c.bf16 %v2598, %v2597
  %v2624 = vpack.c.bf16 %v2600, %v2599
  %v2625 = vpack.c.bf16 %v2602, %v2601
  %v2626 = vpack.c.bf16 %v2604, %v2603
  %v2627 = vpack.c.bf16 %v2606, %v2605
  %v2628 = vpack.c.bf16 %v2608, %v2607
  %v2629 = vpack.c.bf16 %v2610, %v2609
  %v2630 = vpack.c.bf16 %v2612, %v2611
  %v2631 = vpack.c.bf16 %v2614, %v2613
  %v2632 = vpack.c.bf16 %v2616, %v2615
  %v2633 = vld [vmem:[%s5] sm:$0xf]
  %v2634 = vld [vmem:[%s5 + $0x4] sm:$0xf]
  %v2635 = vld [vmem:[%s5 + $0x8] sm:$0xf]
  %v2636 = vld [vmem:[%s5 + $0xc] sm:$0xf]
  %v2637 = vld [vmem:[%s5 + $0x10] sm:$0xf]
  %v2638 = vld [vmem:[%s5 + $0x14] sm:$0xf]
  %v2639 = vld [vmem:[%s5 + $0x18] sm:$0xf]
  %v2640 = vld [vmem:[%s5 + $0x1c] sm:$0xf]
  %v2641 = vld [vmem:[%s5 + $0x20] sm:$0xf]
  %v2642 = vld [vmem:[%s5 + $0x24] sm:$0xf]
  %v2643 = vld [vmem:[%s5 + $0x28] sm:$0xf]
  %v2644 = vld [vmem:[%s5 + $0x2c] sm:$0xf]
  %v2645 = vld [vmem:[%s5 + $0x30] sm:$0xf]
  %v2646 = vld [vmem:[%s5 + $0x34] sm:$0xf]
  %v2647 = vld [vmem:[%s5 + $0x38] sm:$0xf]
  %v2648 = vld [vmem:[%s5 + $0x3c] sm:$0xf]
  %v2649 = vld [vmem:[%s6] sm:$0x1]
  %v2651 = vlaneseq
  %v2652 = vshrl.u32 %v2651, 7
  %v2653 = vsub.s32 0, %v2652
  %v2654 = vrot.slane %v2649, %v2653
  %v2672 = vunpack.c.l.b16 %v2633
  %v2673 = vunpack.c.l.b16 %v2634
  %v2674 = vunpack.c.l.b16 %v2635
  %v2675 = vunpack.c.l.b16 %v2636
  %v2676 = vunpack.c.l.b16 %v2637
  %v2677 = vunpack.c.l.b16 %v2638
  %v2678 = vunpack.c.l.b16 %v2639
  %v2679 = vunpack.c.l.b16 %v2640
  %v2680 = vunpack.c.l.b16 %v2641
  %v2681 = vunpack.c.l.b16 %v2642
  %v2682 = vunpack.c.l.b16 %v2643
  %v2683 = vunpack.c.l.b16 %v2644
  %v2684 = vunpack.c.l.b16 %v2645
  %v2685 = vunpack.c.l.b16 %v2646
  %v2686 = vunpack.c.l.b16 %v2647
  %v2687 = vunpack.c.l.b16 %v2648
  %v2688 = vpack.c.b16 %v2673, %v2672
  %v2689 = vpack.c.b16 %v2675, %v2674
  %v2690 = vpack.c.b16 %v2677, %v2676
  %v2691 = vpack.c.b16 %v2679, %v2678
  %v2692 = vpack.c.b16 %v2681, %v2680
  %v2693 = vpack.c.b16 %v2683, %v2682
  %v2694 = vpack.c.b16 %v2685, %v2684
  %v2695 = vpack.c.b16 %v2687, %v2686
  %2704 = vmatprep.subr.bf16.mxu0 0
  %2705 = vmatpush1.bf16.msra.mxu0 %v2688
  %2706 = vmatprep.subr.bf16.mxu0 0
  %2707 = vmatpush1.bf16.msra.mxu0 %v2689
  %2708 = vmatprep.subr.bf16.mxu0 0
  %2709 = vmatpush1.bf16.msra.mxu0 %v2690
  %2710 = vmatprep.subr.bf16.mxu0 0
  %2711 = vmatpush1.bf16.msra.mxu0 %v2691
  %2712 = vmatprep.subr.bf16.mxu0 0
  %2713 = vmatpush1.bf16.msra.mxu0 %v2692
  %2714 = vmatprep.subr.bf16.mxu0 0
  %2715 = vmatpush1.bf16.msra.mxu0 %v2693
  %2716 = vmatprep.subr.bf16.mxu0 0
  %2717 = vmatpush1.bf16.msra.mxu0 %v2694
  %2718 = vmatprep.subr.bf16.mxu0 0
  %2719 = vmatpush1.bf16.msra.mxu0 %v2695
  %2720 = vmatprep.subr.bf16.mxu0 0
  %2721 = vmatpush1.bf16.msra.mxu0 0
  %2722 = vmatprep.subr.bf16.mxu0 0
  %2723 = vmatpush1.bf16.msra.mxu0 0
  %2724 = vmatprep.subr.bf16.mxu0 0
  %2725 = vmatpush1.bf16.msra.mxu0 0
  %2726 = vmatprep.subr.bf16.mxu0 0
  %2727 = vmatpush1.bf16.msra.mxu0 0
  %2728 = vmatprep.subr.bf16.mxu0 0
  %2729 = vmatpush1.bf16.msra.mxu0 0
  %2730 = vmatprep.subr.bf16.mxu0 0
  %2731 = vmatpush1.bf16.msra.mxu0 0
  %2732 = vmatprep.subr.bf16.mxu0 0
  %2733 = vmatpush1.bf16.msra.mxu0 0
  %2734 = vmatprep.subr.bf16.mxu0 0
  %2735 = vmatpush1.bf16.msra.mxu0 0
  %2736 = vmatprep.mubr.bf16.mxu0 0
  %2737 = vmatmul.mubr.bf16.gmra.mrb[0].mxu0 %v2617
  %v2738 = vpop.f32.mrb[0].mxu0
  %v2739 = vadd.f32 %v2654, %v2738
  %v2740 = vpop.f32.mrb[0].mxu0
  %v2741 = vpop.f32.mrb[0].mxu0
  %v2742 = vadd.f32 %v2654, %v2741
  %v2743 = vpop.f32.mrb[0].mxu0
  %2744 = vmatprep.mubr.bf16.mxu0 0
  %2745 = vmatmul.mubr.bf16.gmra.mrb[0].mxu0 %v2618
  %v2746 = vpop.f32.mrb[0].mxu0
  %v2747 = vadd.f32 %v2654, %v2746
  %v2748 = vpop.f32.mrb[0].mxu0
  %v2749 = vpop.f32.mrb[0].mxu0
  %v2750 = vadd.f32 %v2654, %v2749
  %v2751 = vpop.f32.mrb[0].mxu0
  %2752 = vmatprep.mubr.bf16.mxu0 0
  %2753 = vmatmul.mubr.bf16.gmra.mrb[0].mxu0 %v2619
  %v2754 = vpop.f32.mrb[0].mxu0
  %v2755 = vadd.f32 %v2654, %v2754
  %v2756 = vpop.f32.mrb[0].mxu0
  %v2757 = vpop.f32.mrb[0].mxu0
  %v2758 = vadd.f32 %v2654, %v2757
  %v2759 = vpop.f32.mrb[0].mxu0
  %2760 = vmatprep.mubr.bf16.mxu0 0
  %2761 = vmatmul.mubr.bf16.gmra.mrb[0].mxu0 %v2620
  %v2762 = vpop.f32.mrb[0].mxu0
  %v2763 = vadd.f32 %v2654, %v2762
  %v2764 = vpop.f32.mrb[0].mxu0
  %v2765 = vpop.f32.mrb[0].mxu0
  %v2766 = vadd.f32 %v2654, %v2765
  %v2767 = vpop.f32.mrb[0].mxu0
  %2768 = vmatprep.mubr.bf16.mxu0 0
  %2769 = vmatmul.mubr.bf16.gmra.mrb[0].mxu0 %v2621
  %v2770 = vpop.f32.mrb[0].mxu0
  %v2771 = vadd.f32 %v2654, %v2770
  %v2772 = vpop.f32.mrb[0].mxu0
  %v2773 = vpop.f32.mrb[0].mxu0
  %v2774 = vadd.f32 %v2654, %v2773
  %v2775 = vpop.f32.mrb[0].mxu0
  %2776 = vmatprep.mubr.bf16.mxu0 0
  %2777 = vmatmul.mubr.bf16.gmra.mrb[0].mxu0 %v2622
  %v2778 = vpop.f32.mrb[0].mxu0
  %v2779 = vadd.f32 %v2654, %v2778
  %v2780 = vpop.f32.mrb[0].mxu0
  %v2781 = vpop.f32.mrb[0].mxu0
  %v2782 = vadd.f32 %v2654, %v2781
  %v2783 = vpop.f32.mrb[0].mxu0
  %2784 = vmatprep.mubr.bf16.mxu0 0
  %2785 = vmatmul.mubr.bf16.gmra.mrb[0].mxu0 %v2623
  %v2786 = vpop.f32.mrb[0].mxu0
  %v2787 = vadd.f32 %v2654, %v2786
  %v2788 = vpop.f32.mrb[0].mxu0
  %v2789 = vpop.f32.mrb[0].mxu0
  %v2790 = vadd.f32 %v2654, %v2789
  %v2791 = vpop.f32.mrb[0].mxu0
  %2792 = vmatprep.mubr.bf16.mxu0 0
  %2793 = vmatmul.mubr.bf16.gmra.mrb[0].mxu0 %v2624
  %v2794 = vpop.f32.mrb[0].mxu0
  %v2795 = vadd.f32 %v2654, %v2794
  %v2796 = vpop.f32.mrb[0].mxu0
  %v2797 = vpop.f32.mrb[0].mxu0
  %v2798 = vadd.f32 %v2654, %v2797
  %v2799 = vpop.f32.mrb[0].mxu0
  %2800 = vmatprep.mubr.bf16.mxu0 0
  %2801 = vmatmul.mubr.bf16.gmra.mrb[0].mxu0 %v2625
  %v2802 = vpop.f32.mrb[0].mxu0
  %v2803 = vadd.f32 %v2654, %v2802
  %v2804 = vpop.f32.mrb[0].mxu0
  %v2805 = vpop.f32.mrb[0].mxu0
  %v2806 = vadd.f32 %v2654, %v2805
  %v2807 = vpop.f32.mrb[0].mxu0
  %2808 = vmatprep.mubr.bf16.mxu0 0
  %2809 = vmatmul.mubr.bf16.gmra.mrb[0].mxu0 %v2626
  %v2810 = vpop.f32.mrb[0].mxu0
  %v2811 = vadd.f32 %v2654, %v2810
  %v2812 = vpop.f32.mrb[0].mxu0
  %v2813 = vpop.f32.mrb[0].mxu0
  %v2814 = vadd.f32 %v2654, %v2813
  %v2815 = vpop.f32.mrb[0].mxu0
  %2816 = vmatprep.mubr.bf16.mxu0 0
  %2817 = vmatmul.mubr.bf16.gmra.mrb[0].mxu0 %v2627
  %v2818 = vpop.f32.mrb[0].mxu0
  %v2819 = vadd.f32 %v2654, %v2818
  %v2820 = vpop.f32.mrb[0].mxu0
  %v2821 = vpop.f32.mrb[0].mxu0
  %v2822 = vadd.f32 %v2654, %v2821
  %v2823 = vpop.f32.mrb[0].mxu0
  %2824 = vmatprep.mubr.bf16.mxu0 0
  %2825 = vmatmul.mubr.bf16.gmra.mrb[0].mxu0 %v2628
  %v2826 = vpop.f32.mrb[0].mxu0
  %v2827 = vadd.f32 %v2654, %v2826
  %v2828 = vpop.f32.mrb[0].mxu0
  %v2829 = vpop.f32.mrb[0].mxu0
  %v2830 = vadd.f32 %v2654, %v2829
  %v2831 = vpop.f32.mrb[0].mxu0
  %2832 = vmatprep.mubr.bf16.mxu0 0
  %2833 = vmatmul.mubr.bf16.gmra.mrb[0].mxu0 %v2629
  %v2834 = vpop.f32.mrb[0].mxu0
  %v2835 = vadd.f32 %v2654, %v2834
  %v2836 = vpop.f32.mrb[0].mxu0
  %v2837 = vpop.f32.mrb[0].mxu0
  %v2838 = vadd.f32 %v2654, %v2837
  %v2839 = vpop.f32.mrb[0].mxu0
  %2840 = vmatprep.mubr.bf16.mxu0 0
  %2841 = vmatmul.mubr.bf16.gmra.mrb[0].mxu0 %v2630
  %v2842 = vpop.f32.mrb[0].mxu0
  %v2843 = vadd.f32 %v2654, %v2842
  %v2844 = vpop.f32.mrb[0].mxu0
  %v2845 = vpop.f32.mrb[0].mxu0
  %v2846 = vadd.f32 %v2654, %v2845
  %v2847 = vpop.f32.mrb[0].mxu0
  %2848 = vmatprep.mubr.bf16.mxu0 0
  %2849 = vmatmul.mubr.bf16.gmra.mrb[0].mxu0 %v2631
  %v2850 = vpop.f32.mrb[0].mxu0
  %v2851 = vadd.f32 %v2654, %v2850
  %v2852 = vpop.f32.mrb[0].mxu0
  %v2853 = vpop.f32.mrb[0].mxu0
  %v2854 = vadd.f32 %v2654, %v2853
  %v2855 = vpop.f32.mrb[0].mxu0
  %2856 = vmatprep.mubr.bf16.mxu0 0
  %2857 = vmatmul.mubr.bf16.gmra.mrb[0].mxu0 %v2632
  %v2858 = vpop.f32.mrb[0].mxu0
  %v2859 = vadd.f32 %v2654, %v2858
  %v2860 = vpop.f32.mrb[0].mxu0
  %v2861 = vpop.f32.mrb[0].mxu0
  %v2862 = vadd.f32 %v2654, %v2861
  %v2863 = vpop.f32.mrb[0].mxu0
  %2864 = vdwg.mxu0
  %v2865 = vmax.f32 %v2739, 0.0
  %v2866 = vmax.f32 %v2742, 0.0
  %v2867 = vmax.f32 %v2747, 0.0
  %v2868 = vmax.f32 %v2750, 0.0
  %v2869 = vmax.f32 %v2755, 0.0
  %v2870 = vmax.f32 %v2758, 0.0
  %v2871 = vmax.f32 %v2763, 0.0
  %v2872 = vmax.f32 %v2766, 0.0
  %v2873 = vmax.f32 %v2771, 0.0
  %v2874 = vmax.f32 %v2774, 0.0
  %v2875 = vmax.f32 %v2779, 0.0
  %v2876 = vmax.f32 %v2782, 0.0
  %v2877 = vmax.f32 %v2787, 0.0
  %v2878 = vmax.f32 %v2790, 0.0
  %v2879 = vmax.f32 %v2795, 0.0
  %v2880 = vmax.f32 %v2798, 0.0
  %v2881 = vmax.f32 %v2803, 0.0
  %v2882 = vmax.f32 %v2806, 0.0
  %v2883 = vmax.f32 %v2811, 0.0
  %v2884 = vmax.f32 %v2814, 0.0
  %v2885 = vmax.f32 %v2819, 0.0
  %v2886 = vmax.f32 %v2822, 0.0
  %v2887 = vmax.f32 %v2827, 0.0
  %v2888 = vmax.f32 %v2830, 0.0
  %v2889 = vmax.f32 %v2835, 0.0
  %v2890 = vmax.f32 %v2838, 0.0
  %v2891 = vmax.f32 %v2843, 0.0
  %v2892 = vmax.f32 %v2846, 0.0
  %v2893 = vmax.f32 %v2851, 0.0
  %v2894 = vmax.f32 %v2854, 0.0
  %v2895 = vmax.f32 %v2859, 0.0
  %v2896 = vmax.f32 %v2862, 0.0
  %v2897 = vpack.c.bf16 %v2866, %v2865
  %v2898 = vpack.c.bf16 %v2868, %v2867
  %v2899 = vpack.c.bf16 %v2870, %v2869
  %v2900 = vpack.c.bf16 %v2872, %v2871
  %v2901 = vpack.c.bf16 %v2874, %v2873
  %v2902 = vpack.c.bf16 %v2876, %v2875
  %v2903 = vpack.c.bf16 %v2878, %v2877
  %v2904 = vpack.c.bf16 %v2880, %v2879
  %v2905 = vpack.c.bf16 %v2882, %v2881
  %v2906 = vpack.c.bf16 %v2884, %v2883
  %v2907 = vpack.c.bf16 %v2886, %v2885
  %v2908 = vpack.c.bf16 %v2888, %v2887
  %v2909 = vpack.c.bf16 %v2890, %v2889
  %v2910 = vpack.c.bf16 %v2892, %v2891
  %v2911 = vpack.c.bf16 %v2894, %v2893
  %v2912 = vpack.c.bf16 %v2896, %v2895
  %v2913 = vld [vmem:[%s7] sm:$0xf]
  %v2914 = vld [vmem:[%s7 + $0x4] sm:$0xf]
  %v2915 = vld [vmem:[%s7 + $0x8] sm:$0xf]
  %v2916 = vld [vmem:[%s7 + $0xc] sm:$0xf]
  %v2917 = vld [vmem:[%s7 + $0x10] sm:$0xf]
  %v2918 = vld [vmem:[%s7 + $0x14] sm:$0xf]
  %v2919 = vld [vmem:[%s7 + $0x18] sm:$0xf]
  %v2920 = vld [vmem:[%s7 + $0x1c] sm:$0xf]
  %v2921 = vld [vmem:[%s8] sm:$0x1]
  %v2923 = vlaneseq
  %v2924 = vshrl.u32 %v2923, 7
  %v2925 = vsub.s32 0, %v2924
  %v2926 = vrot.slane %v2921, %v2925
  %v2936 = vunpack.c.l.b16 %v2913
  %v2937 = vunpack.c.l.b16 %v2914
  %v2938 = vunpack.c.l.b16 %v2915
  %v2939 = vunpack.c.l.b16 %v2916
  %v2940 = vunpack.c.l.b16 %v2917
  %v2941 = vunpack.c.l.b16 %v2918
  %v2942 = vunpack.c.l.b16 %v2919
  %v2943 = vunpack.c.l.b16 %v2920
  %v2944 = vpack.c.b16 %v2937, %v2936
  %v2945 = vpack.c.b16 %v2939, %v2938
  %v2946 = vpack.c.b16 %v2941, %v2940
  %v2947 = vpack.c.b16 %v2943, %v2942
  %vm2952 = vcmask 523264
  %v2954 = vsel %vm2952, %v2897, 0
  %v2957 = vsel %vm2952, %v2898, 0
  %v2960 = vsel %vm2952, %v2899, 0
  %v2963 = vsel %vm2952, %v2900, 0
  %v2966 = vsel %vm2952, %v2901, 0
  %v2969 = vsel %vm2952, %v2902, 0
  %v2972 = vsel %vm2952, %v2903, 0
  %v2975 = vsel %vm2952, %v2904, 0
  %v2978 = vsel %vm2952, %v2905, 0
  %v2981 = vsel %vm2952, %v2906, 0
  %v2984 = vsel %vm2952, %v2907, 0
  %v2987 = vsel %vm2952, %v2908, 0
  %v2990 = vsel %vm2952, %v2909, 0
  %v2993 = vsel %vm2952, %v2910, 0
  %v2996 = vsel %vm2952, %v2911, 0
  %v2999 = vsel %vm2952, %v2912, 0
  %3001 = vmatprep.subr.bf16.mxu0 0
  %3002 = vmatpush1.bf16.msra.mxu0 %v2944
  %3003 = vmatprep.subr.bf16.mxu0 0
  %3004 = vmatpush1.bf16.msra.mxu0 %v2945
  %3005 = vmatprep.subr.bf16.mxu0 0
  %3006 = vmatpush1.bf16.msra.mxu0 %v2946
  %3007 = vmatprep.subr.bf16.mxu0 0
  %3008 = vmatpush1.bf16.msra.mxu0 %v2947
  %3009 = vmatprep.subr.bf16.mxu0 0
  %3010 = vmatpush1.bf16.msra.mxu0 0
  %3011 = vmatprep.subr.bf16.mxu0 0
  %3012 = vmatpush1.bf16.msra.mxu0 0
  %3013 = vmatprep.subr.bf16.mxu0 0
  %3014 = vmatpush1.bf16.msra.mxu0 0
  %3015 = vmatprep.subr.bf16.mxu0 0
  %3016 = vmatpush1.bf16.msra.mxu0 0
  %3017 = vmatprep.subr.bf16.mxu0 0
  %3018 = vmatpush1.bf16.msra.mxu0 0
  %3019 = vmatprep.subr.bf16.mxu0 0
  %3020 = vmatpush1.bf16.msra.mxu0 0
  %3021 = vmatprep.subr.bf16.mxu0 0
  %3022 = vmatpush1.bf16.msra.mxu0 0
  %3023 = vmatprep.subr.bf16.mxu0 0
  %3024 = vmatpush1.bf16.msra.mxu0 0
  %3025 = vmatprep.subr.bf16.mxu0 0
  %3026 = vmatpush1.bf16.msra.mxu0 0
  %3027 = vmatprep.subr.bf16.mxu0 0
  %3028 = vmatpush1.bf16.msra.mxu0 0
  %3029 = vmatprep.subr.bf16.mxu0 0
  %3030 = vmatpush1.bf16.msra.mxu0 0
  %3031 = vmatprep.subr.bf16.mxu0 0
  %3032 = vmatpush1.bf16.msra.mxu0 0
  %3033 = vmatprep.mubr.bf16.mxu0 0
  %3034 = vmatmul.mubr.bf16.gmra.mrb[0].mxu0 %v2954
  %v3035 = vpop.f32.mrb[0].mxu0
  %v3036 = vadd.f32 %v2926, %v3035
  %v3037 = vpop.f32.mrb[0].mxu0
  %v3038 = vpop.f32.mrb[0].mxu0
  %v3039 = vadd.f32 %v2926, %v3038
  %v3040 = vpop.f32.mrb[0].mxu0
  %3041 = vmatprep.mubr.bf16.mxu0 0
  %3042 = vmatmul.mubr.bf16.gmra.mrb[0].mxu0 %v2957
  %v3043 = vpop.f32.mrb[0].mxu0
  %v3044 = vadd.f32 %v2926, %v3043
  %v3045 = vpop.f32.mrb[0].mxu0
  %v3046 = vpop.f32.mrb[0].mxu0
  %v3047 = vadd.f32 %v2926, %v3046
  %v3048 = vpop.f32.mrb[0].mxu0
  %3049 = vmatprep.mubr.bf16.mxu0 0
  %3050 = vmatmul.mubr.bf16.gmra.mrb[0].mxu0 %v2960
  %v3051 = vpop.f32.mrb[0].mxu0
  %v3052 = vadd.f32 %v2926, %v3051
  %v3053 = vpop.f32.mrb[0].mxu0
  %v3054 = vpop.f32.mrb[0].mxu0
  %v3055 = vadd.f32 %v2926, %v3054
  %v3056 = vpop.f32.mrb[0].mxu0
  %3057 = vmatprep.mubr.bf16.mxu0 0
  %3058 = vmatmul.mubr.bf16.gmra.mrb[0].mxu0 %v2963
  %v3059 = vpop.f32.mrb[0].mxu0
  %v3060 = vadd.f32 %v2926, %v3059
  %v3061 = vpop.f32.mrb[0].mxu0
  %v3062 = vpop.f32.mrb[0].mxu0
  %v3063 = vadd.f32 %v2926, %v3062
  %v3064 = vpop.f32.mrb[0].mxu0
  %3065 = vmatprep.mubr.bf16.mxu0 0
  %3066 = vmatmul.mubr.bf16.gmra.mrb[0].mxu0 %v2966
  %v3067 = vpop.f32.mrb[0].mxu0
  %v3068 = vadd.f32 %v2926, %v3067
  %v3069 = vpop.f32.mrb[0].mxu0
  %v3070 = vpop.f32.mrb[0].mxu0
  %v3071 = vadd.f32 %v2926, %v3070
  %v3072 = vpop.f32.mrb[0].mxu0
  %3073 = vmatprep.mubr.bf16.mxu0 0
  %3074 = vmatmul.mubr.bf16.gmra.mrb[0].mxu0 %v2969
  %v3075 = vpop.f32.mrb[0].mxu0
  %v3076 = vadd.f32 %v2926, %v3075
  %v3077 = vpop.f32.mrb[0].mxu0
  %v3078 = vpop.f32.mrb[0].mxu0
  %v3079 = vadd.f32 %v2926, %v3078
  %v3080 = vpop.f32.mrb[0].mxu0
  %3081 = vmatprep.mubr.bf16.mxu0 0
  %3082 = vmatmul.mubr.bf16.gmra.mrb[0].mxu0 %v2972
  %v3083 = vpop.f32.mrb[0].mxu0
  %v3084 = vadd.f32 %v2926, %v3083
  %v3085 = vpop.f32.mrb[0].mxu0
  %v3086 = vpop.f32.mrb[0].mxu0
  %v3087 = vadd.f32 %v2926, %v3086
  %v3088 = vpop.f32.mrb[0].mxu0
  %3089 = vmatprep.mubr.bf16.mxu0 0
  %3090 = vmatmul.mubr.bf16.gmra.mrb[0].mxu0 %v2975
  %v3091 = vpop.f32.mrb[0].mxu0
  %v3092 = vadd.f32 %v2926, %v3091
  %v3093 = vpop.f32.mrb[0].mxu0
  %v3094 = vpop.f32.mrb[0].mxu0
  %v3095 = vadd.f32 %v2926, %v3094
  %v3096 = vpop.f32.mrb[0].mxu0
  %3097 = vmatprep.mubr.bf16.mxu0 0
  %3098 = vmatmul.mubr.bf16.gmra.mrb[0].mxu0 %v2978
  %v3099 = vpop.f32.mrb[0].mxu0
  %v3100 = vadd.f32 %v2926, %v3099
  %v3101 = vpop.f32.mrb[0].mxu0
  %v3102 = vpop.f32.mrb[0].mxu0
  %v3103 = vadd.f32 %v2926, %v3102
  %v3104 = vpop.f32.mrb[0].mxu0
  %3105 = vmatprep.mubr.bf16.mxu0 0
  %3106 = vmatmul.mubr.bf16.gmra.mrb[0].mxu0 %v2981
  %v3107 = vpop.f32.mrb[0].mxu0
  %v3108 = vadd.f32 %v2926, %v3107
  %v3109 = vpop.f32.mrb[0].mxu0
  %v3110 = vpop.f32.mrb[0].mxu0
  %v3111 = vadd.f32 %v2926, %v3110
  %v3112 = vpop.f32.mrb[0].mxu0
  %3113 = vmatprep.mubr.bf16.mxu0 0
  %3114 = vmatmul.mubr.bf16.gmra.mrb[0].mxu0 %v2984
  %v3115 = vpop.f32.mrb[0].mxu0
  %v3116 = vadd.f32 %v2926, %v3115
  %v3117 = vpop.f32.mrb[0].mxu0
  %v3118 = vpop.f32.mrb[0].mxu0
  %v3119 = vadd.f32 %v2926, %v3118
  %v3120 = vpop.f32.mrb[0].mxu0
  %3121 = vmatprep.mubr.bf16.mxu0 0
  %3122 = vmatmul.mubr.bf16.gmra.mrb[0].mxu0 %v2987
  %v3123 = vpop.f32.mrb[0].mxu0
  %v3124 = vadd.f32 %v2926, %v3123
  %v3125 = vpop.f32.mrb[0].mxu0
  %v3126 = vpop.f32.mrb[0].mxu0
  %v3127 = vadd.f32 %v2926, %v3126
  %v3128 = vpop.f32.mrb[0].mxu0
  %3129 = vmatprep.mubr.bf16.mxu0 0
  %3130 = vmatmul.mubr.bf16.gmra.mrb[0].mxu0 %v2990
  %v3131 = vpop.f32.mrb[0].mxu0
  %v3132 = vadd.f32 %v2926, %v3131
  %v3133 = vpop.f32.mrb[0].mxu0
  %v3134 = vpop.f32.mrb[0].mxu0
  %v3135 = vadd.f32 %v2926, %v3134
  %v3136 = vpop.f32.mrb[0].mxu0
  %3137 = vmatprep.mubr.bf16.mxu0 0
  %3138 = vmatmul.mubr.bf16.gmra.mrb[0].mxu0 %v2993
  %v3139 = vpop.f32.mrb[0].mxu0
  %v3140 = vadd.f32 %v2926, %v3139
  %v3141 = vpop.f32.mrb[0].mxu0
  %v3142 = vpop.f32.mrb[0].mxu0
  %v3143 = vadd.f32 %v2926, %v3142
  %v3144 = vpop.f32.mrb[0].mxu0
  %3145 = vmatprep.mubr.bf16.mxu0 0
  %3146 = vmatmul.mubr.bf16.gmra.mrb[0].mxu0 %v2996
  %v3147 = vpop.f32.mrb[0].mxu0
  %v3148 = vadd.f32 %v2926, %v3147
  %v3149 = vpop.f32.mrb[0].mxu0
  %v3150 = vpop.f32.mrb[0].mxu0
  %v3151 = vadd.f32 %v2926, %v3150
  %v3152 = vpop.f32.mrb[0].mxu0
  %3153 = vmatprep.mubr.bf16.mxu0 0
  %3154 = vmatmul.mubr.bf16.gmra.mrb[0].mxu0 %v2999
  %v3155 = vpop.f32.mrb[0].mxu0
  %v3156 = vadd.f32 %v2926, %v3155
  %v3157 = vpop.f32.mrb[0].mxu0
  %v3158 = vpop.f32.mrb[0].mxu0
  %v3159 = vadd.f32 %v2926, %v3158
  %v3160 = vpop.f32.mrb[0].mxu0
  %3161 = vdwg.mxu0
  %3162 = vmax.xlane.f32.xlu0 %v3036
  %v3163 = vpop.xlane.xlu0 %3162
  %3164 = vmax.xlane.f32.xlu0 %v3039
  %v3165 = vpop.xlane.xlu0 %3164
  %3166 = vmax.xlane.f32.xlu0 %v3044
  %v3167 = vpop.xlane.xlu0 %3166
  %3168 = vmax.xlane.f32.xlu0 %v3047
  %v3169 = vpop.xlane.xlu0 %3168
  %3170 = vmax.xlane.f32.xlu0 %v3052
  %v3171 = vpop.xlane.xlu0 %3170
  %3172 = vmax.xlane.f32.xlu0 %v3055
  %v3173 = vpop.xlane.xlu0 %3172
  %3174 = vmax.xlane.f32.xlu0 %v3060
  %v3175 = vpop.xlane.xlu0 %3174
  %3176 = vmax.xlane.f32.xlu0 %v3063
  %v3177 = vpop.xlane.xlu0 %3176
  %3178 = vmax.xlane.f32.xlu0 %v3068
  %v3179 = vpop.xlane.xlu0 %3178
  %3180 = vmax.xlane.f32.xlu0 %v3071
  %v3181 = vpop.xlane.xlu0 %3180
  %3182 = vmax.xlane.f32.xlu0 %v3076
  %v3183 = vpop.xlane.xlu0 %3182
  %3184 = vmax.xlane.f32.xlu0 %v3079
  %v3185 = vpop.xlane.xlu0 %3184
  %3186 = vmax.xlane.f32.xlu0 %v3084
  %v3187 = vpop.xlane.xlu0 %3186
  %3188 = vmax.xlane.f32.xlu0 %v3087
  %v3189 = vpop.xlane.xlu0 %3188
  %3190 = vmax.xlane.f32.xlu0 %v3092
  %v3191 = vpop.xlane.xlu0 %3190
  %3192 = vmax.xlane.f32.xlu0 %v3095
  %v3193 = vpop.xlane.xlu0 %3192
  %3194 = vmax.xlane.f32.xlu0 %v3100
  %v3195 = vpop.xlane.xlu0 %3194
  %3196 = vmax.xlane.f32.xlu0 %v3103
  %v3197 = vpop.xlane.xlu0 %3196
  %3198 = vmax.xlane.f32.xlu0 %v3108
  %v3199 = vpop.xlane.xlu0 %3198
  %3200 = vmax.xlane.f32.xlu0 %v3111
  %v3201 = vpop.xlane.xlu0 %3200
  %3202 = vmax.xlane.f32.xlu0 %v3116
  %v3203 = vpop.xlane.xlu0 %3202
  %3204 = vmax.xlane.f32.xlu0 %v3119
  %v3205 = vpop.xlane.xlu0 %3204
  %3206 = vmax.xlane.f32.xlu0 %v3124
  %v3207 = vpop.xlane.xlu0 %3206
  %3208 = vmax.xlane.f32.xlu0 %v3127
  %v3209 = vpop.xlane.xlu0 %3208
  %3210 = vmax.xlane.f32.xlu0 %v3132
  %v3211 = vpop.xlane.xlu0 %3210
  %3212 = vmax.xlane.f32.xlu0 %v3135
  %v3213 = vpop.xlane.xlu0 %3212
  %3214 = vmax.xlane.f32.xlu0 %v3140
  %v3215 = vpop.xlane.xlu0 %3214
  %3216 = vmax.xlane.f32.xlu0 %v3143
  %v3217 = vpop.xlane.xlu0 %3216
  %3218 = vmax.xlane.f32.xlu0 %v3148
  %v3219 = vpop.xlane.xlu0 %3218
  %3220 = vmax.xlane.f32.xlu0 %v3151
  %v3221 = vpop.xlane.xlu0 %3220
  %3222 = vmax.xlane.f32.xlu0 %v3156
  %v3223 = vpop.xlane.xlu0 %3222
  %3224 = vmax.xlane.f32.xlu0 %v3159
  %v3225 = vpop.xlane.xlu0 %3224
  %v3226 = vsub.f32 %v3036, %v3163
  %v3227 = vsub.f32 %v3039, %v3165
  %v3228 = vsub.f32 %v3044, %v3167
  %v3229 = vsub.f32 %v3047, %v3169
  %v3230 = vsub.f32 %v3052, %v3171
  %v3231 = vsub.f32 %v3055, %v3173
  %v3232 = vsub.f32 %v3060, %v3175
  %v3233 = vsub.f32 %v3063, %v3177
  %v3234 = vsub.f32 %v3068, %v3179
  %v3235 = vsub.f32 %v3071, %v3181
  %v3236 = vsub.f32 %v3076, %v3183
  %v3237 = vsub.f32 %v3079, %v3185
  %v3238 = vsub.f32 %v3084, %v3187
  %v3239 = vsub.f32 %v3087, %v3189
  %v3240 = vsub.f32 %v3092, %v3191
  %v3241 = vsub.f32 %v3095, %v3193
  %v3242 = vsub.f32 %v3100, %v3195
  %v3243 = vsub.f32 %v3103, %v3197
  %v3244 = vsub.f32 %v3108, %v3199
  %v3245 = vsub.f32 %v3111, %v3201
  %v3246 = vsub.f32 %v3116, %v3203
  %v3247 = vsub.f32 %v3119, %v3205
  %v3248 = vsub.f32 %v3124, %v3207
  %v3249 = vsub.f32 %v3127, %v3209
  %v3250 = vsub.f32 %v3132, %v3211
  %v3251 = vsub.f32 %v3135, %v3213
  %v3252 = vsub.f32 %v3140, %v3215
  %v3253 = vsub.f32 %v3143, %v3217
  %v3254 = vsub.f32 %v3148, %v3219
  %v3255 = vsub.f32 %v3151, %v3221
  %v3256 = vsub.f32 %v3156, %v3223
  %v3257 = vsub.f32 %v3159, %v3225
  %v3258 = vmul.f32 %v3226, 1.442695
  %v3259 = vpow.pop %v3258
  %v3260 = vmul.f32 %v3227, 1.442695
  %v3261 = vpow.pop %v3260
  %v3262 = vmul.f32 %v3228, 1.442695
  %v3263 = vpow.pop %v3262
  %v3264 = vmul.f32 %v3229, 1.442695
  %v3265 = vpow.pop %v3264
  %v3266 = vmul.f32 %v3230, 1.442695
  %v3267 = vpow.pop %v3266
  %v3268 = vmul.f32 %v3231, 1.442695
  %v3269 = vpow.pop %v3268
  %v3270 = vmul.f32 %v3232, 1.442695
  %v3271 = vpow.pop %v3270
  %v3272 = vmul.f32 %v3233, 1.442695
  %v3273 = vpow.pop %v3272
  %v3274 = vmul.f32 %v3234, 1.442695
  %v3275 = vpow.pop %v3274
  %v3276 = vmul.f32 %v3235, 1.442695
  %v3277 = vpow.pop %v3276
  %v3278 = vmul.f32 %v3236, 1.442695
  %v3279 = vpow.pop %v3278
  %v3280 = vmul.f32 %v3237, 1.442695
  %v3281 = vpow.pop %v3280
  %v3282 = vmul.f32 %v3238, 1.442695
  %v3283 = vpow.pop %v3282
  %v3284 = vmul.f32 %v3239, 1.442695
  %v3285 = vpow.pop %v3284
  %v3286 = vmul.f32 %v3240, 1.442695
  %v3287 = vpow.pop %v3286
  %v3288 = vmul.f32 %v3241, 1.442695
  %v3289 = vpow.pop %v3288
  %v3290 = vmul.f32 %v3242, 1.442695
  %v3291 = vpow.pop %v3290
  %v3292 = vmul.f32 %v3243, 1.442695
  %v3293 = vpow.pop %v3292
  %v3294 = vmul.f32 %v3244, 1.442695
  %v3295 = vpow.pop %v3294
  %v3296 = vmul.f32 %v3245, 1.442695
  %v3297 = vpow.pop %v3296
  %v3298 = vmul.f32 %v3246, 1.442695
  %v3299 = vpow.pop %v3298
  %v3300 = vmul.f32 %v3247, 1.442695
  %v3301 = vpow.pop %v3300
  %v3302 = vmul.f32 %v3248, 1.442695
  %v3303 = vpow.pop %v3302
  %v3304 = vmul.f32 %v3249, 1.442695
  %v3305 = vpow.pop %v3304
  %v3306 = vmul.f32 %v3250, 1.442695
  %v3307 = vpow.pop %v3306
  %v3308 = vmul.f32 %v3251, 1.442695
  %v3309 = vpow.pop %v3308
  %v3310 = vmul.f32 %v3252, 1.442695
  %v3311 = vpow.pop %v3310
  %v3312 = vmul.f32 %v3253, 1.442695
  %v3313 = vpow.pop %v3312
  %v3314 = vmul.f32 %v3254, 1.442695
  %v3315 = vpow.pop %v3314
  %v3316 = vmul.f32 %v3255, 1.442695
  %v3317 = vpow.pop %v3316
  %v3318 = vmul.f32 %v3256, 1.442695
  %v3319 = vpow.pop %v3318
  %v3320 = vmul.f32 %v3257, 1.442695
  %v3321 = vpow.pop %v3320
  %3322 = vadd.xlane.f32.xlu0 %v3259
  %v3323 = vpop.xlane.xlu0 %3322
  %3324 = vadd.xlane.f32.xlu0 %v3261
  %v3325 = vpop.xlane.xlu0 %3324
  %3326 = vadd.xlane.f32.xlu0 %v3263
  %v3327 = vpop.xlane.xlu0 %3326
  %3328 = vadd.xlane.f32.xlu0 %v3265
  %v3329 = vpop.xlane.xlu0 %3328
  %3330 = vadd.xlane.f32.xlu0 %v3267
  %v3331 = vpop.xlane.xlu0 %3330
  %3332 = vadd.xlane.f32.xlu0 %v3269
  %v3333 = vpop.xlane.xlu0 %3332
  %3334 = vadd.xlane.f32.xlu0 %v3271
  %v3335 = vpop.xlane.xlu0 %3334
  %3336 = vadd.xlane.f32.xlu0 %v3273
  %v3337 = vpop.xlane.xlu0 %3336
  %3338 = vadd.xlane.f32.xlu0 %v3275
  %v3339 = vpop.xlane.xlu0 %3338
  %3340 = vadd.xlane.f32.xlu0 %v3277
  %v3341 = vpop.xlane.xlu0 %3340
  %3342 = vadd.xlane.f32.xlu0 %v3279
  %v3343 = vpop.xlane.xlu0 %3342
  %3344 = vadd.xlane.f32.xlu0 %v3281
  %v3345 = vpop.xlane.xlu0 %3344
  %3346 = vadd.xlane.f32.xlu0 %v3283
  %v3347 = vpop.xlane.xlu0 %3346
  %3348 = vadd.xlane.f32.xlu0 %v3285
  %v3349 = vpop.xlane.xlu0 %3348
  %3350 = vadd.xlane.f32.xlu0 %v3287
  %v3351 = vpop.xlane.xlu0 %3350
  %3352 = vadd.xlane.f32.xlu0 %v3289
  %v3353 = vpop.xlane.xlu0 %3352
  %3354 = vadd.xlane.f32.xlu0 %v3291
  %v3355 = vpop.xlane.xlu0 %3354
  %3356 = vadd.xlane.f32.xlu0 %v3293
  %v3357 = vpop.xlane.xlu0 %3356
  %3358 = vadd.xlane.f32.xlu0 %v3295
  %v3359 = vpop.xlane.xlu0 %3358
  %3360 = vadd.xlane.f32.xlu0 %v3297
  %v3361 = vpop.xlane.xlu0 %3360
  %3362 = vadd.xlane.f32.xlu0 %v3299
  %v3363 = vpop.xlane.xlu0 %3362
  %3364 = vadd.xlane.f32.xlu0 %v3301
  %v3365 = vpop.xlane.xlu0 %3364
  %3366 = vadd.xlane.f32.xlu0 %v3303
  %v3367 = vpop.xlane.xlu0 %3366
  %3368 = vadd.xlane.f32.xlu0 %v3305
  %v3369 = vpop.xlane.xlu0 %3368
  %3370 = vadd.xlane.f32.xlu0 %v3307
  %v3371 = vpop.xlane.xlu0 %3370
  %3372 = vadd.xlane.f32.xlu0 %v3309
  %v3373 = vpop.xlane.xlu0 %3372
  %3374 = vadd.xlane.f32.xlu0 %v3311
  %v3375 = vpop.xlane.xlu0 %3374
  %3376 = vadd.xlane.f32.xlu0 %v3313
  %v3377 = vpop.xlane.xlu0 %3376
  %3378 = vadd.xlane.f32.xlu0 %v3315
  %v3379 = vpop.xlane.xlu0 %3378
  %3380 = vadd.xlane.f32.xlu0 %v3317
  %v3381 = vpop.xlane.xlu0 %3380
  %3382 = vadd.xlane.f32.xlu0 %v3319
  %v3383 = vpop.xlane.xlu0 %3382
  %3384 = vadd.xlane.f32.xlu0 %v3321
  %v3385 = vpop.xlane.xlu0 %3384
  %v3386 = vlog2.pop %v3323
  %v3387 = vmul.f32 %v3386, 0.6931472
  %v3388 = vlog2.pop %v3325
  %v3389 = vmul.f32 %v3388, 0.6931472
  %v3390 = vlog2.pop %v3327
  %v3391 = vmul.f32 %v3390, 0.6931472
  %v3392 = vlog2.pop %v3329
  %v3393 = vmul.f32 %v3392, 0.6931472
  %v3394 = vlog2.pop %v3331
  %v3395 = vmul.f32 %v3394, 0.6931472
  %v3396 = vlog2.pop %v3333
  %v3397 = vmul.f32 %v3396, 0.6931472
  %v3398 = vlog2.pop %v3335
  %v3399 = vmul.f32 %v3398, 0.6931472
  %v3400 = vlog2.pop %v3337
  %v3401 = vmul.f32 %v3400, 0.6931472
  %v3402 = vlog2.pop %v3339
  %v3403 = vmul.f32 %v3402, 0.6931472
  %v3404 = vlog2.pop %v3341
  %v3405 = vmul.f32 %v3404, 0.6931472
  %v3406 = vlog2.pop %v3343
  %v3407 = vmul.f32 %v3406, 0.6931472
  %v3408 = vlog2.pop %v3345
  %v3409 = vmul.f32 %v3408, 0.6931472
  %v3410 = vlog2.pop %v3347
  %v3411 = vmul.f32 %v3410, 0.6931472
  %v3412 = vlog2.pop %v3349
  %v3413 = vmul.f32 %v3412, 0.6931472
  %v3414 = vlog2.pop %v3351
  %v3415 = vmul.f32 %v3414, 0.6931472
  %v3416 = vlog2.pop %v3353
  %v3417 = vmul.f32 %v3416, 0.6931472
  %v3418 = vlog2.pop %v3355
  %v3419 = vmul.f32 %v3418, 0.6931472
  %v3420 = vlog2.pop %v3357
  %v3421 = vmul.f32 %v3420, 0.6931472
  %v3422 = vlog2.pop %v3359
  %v3423 = vmul.f32 %v3422, 0.6931472
  %v3424 = vlog2.pop %v3361
  %v3425 = vmul.f32 %v3424, 0.6931472
  %v3426 = vlog2.pop %v3363
  %v3427 = vmul.f32 %v3426, 0.6931472
  %v3428 = vlog2.pop %v3365
  %v3429 = vmul.f32 %v3428, 0.6931472
  %v3430 = vlog2.pop %v3367
  %v3431 = vmul.f32 %v3430, 0.6931472
  %v3432 = vlog2.pop %v3369
  %v3433 = vmul.f32 %v3432, 0.6931472
  %v3434 = vlog2.pop %v3371
  %v3435 = vmul.f32 %v3434, 0.6931472
  %v3436 = vlog2.pop %v3373
  %v3437 = vmul.f32 %v3436, 0.6931472
  %v3438 = vlog2.pop %v3375
  %v3439 = vmul.f32 %v3438, 0.6931472
  %v3440 = vlog2.pop %v3377
  %v3441 = vmul.f32 %v3440, 0.6931472
  %v3442 = vlog2.pop %v3379
  %v3443 = vmul.f32 %v3442, 0.6931472
  %v3444 = vlog2.pop %v3381
  %v3445 = vmul.f32 %v3444, 0.6931472
  %v3446 = vlog2.pop %v3383
  %v3447 = vmul.f32 %v3446, 0.6931472
  %v3448 = vlog2.pop %v3385
  %v3449 = vmul.f32 %v3448, 0.6931472
  %v3450 = vsub.f32 %v3226, %v3387
  %v3451 = vsub.f32 %v3227, %v3389
  %v3452 = vsub.f32 %v3228, %v3391
  %v3453 = vsub.f32 %v3229, %v3393
  %v3454 = vsub.f32 %v3230, %v3395
  %v3455 = vsub.f32 %v3231, %v3397
  %v3456 = vsub.f32 %v3232, %v3399
  %v3457 = vsub.f32 %v3233, %v3401
  %v3458 = vsub.f32 %v3234, %v3403
  %v3459 = vsub.f32 %v3235, %v3405
  %v3460 = vsub.f32 %v3236, %v3407
  %v3461 = vsub.f32 %v3237, %v3409
  %v3462 = vsub.f32 %v3238, %v3411
  %v3463 = vsub.f32 %v3239, %v3413
  %v3464 = vsub.f32 %v3240, %v3415
  %v3465 = vsub.f32 %v3241, %v3417
  %v3466 = vsub.f32 %v3242, %v3419
  %v3467 = vsub.f32 %v3243, %v3421
  %v3468 = vsub.f32 %v3244, %v3423
  %v3469 = vsub.f32 %v3245, %v3425
  %v3470 = vsub.f32 %v3246, %v3427
  %v3471 = vsub.f32 %v3247, %v3429
  %v3472 = vsub.f32 %v3248, %v3431
  %v3473 = vsub.f32 %v3249, %v3433
  %v3474 = vsub.f32 %v3250, %v3435
  %v3475 = vsub.f32 %v3251, %v3437
  %v3476 = vsub.f32 %v3252, %v3439
  %v3477 = vsub.f32 %v3253, %v3441
  %v3478 = vsub.f32 %v3254, %v3443
  %v3479 = vsub.f32 %v3255, %v3445
  %v3480 = vsub.f32 %v3256, %v3447
  %v3481 = vsub.f32 %v3257, %v3449
  %3482 = vst [vmem:[%s9] sm:$0xff] %v3450
  %3483 = vst [vmem:[%s9 + $0x8] sm:$0xff] %v3451
  %3484 = vst [vmem:[%s9 + $0x10] sm:$0xff] %v3452
  %3485 = vst [vmem:[%s9 + $0x18] sm:$0xff] %v3453
  %3486 = vst [vmem:[%s9 + $0x20] sm:$0xff] %v3454
  %3487 = vst [vmem:[%s9 + $0x28] sm:$0xff] %v3455
  %3488 = vst [vmem:[%s9 + $0x30] sm:$0xff] %v3456
  %3489 = vst [vmem:[%s9 + $0x38] sm:$0xff] %v3457
  %3490 = vst [vmem:[%s9 + $0x40] sm:$0xff] %v3458
  %3491 = vst [vmem:[%s9 + $0x48] sm:$0xff] %v3459
  %3492 = vst [vmem:[%s9 + $0x50] sm:$0xff] %v3460
  %3493 = vst [vmem:[%s9 + $0x58] sm:$0xff] %v3461
  %3494 = vst [vmem:[%s9 + $0x60] sm:$0xff] %v3462
  %3495 = vst [vmem:[%s9 + $0x68] sm:$0xff] %v3463
  %3496 = vst [vmem:[%s9 + $0x70] sm:$0xff] %v3464
  %3497 = vst [vmem:[%s9 + $0x78] sm:$0xff] %v3465
  %3498 = vst [vmem:[%s9 + $0x80] sm:$0xff] %v3466
  %3499 = vst [vmem:[%s9 + $0x88] sm:$0xff] %v3467
  %3500 = vst [vmem:[%s9 + $0x90] sm:$0xff] %v3468
  %3501 = vst [vmem:[%s9 + $0x98] sm:$0xff] %v3469
  %3502 = vst [vmem:[%s9 + $0xa0] sm:$0xff] %v3470
  %3503 = vst [vmem:[%s9 + $0xa8] sm:$0xff] %v3471
  %3504 = vst [vmem:[%s9 + $0xb0] sm:$0xff] %v3472
  %3505 = vst [vmem:[%s9 + $0xb8] sm:$0xff] %v3473
  %3506 = vst [vmem:[%s9 + $0xc0] sm:$0xff] %v3474
  %3507 = vst [vmem:[%s9 + $0xc8] sm:$0xff] %v3475
  %3508 = vst [vmem:[%s9 + $0xd0] sm:$0xff] %v3476
  %3509 = vst [vmem:[%s9 + $0xd8] sm:$0xff] %v3477
  %3510 = vst [vmem:[%s9 + $0xe0] sm:$0xff] %v3478
  %3511 = vst [vmem:[%s9 + $0xe8] sm:$0xff] %v3479
  %3512 = vst [vmem:[%s9 + $0xf0] sm:$0xff] %v3480
  %3513 = vst [vmem:[%s9 + $0xf8] sm:$0xff] %v3481
  // Predicated region
  $region38: #{my_awesome_model_forward.1} parent=0 // pred_check
    _
  $region39: #{my_awesome_model_forward.1} parent=0 // pred_check_branch
    %3515 = sbr.rel (0) target = $region41
  $region40: #{my_awesome_model_forward.1} parent=0 // pred_region
    _
  $region41: #{my_awesome_model_forward.1} parent=0 // pred_fallthru
    _
  // Predicated region
  $region42: #{my_awesome_model_forward.1} parent=0 // pred_check
    _
  $region43: #{my_awesome_model_forward.1} parent=0 // pred_check_branch
    %3517 = sbr.rel (0) target = $region45
  $region44: #{my_awesome_model_forward.1} parent=0 // pred_region
    _
  $region45: #{my_awesome_model_forward.1} parent=0 // pred_fallthru
    _

</llo_original>
